<compile_context>
chip_gen: v7x
topology: tpu7x:2x2x1
jax: 0.10.0
libtpu: 0.0.40
codegen_flags: <defaults>
</compile_context>

<pallas_src>
import jax
import jax.numpy as jnp
from jax.experimental import pallas as pl
from jax.experimental.pallas import tpu as pltpu

LANE = 128
SUBLANE = 8


def _round_up(n, m):
    return ((n + m - 1) // m) * m


def _mlp_kernel(x_ref, w1_ref, b1_ref, w2_ref, b2_ref, w3_ref, b3_ref, o_ref):
    # One batch tile per grid step; weights are VMEM-resident across the whole grid.
    x = x_ref[...].astype(jnp.bfloat16)  # f32 -> bf16 (VPU); MXU-native input dtype

    h1 = jnp.dot(x, w1_ref[...], preferred_element_type=jnp.float32) + b1_ref[...]
    h1 = jnp.maximum(h1, 0.0)
    # Dropout(p=0.3): identity in eval mode.

    h2 = jnp.dot(h1.astype(jnp.bfloat16), w2_ref[...],
                 preferred_element_type=jnp.float32) + b2_ref[...]
    h2 = jnp.maximum(h2, 0.0)

    out = jnp.dot(h2.astype(jnp.bfloat16), w3_ref[...],
                  preferred_element_type=jnp.float32) + b3_ref[...]
    o_ref[...] = out.astype(o_ref.dtype)


def simple_tcn_forward(x, params, *, batch_tile=256):
    """x: (B, input_size) float32.  params: output of prepare_params()."""
    w1, b1 = params["w1"], params["b1"]
    w2, b2 = params["w2"], params["b2"]
    w3, b3 = params["w3"], params["b3"]
    num_classes = params["num_classes"]

    B, K = x.shape
    K_pad, H1 = w1.shape
    H2, N_pad = w3.shape

    # Batch tile: big tiles fill MXU rows and amortize per-step overhead; small B just
    # rounds up to the sublane granule.
    tb = min(batch_tile, _round_up(B, SUBLANE))
    B_pad = _round_up(B, tb)

    # Pad batch rows and the reduction dim (4000 -> 4096) with zeros.
    if (B_pad, K_pad) != (B, K):
        x = jnp.pad(x, ((0, B_pad - B), (0, K_pad - K)))

    nb = B_pad // tb

    out = pl.pallas_call(
        _mlp_kernel,
        out_shape=jax.ShapeDtypeStruct((B_pad, N_pad), jnp.float32),
        grid=(nb,),
        in_specs=[
            pl.BlockSpec((tb, K_pad), lambda i: (i, 0)),   # x: streamed per batch tile
            pl.BlockSpec((K_pad, H1), lambda i: (0, 0)),   # W1 (bf16): VMEM-resident
            pl.BlockSpec((1, H1), lambda i: (0, 0)),       # b1
            pl.BlockSpec((H1, H2), lambda i: (0, 0)),      # W2 (bf16)
            pl.BlockSpec((1, H2), lambda i: (0, 0)),       # b2
            pl.BlockSpec((H2, N_pad), lambda i: (0, 0)),   # W3 (bf16, padded to 128 cols)
            pl.BlockSpec((1, N_pad), lambda i: (0, 0)),    # b3 (padded)
        ],
        out_specs=pl.BlockSpec((tb, N_pad), lambda i: (i, 0)),
        compiler_params=pltpu.CompilerParams(
            dimension_semantics=("parallel",),  # batch tiles shard across v7x's 2 TCs
            vmem_limit_bytes=24 << 20,
        ),
    )(x, w1, b1, w2, b2, w3, b3)

    return out[:B, :num_classes]


def init_params(key, input_size=4000, num_classes=2):
    """Deterministic synthetic parameters (shapes match SimpleTCN.__init__), f32."""
    ks = jax.random.split(key, 6)

    def lin(kw, kb, fan_in, fan_out):
        # PyTorch-style uniform(-1/sqrt(fan_in), 1/sqrt(fan_in)); stored as (in, out).
        bound = 1.0 / jnp.sqrt(jnp.float32(fan_in))
        w = jax.random.uniform(kw, (fan_in, fan_out), jnp.float32, -bound, bound)
        b = jax.random.uniform(kb, (1, fan_out), jnp.float32, -bound, bound)
        return w, b

    w1, b1 = lin(ks[0], ks[1], input_size, 256)
    w2, b2 = lin(ks[2], ks[3], 256, 128)
    w3, b3 = lin(ks[4], ks[5], 128, num_classes)
    return {"w1": w1, "b1": b1, "w2": w2, "b2": b2, "w3": w3, "b3": b3}


def prepare_params(params):
    """One-time prep: zero-pad K (4000->4096) and num_classes (->128); weights -> bf16."""
    w1, b1 = params["w1"], params["b1"]
    w2, b2 = params["w2"], params["b2"]
    w3, b3 = params["w3"], params["b3"]
    K, _ = w1.shape
    _, C = w3.shape

    K_pad = _round_up(K, LANE)
    N_pad = _round_up(C, LANE)

    return {
        "w1": jnp.pad(w1, ((0, K_pad - K), (0, 0))).astype(jnp.bfloat16),
        "b1": b1,
        "w2": w2.astype(jnp.bfloat16),
        "b2": b2,
        "w3": jnp.pad(w3, ((0, 0), (0, N_pad - C))).astype(jnp.bfloat16),
        "b3": jnp.pad(b3, ((0, 0), (0, N_pad - C))),
        "num_classes": C,
    }


if __name__ == "__main__":
    key = jax.random.PRNGKey(0)
    k_param, k_x = jax.random.split(key)

    input_size, num_classes, batch = 4000, 2, 8
    raw_params = init_params(k_param, input_size=input_size, num_classes=num_classes)
    params = prepare_params(raw_params)
    x = jax.random.normal(k_x, (batch, input_size), jnp.float32)

    out = simple_tcn_forward(x, params)
    out = jax.block_until_ready(out)
    assert out.shape == (batch, num_classes)

    # Reference 1: exact-math twin of the kernel (bf16-rounded inputs/weights, f32 accum).
    def bf(v):
        return v.astype(jnp.bfloat16).astype(jnp.float32)

    hp = jax.lax.Precision.HIGHEST
    h1 = jnp.maximum(jnp.dot(bf(x), bf(raw_params["w1"]), precision=hp) + raw_params["b1"], 0.0)
    h2 = jnp.maximum(jnp.dot(bf(h1), bf(raw_params["w2"]), precision=hp) + raw_params["b2"], 0.0)
    ref_bf16 = jnp.dot(bf(h2), bf(raw_params["w3"]), precision=hp) + raw_params["b3"]
    assert jnp.allclose(out, ref_bf16, atol=2e-3, rtol=2e-3)

    # Reference 2: original full-f32 SimpleTCN math (looser tol: bf16 weight streaming).
    r1 = jnp.maximum(jnp.dot(x, raw_params["w1"], precision=hp) + raw_params["b1"], 0.0)
    r2 = jnp.maximum(jnp.dot(r1, raw_params["w2"], precision=hp) + raw_params["b2"], 0.0)
    ref_f32 = jnp.dot(r2, raw_params["w3"], precision=hp) + raw_params["b3"]
    assert jnp.allclose(out, ref_f32, atol=5e-2, rtol=5e-2)

    print("KERNEL_OK")
</pallas_src>

<mosaic_0001>
module attributes {stable_mosaic.version = 11 : i64} {
  func.func @_mlp_kernel(%arg0: i32, %arg1: memref<8x4096xf32, #tpu.memory_space<vmem>>, %arg2: memref<4096x256xbf16, #tpu.memory_space<vmem>>, %arg3: memref<1x256xf32, #tpu.memory_space<vmem>>, %arg4: memref<256x128xbf16, #tpu.memory_space<vmem>>, %arg5: memref<1x128xf32, #tpu.memory_space<vmem>>, %arg6: memref<128x128xbf16, #tpu.memory_space<vmem>>, %arg7: memref<1x128xf32, #tpu.memory_space<vmem>>, %arg8: memref<8x128xf32, #tpu.memory_space<vmem>>) attributes {dimension_semantics = [#tpu.dimension_semantics<parallel>], iteration_bounds = array<i64: 1>, scalar_prefetch = 0 : i64, scratch_operands = 0 : i64, tpu.core_type = #tpu.core_type<tc>, window_params = [{transform_indices = @transform_0, window_bounds = array<i64: 8, 4096>}, {pipeline_mode = #tpu.pipeline_mode<synchronous>, transform_indices = @transform_1, window_bounds = array<i64: 4096, 256>}, {pipeline_mode = #tpu.pipeline_mode<synchronous>, transform_indices = @transform_2, window_bounds = array<i64: 1, 256>}, {pipeline_mode = #tpu.pipeline_mode<synchronous>, transform_indices = @transform_3, window_bounds = array<i64: 256, 128>}, {pipeline_mode = #tpu.pipeline_mode<synchronous>, transform_indices = @transform_4, window_bounds = array<i64: 1, 128>}, {pipeline_mode = #tpu.pipeline_mode<synchronous>, transform_indices = @transform_5, window_bounds = array<i64: 128, 128>}, {pipeline_mode = #tpu.pipeline_mode<synchronous>, transform_indices = @transform_6, window_bounds = array<i64: 1, 128>}, {transform_indices = @transform_7, window_bounds = array<i64: 8, 128>}]} {
    %c0 = arith.constant 0 : index
    %c0_0 = arith.constant 0 : index
    %0 = vector.load %arg1[%c0, %c0_0] : memref<8x4096xf32, #tpu.memory_space<vmem>>, vector<8x4096xf32>
    %1 = arith.truncf %0 : vector<8x4096xf32> to vector<8x4096xbf16>
    %c0_1 = arith.constant 0 : index
    %c0_2 = arith.constant 0 : index
    %2 = vector.load %arg2[%c0_1, %c0_2] : memref<4096x256xbf16, #tpu.memory_space<vmem>>, vector<4096x256xbf16>
    %cst = arith.constant dense<0.000000e+00> : vector<8x256xf32>
    %3 = tpu.matmul %1, %2, %cst {dimension_numbers = #tpu.dot_dimension_numbers<[1], [0], [0], [1], [0, 0, 1, 1], [], []>} : vector<8x4096xbf16>, vector<4096x256xbf16>, vector<8x256xf32> -> vector<8x256xf32>
    %c0_3 = arith.constant 0 : index
    %c0_4 = arith.constant 0 : index
    %4 = vector.load %arg3[%c0_3, %c0_4] : memref<1x256xf32, #tpu.memory_space<vmem>>, vector<1x256xf32>
    %5 = vector.broadcast %4 : vector<1x256xf32> to vector<8x256xf32>
    %6 = arith.addf %3, %5 : vector<8x256xf32>
    %cst_5 = arith.constant 0.000000e+00 : f32
    %7 = vector.broadcast %cst_5 : f32 to vector<8x256xf32>
    %8 = arith.maximumf %6, %7 : vector<8x256xf32>
    %9 = arith.truncf %8 : vector<8x256xf32> to vector<8x256xbf16>
    %c0_6 = arith.constant 0 : index
    %c0_7 = arith.constant 0 : index
    %10 = vector.load %arg4[%c0_6, %c0_7] : memref<256x128xbf16, #tpu.memory_space<vmem>>, vector<256x128xbf16>
    %cst_8 = arith.constant dense<0.000000e+00> : vector<8x128xf32>
    %11 = tpu.matmul %9, %10, %cst_8 {dimension_numbers = #tpu.dot_dimension_numbers<[1], [0], [0], [1], [0, 0, 1, 1], [], []>} : vector<8x256xbf16>, vector<256x128xbf16>, vector<8x128xf32> -> vector<8x128xf32>
    %c0_9 = arith.constant 0 : index
    %c0_10 = arith.constant 0 : index
    %12 = vector.load %arg5[%c0_9, %c0_10] : memref<1x128xf32, #tpu.memory_space<vmem>>, vector<1x128xf32>
    %13 = vector.broadcast %12 : vector<1x128xf32> to vector<8x128xf32>
    %14 = arith.addf %11, %13 : vector<8x128xf32>
    %cst_11 = arith.constant 0.000000e+00 : f32
    %15 = vector.broadcast %cst_11 : f32 to vector<8x128xf32>
    %16 = arith.maximumf %14, %15 : vector<8x128xf32>
    %17 = arith.truncf %16 : vector<8x128xf32> to vector<8x128xbf16>
    %c0_12 = arith.constant 0 : index
    %c0_13 = arith.constant 0 : index
    %18 = vector.load %arg6[%c0_12, %c0_13] : memref<128x128xbf16, #tpu.memory_space<vmem>>, vector<128x128xbf16>
    %cst_14 = arith.constant dense<0.000000e+00> : vector<8x128xf32>
    %19 = tpu.matmul %17, %18, %cst_14 {dimension_numbers = #tpu.dot_dimension_numbers<[1], [0], [0], [1], [0, 0, 1, 1], [], []>} : vector<8x128xbf16>, vector<128x128xbf16>, vector<8x128xf32> -> vector<8x128xf32>
    %c0_15 = arith.constant 0 : index
    %c0_16 = arith.constant 0 : index
    %20 = vector.load %arg7[%c0_15, %c0_16] : memref<1x128xf32, #tpu.memory_space<vmem>>, vector<1x128xf32>
    %21 = vector.broadcast %20 : vector<1x128xf32> to vector<8x128xf32>
    %22 = arith.addf %19, %21 : vector<8x128xf32>
    %c0_17 = arith.constant 0 : index
    %c0_18 = arith.constant 0 : index
    %23 = vector.load %arg8[%c0_17, %c0_18] : memref<8x128xf32, #tpu.memory_space<vmem>>, vector<8x128xf32>
    tpu.vector_store %arg8[%c0_17, %c0_18], %22 {strides = array<i32>} : memref<8x128xf32, #tpu.memory_space<vmem>>, vector<8x128xf32>,
    return
  }
  func.func @transform_0(%arg0: i32) -> (i32, i32) {
    %c0_i32 = arith.constant 0 : i32
    %c0_i32_0 = arith.constant 0 : i32
    return %arg0, %c0_i32 : i32, i32
  }
  func.func @transform_1(%arg0: i32) -> (i32, i32) {
    %c0_i32 = arith.constant 0 : i32
    %c0_i32_0 = arith.constant 0 : i32
    %c0_i32_1 = arith.constant 0 : i32
    return %c0_i32, %c0_i32_0 : i32, i32
  }
  func.func @transform_2(%arg0: i32) -> (i32, i32) {
    %c0_i32 = arith.constant 0 : i32
    %c0_i32_0 = arith.constant 0 : i32
    %c0_i32_1 = arith.constant 0 : i32
    return %c0_i32, %c0_i32_0 : i32, i32
  }
  func.func @transform_3(%arg0: i32) -> (i32, i32) {
    %c0_i32 = arith.constant 0 : i32
    %c0_i32_0 = arith.constant 0 : i32
    %c0_i32_1 = arith.constant 0 : i32
    return %c0_i32, %c0_i32_0 : i32, i32
  }
  func.func @transform_4(%arg0: i32) -> (i32, i32) {
    %c0_i32 = arith.constant 0 : i32
    %c0_i32_0 = arith.constant 0 : i32
    %c0_i32_1 = arith.constant 0 : i32
    return %c0_i32, %c0_i32_0 : i32, i32
  }
  func.func @transform_5(%arg0: i32) -> (i32, i32) {
    %c0_i32 = arith.constant 0 : i32
    %c0_i32_0 = arith.constant 0 : i32
    %c0_i32_1 = arith.constant 0 : i32
    return %c0_i32, %c0_i32_0 : i32, i32
  }
  func.func @transform_6(%arg0: i32) -> (i32, i32) {
    %c0_i32 = arith.constant 0 : i32
    %c0_i32_0 = arith.constant 0 : i32
    %c0_i32_1 = arith.constant 0 : i32
    return %c0_i32, %c0_i32_0 : i32, i32
  }
  func.func @transform_7(%arg0: i32) -> (i32, i32) {
    %c0_i32 = arith.constant 0 : i32
    %c0_i32_0 = arith.constant 0 : i32
    return %arg0, %c0_i32 : i32, i32
  }
}

</mosaic_0001>

<llo_original>
// kernel: tpu_custom_call.1
$region0: #{tpu_custom_call.1}
  #allocation0 [shape = 'u32[]', space=smem, size = 0x4, offset = 0x4, fixed_abs, tag = 'smem constant byte address 0x4 - core index']
  #allocation1 [shape = 'u32[144,128]{1,0:T(1,128)}', space=vmem, size = 0x12000, scoped, tag = 'internal scratch']
  %s0 = inlined_call_operand.hbm [shape: f32[8,4096], index: 0, kind: input, shape index: {}]
  %s1 = inlined_call_operand.hbm [shape: bf16[4096,256], index: 1, kind: input, shape index: {}]
  %s2 = inlined_call_operand.hbm [shape: f32[1,256], index: 2, kind: input, shape index: {}]
  %s3 = inlined_call_operand.hbm [shape: bf16[256,128], index: 3, kind: input, shape index: {}]
  %s4 = inlined_call_operand.hbm [shape: f32[1,128], index: 4, kind: input, shape index: {}]
  %s5 = inlined_call_operand.hbm [shape: bf16[128,128], index: 5, kind: input, shape index: {}]
  %s6 = inlined_call_operand.hbm [shape: f32[1,128], index: 6, kind: input, shape index: {}]
  %s7 = inlined_call_operand.hbm [shape: f32[8,128], index: 7, kind: output, shape index: {}]
  %s8 = sld [smem:[#allocation0]]
  $region66: #{tpu_custom_call.1} parent=0
    _
  %s10 = ssub.s32 1, %s8
  %s11 = scalar_select 0, %s10, %s8
  $region1: #{tpu_custom_call.1} parent=0
    #allocation2 [shape = 'u8[131072]{0}', space=vmem, size = 0x20000, scoped, tag = 'input window, operand 0, single buffered']
    #allocation3 [shape = 's32[1]{0}', space=sflag, size = 0x4, scoped, tag = 'scoped memory for tpu_custom_call.1']
    #allocation4 [shape = 's32[1]{0}', space=sflag, size = 0x4, scoped, tag = 'scoped memory for tpu_custom_call.1']
    #allocation5 [shape = 'u8[2097152]{0}', space=vmem, size = 0x200000, scoped, tag = 'input window, operand 1, single buffered']
    #allocation6 [shape = 's32[1]{0}', space=sflag, size = 0x4, scoped, tag = 'scoped memory for tpu_custom_call.1']
    #allocation7 [shape = 'u8[1024]{0}', space=vmem, size = 0x400, scoped, tag = 'input window, operand 2, single buffered']
    #allocation8 [shape = 'u8[65536]{0}', space=vmem, size = 0x10000, scoped, tag = 'input window, operand 3, single buffered']
    #allocation9 [shape = 's32[1]{0}', space=sflag, size = 0x4, scoped, tag = 'scoped memory for tpu_custom_call.1']
    #allocation10 [shape = 'u8[512]{0}', space=vmem, size = 0x400, scoped, tag = 'input window, operand 4, single buffered']
    #allocation11 [shape = 'u8[32768]{0}', space=vmem, size = 0x8000, scoped, tag = 'input window, operand 5, single buffered']
    #allocation12 [shape = 's32[1]{0}', space=sflag, size = 0x4, scoped, tag = 'scoped memory for tpu_custom_call.1']
    #allocation13 [shape = 'u8[512]{0}', space=vmem, size = 0x400, scoped, tag = 'input window, operand 6, single buffered']
    #allocation14 [shape = 'u8[4096]{0}', space=vmem, size = 0x1000, scoped, tag = 'output window, operand 0, single buffered']
    %12 = vsyncpa [#allocation3], 0
    %13 = vsyncpa [#allocation6], 0
    %14 = vsyncpa [#allocation9], 0
    %15 = vsyncpa [#allocation12], 0
    %16 = vsyncpa [#allocation4], 0
    // Predicated region
    $region2: #{tpu_custom_call.1} parent=1 // pred_check
      _
    $region3: #{tpu_custom_call.1} parent=1 // pred_check_branch
      %18 = sbr.rel (0) target = $region5
    $region4: #{tpu_custom_call.1} parent=1 // pred_region
      %s20 = ssub.s32 4096, 4096
      %21 = vsyncadd [#allocation3], %s20
      %s23 = sshll.u32 [#allocation2], 4
      %s24 = int_to_ptr.vmem [resolvable:$true] %s23
      %26 = dma.hbm_to_vmem [thread:$0]  %s0, 4096, %s24, [#allocation3]
    $region5: #{tpu_custom_call.1} parent=1 // pred_fallthru
      _
    // Predicated region
    $region6: #{tpu_custom_call.1} parent=1 // pred_check
      _
    $region7: #{tpu_custom_call.1} parent=1 // pred_check_branch
      %28 = sbr.rel (0) target = $region9
    $region8: #{tpu_custom_call.1} parent=1 // pred_region
      %s30 = ssub.s32 65536, 65536
      %31 = vsyncadd [#allocation6], %s30
      %s32 = sshll.u32 [#allocation5], 4
      %s33 = int_to_ptr.vmem [resolvable:$true] %s32
      %38 = dma.hbm_to_vmem [thread:$0]  %s1, 65536, %s33, [#allocation6], 128, 128, 8
    $region9: #{tpu_custom_call.1} parent=1 // pred_fallthru
      _
    // Predicated region
    $region10: #{tpu_custom_call.1} parent=1 // pred_check
      _
    $region11: #{tpu_custom_call.1} parent=1 // pred_check_branch
      %40 = sbr.rel (0) target = $region13
    $region12: #{tpu_custom_call.1} parent=1 // pred_region
      %s42 = ssub.s32 32, 32
      %43 = vsyncadd [#allocation6], %s42
      %s45 = sshll.u32 [#allocation7], 4
      %s46 = int_to_ptr.vmem [resolvable:$true] %s45
      %48 = dma.hbm_to_vmem [thread:$0]  %s2, 32, %s46, [#allocation6]
    $region13: #{tpu_custom_call.1} parent=1 // pred_fallthru
      _
    // Predicated region
    $region14: #{tpu_custom_call.1} parent=1 // pred_check
      _
    $region15: #{tpu_custom_call.1} parent=1 // pred_check_branch
      %50 = sbr.rel (0) target = $region17
    $region16: #{tpu_custom_call.1} parent=1 // pred_region
      %s52 = ssub.s32 2048, 2048
      %53 = vsyncadd [#allocation9], %s52
      %s54 = sshll.u32 [#allocation8], 4
      %s55 = int_to_ptr.vmem [resolvable:$true] %s54
      %60 = dma.hbm_to_vmem [thread:$0]  %s3, 2048, %s55, [#allocation9], 64, 64, 4
    $region17: #{tpu_custom_call.1} parent=1 // pred_fallthru
      _
    // Predicated region
    $region18: #{tpu_custom_call.1} parent=1 // pred_check
      _
    $region19: #{tpu_custom_call.1} parent=1 // pred_check_branch
      %62 = sbr.rel (0) target = $region21
    $region20: #{tpu_custom_call.1} parent=1 // pred_region
      %s64 = ssub.s32 16, 16
      %65 = vsyncadd [#allocation9], %s64
      %s67 = sshll.u32 [#allocation10], 4
      %s68 = int_to_ptr.vmem [resolvable:$true] %s67
      %70 = dma.hbm_to_vmem [thread:$0]  %s4, 16, %s68, [#allocation9]
    $region21: #{tpu_custom_call.1} parent=1 // pred_fallthru
      _
    // Predicated region
    $region22: #{tpu_custom_call.1} parent=1 // pred_check
      _
    $region23: #{tpu_custom_call.1} parent=1 // pred_check_branch
      %72 = sbr.rel (0) target = $region25
    $region24: #{tpu_custom_call.1} parent=1 // pred_region
      %s74 = ssub.s32 1024, 1024
      %75 = vsyncadd [#allocation12], %s74
      %s76 = sshll.u32 [#allocation11], 4
      %s77 = int_to_ptr.vmem [resolvable:$true] %s76
      %82 = dma.hbm_to_vmem [thread:$0]  %s5, 1024, %s77, [#allocation12], 64, 64, 4
    $region25: #{tpu_custom_call.1} parent=1 // pred_fallthru
      _
    // Predicated region
    $region26: #{tpu_custom_call.1} parent=1 // pred_check
      _
    $region27: #{tpu_custom_call.1} parent=1 // pred_check_branch
      %84 = sbr.rel (0) target = $region29
    $region28: #{tpu_custom_call.1} parent=1 // pred_region
      %s86 = ssub.s32 16, 16
      %87 = vsyncadd [#allocation12], %s86
      %s89 = sshll.u32 [#allocation13], 4
      %s90 = int_to_ptr.vmem [resolvable:$true] %s89
      %92 = dma.hbm_to_vmem [thread:$0]  %s6, 16, %s90, [#allocation12]
    $region29: #{tpu_custom_call.1} parent=1 // pred_fallthru
      _
    // Predicated region
    $region30: #{tpu_custom_call.1} parent=1 // pred_check
      _
    $region31: #{tpu_custom_call.1} parent=1 // pred_check_branch
      %94 = sbr.rel (0) target = $region33
    $region32: #{tpu_custom_call.1} parent=1 // pred_region
      %95 = dma.done [#allocation3], 4096
    $region33: #{tpu_custom_call.1} parent=1 // pred_fallthru
      _
    // Predicated region
    $region34: #{tpu_custom_call.1} parent=1 // pred_check
      _
    $region35: #{tpu_custom_call.1} parent=1 // pred_check_branch
      %97 = sbr.rel (0) target = $region37
    $region36: #{tpu_custom_call.1} parent=1 // pred_region
      %98 = dma.done [#allocation6], 65536
    $region37: #{tpu_custom_call.1} parent=1 // pred_fallthru
      _
    // Predicated region
    $region38: #{tpu_custom_call.1} parent=1 // pred_check
      _
    $region39: #{tpu_custom_call.1} parent=1 // pred_check_branch
      %100 = sbr.rel (0) target = $region41
    $region40: #{tpu_custom_call.1} parent=1 // pred_region
      %101 = dma.done [#allocation6], 32
    $region41: #{tpu_custom_call.1} parent=1 // pred_fallthru
      _
    // Predicated region
    $region42: #{tpu_custom_call.1} parent=1 // pred_check
      _
    $region43: #{tpu_custom_call.1} parent=1 // pred_check_branch
      %103 = sbr.rel (0) target = $region45
    $region44: #{tpu_custom_call.1} parent=1 // pred_region
      %104 = dma.done [#allocation9], 2048
    $region45: #{tpu_custom_call.1} parent=1 // pred_fallthru
      _
    // Predicated region
    $region46: #{tpu_custom_call.1} parent=1 // pred_check
      _
    $region47: #{tpu_custom_call.1} parent=1 // pred_check_branch
      %106 = sbr.rel (0) target = $region49
    $region48: #{tpu_custom_call.1} parent=1 // pred_region
      %107 = dma.done [#allocation9], 16
    $region49: #{tpu_custom_call.1} parent=1 // pred_fallthru
      _
    // Predicated region
    $region50: #{tpu_custom_call.1} parent=1 // pred_check
      _
    $region51: #{tpu_custom_call.1} parent=1 // pred_check_branch
      %109 = sbr.rel (0) target = $region53
    $region52: #{tpu_custom_call.1} parent=1 // pred_region
      %110 = dma.done [#allocation12], 1024
    $region53: #{tpu_custom_call.1} parent=1 // pred_fallthru
      _
    // Predicated region
    $region54: #{tpu_custom_call.1} parent=1 // pred_check
      _
    $region55: #{tpu_custom_call.1} parent=1 // pred_check_branch
      %112 = sbr.rel (0) target = $region57
    $region56: #{tpu_custom_call.1} parent=1 // pred_region
      %113 = dma.done [#allocation12], 16
    $region57: #{tpu_custom_call.1} parent=1 // pred_fallthru
      _
    %v115 = vld [vmem:[#allocation2] sm:$0xff]
    %v116 = vld [vmem:[#allocation2 + $0x8] sm:$0xff]
    %v117 = vld [vmem:[#allocation2 + $0x10] sm:$0xff]
    %v118 = vld [vmem:[#allocation2 + $0x18] sm:$0xff]
    %v119 = vld [vmem:[#allocation2 + $0x20] sm:$0xff]
    %v120 = vld [vmem:[#allocation2 + $0x28] sm:$0xff]
    %v121 = vld [vmem:[#allocation2 + $0x30] sm:$0xff]
    %v122 = vld [vmem:[#allocation2 + $0x38] sm:$0xff]
    %v123 = vld [vmem:[#allocation2 + $0x40] sm:$0xff]
    %v124 = vld [vmem:[#allocation2 + $0x48] sm:$0xff]
    %v125 = vld [vmem:[#allocation2 + $0x50] sm:$0xff]
    %v126 = vld [vmem:[#allocation2 + $0x58] sm:$0xff]
    %v127 = vld [vmem:[#allocation2 + $0x60] sm:$0xff]
    %v128 = vld [vmem:[#allocation2 + $0x68] sm:$0xff]
    %v129 = vld [vmem:[#allocation2 + $0x70] sm:$0xff]
    %v130 = vld [vmem:[#allocation2 + $0x78] sm:$0xff]
    %v131 = vld [vmem:[#allocation2 + $0x80] sm:$0xff]
    %v132 = vld [vmem:[#allocation2 + $0x88] sm:$0xff]
    %v133 = vld [vmem:[#allocation2 + $0x90] sm:$0xff]
    %v134 = vld [vmem:[#allocation2 + $0x98] sm:$0xff]
    %v135 = vld [vmem:[#allocation2 + $0xa0] sm:$0xff]
    %v136 = vld [vmem:[#allocation2 + $0xa8] sm:$0xff]
    %v137 = vld [vmem:[#allocation2 + $0xb0] sm:$0xff]
    %v138 = vld [vmem:[#allocation2 + $0xb8] sm:$0xff]
    %v139 = vld [vmem:[#allocation2 + $0xc0] sm:$0xff]
    %v140 = vld [vmem:[#allocation2 + $0xc8] sm:$0xff]
    %v141 = vld [vmem:[#allocation2 + $0xd0] sm:$0xff]
    %v142 = vld [vmem:[#allocation2 + $0xd8] sm:$0xff]
    %v143 = vld [vmem:[#allocation2 + $0xe0] sm:$0xff]
    %v144 = vld [vmem:[#allocation2 + $0xe8] sm:$0xff]
    %v145 = vld [vmem:[#allocation2 + $0xf0] sm:$0xff]
    %v146 = vld [vmem:[#allocation2 + $0xf8] sm:$0xff]
    %v147 = vpack.c.bf16 %v115, %v115
    %v148 = vpack.c.bf16 %v116, %v116
    %v149 = vpack.c.bf16 %v117, %v117
    %v150 = vpack.c.bf16 %v118, %v118
    %v151 = vpack.c.bf16 %v119, %v119
    %v152 = vpack.c.bf16 %v120, %v120
    %v153 = vpack.c.bf16 %v121, %v121
    %v154 = vpack.c.bf16 %v122, %v122
    %v155 = vpack.c.bf16 %v123, %v123
    %v156 = vpack.c.bf16 %v124, %v124
    %v157 = vpack.c.bf16 %v125, %v125
    %v158 = vpack.c.bf16 %v126, %v126
    %v159 = vpack.c.bf16 %v127, %v127
    %v160 = vpack.c.bf16 %v128, %v128
    %v161 = vpack.c.bf16 %v129, %v129
    %v162 = vpack.c.bf16 %v130, %v130
    %v163 = vpack.c.bf16 %v131, %v131
    %v164 = vpack.c.bf16 %v132, %v132
    %v165 = vpack.c.bf16 %v133, %v133
    %v166 = vpack.c.bf16 %v134, %v134
    %v167 = vpack.c.bf16 %v135, %v135
    %v168 = vpack.c.bf16 %v136, %v136
    %v169 = vpack.c.bf16 %v137, %v137
    %v170 = vpack.c.bf16 %v138, %v138
    %v171 = vpack.c.bf16 %v139, %v139
    %v172 = vpack.c.bf16 %v140, %v140
    %v173 = vpack.c.bf16 %v141, %v141
    %v174 = vpack.c.bf16 %v142, %v142
    %v175 = vpack.c.bf16 %v143, %v143
    %v176 = vpack.c.bf16 %v144, %v144
    %v177 = vpack.c.bf16 %v145, %v145
    %v178 = vpack.c.bf16 %v146, %v146
    %v179 = vld [vmem:[#allocation5] sm:$0xff]
    %v180 = vld [vmem:[#allocation5 + $0x8] sm:$0xff]
    %v181 = vld [vmem:[#allocation5 + $0x10] sm:$0xff]
    %v182 = vld [vmem:[#allocation5 + $0x18] sm:$0xff]
    %v183 = vld [vmem:[#allocation5 + $0x20] sm:$0xff]
    %v184 = vld [vmem:[#allocation5 + $0x28] sm:$0xff]
    %v185 = vld [vmem:[#allocation5 + $0x30] sm:$0xff]
    %v186 = vld [vmem:[#allocation5 + $0x38] sm:$0xff]
    %v187 = vld [vmem:[#allocation5 + $0x40] sm:$0xff]
    %v188 = vld [vmem:[#allocation5 + $0x48] sm:$0xff]
    %v189 = vld [vmem:[#allocation5 + $0x50] sm:$0xff]
    %v190 = vld [vmem:[#allocation5 + $0x58] sm:$0xff]
    %v191 = vld [vmem:[#allocation5 + $0x60] sm:$0xff]
    %v192 = vld [vmem:[#allocation5 + $0x68] sm:$0xff]
    %v193 = vld [vmem:[#allocation5 + $0x70] sm:$0xff]
    %v194 = vld [vmem:[#allocation5 + $0x78] sm:$0xff]
    %v195 = vld [vmem:[#allocation5 + $0x80] sm:$0xff]
    %v196 = vld [vmem:[#allocation5 + $0x88] sm:$0xff]
    %v197 = vld [vmem:[#allocation5 + $0x90] sm:$0xff]
    %v198 = vld [vmem:[#allocation5 + $0x98] sm:$0xff]
    %v199 = vld [vmem:[#allocation5 + $0xa0] sm:$0xff]
    %v200 = vld [vmem:[#allocation5 + $0xa8] sm:$0xff]
    %v201 = vld [vmem:[#allocation5 + $0xb0] sm:$0xff]
    %v202 = vld [vmem:[#allocation5 + $0xb8] sm:$0xff]
    %v203 = vld [vmem:[#allocation5 + $0xc0] sm:$0xff]
    %v204 = vld [vmem:[#allocation5 + $0xc8] sm:$0xff]
    %v205 = vld [vmem:[#allocation5 + $0xd0] sm:$0xff]
    %v206 = vld [vmem:[#allocation5 + $0xd8] sm:$0xff]
    %v207 = vld [vmem:[#allocation5 + $0xe0] sm:$0xff]
    %v208 = vld [vmem:[#allocation5 + $0xe8] sm:$0xff]
    %v209 = vld [vmem:[#allocation5 + $0xf0] sm:$0xff]
    %v210 = vld [vmem:[#allocation5 + $0xf8] sm:$0xff]
    %v211 = vld [vmem:[#allocation5 + $0x100] sm:$0xff]
    %v212 = vld [vmem:[#allocation5 + $0x108] sm:$0xff]
    %v213 = vld [vmem:[#allocation5 + $0x110] sm:$0xff]
    %v214 = vld [vmem:[#allocation5 + $0x118] sm:$0xff]
    %v215 = vld [vmem:[#allocation5 + $0x120] sm:$0xff]
    %v216 = vld [vmem:[#allocation5 + $0x128] sm:$0xff]
    %v217 = vld [vmem:[#allocation5 + $0x130] sm:$0xff]
    %v218 = vld [vmem:[#allocation5 + $0x138] sm:$0xff]
    %v219 = vld [vmem:[#allocation5 + $0x140] sm:$0xff]
    %v220 = vld [vmem:[#allocation5 + $0x148] sm:$0xff]
    %v221 = vld [vmem:[#allocation5 + $0x150] sm:$0xff]
    %v222 = vld [vmem:[#allocation5 + $0x158] sm:$0xff]
    %v223 = vld [vmem:[#allocation5 + $0x160] sm:$0xff]
    %v224 = vld [vmem:[#allocation5 + $0x168] sm:$0xff]
    %v225 = vld [vmem:[#allocation5 + $0x170] sm:$0xff]
    %v226 = vld [vmem:[#allocation5 + $0x178] sm:$0xff]
    %v227 = vld [vmem:[#allocation5 + $0x180] sm:$0xff]
    %v228 = vld [vmem:[#allocation5 + $0x188] sm:$0xff]
    %v229 = vld [vmem:[#allocation5 + $0x190] sm:$0xff]
    %v230 = vld [vmem:[#allocation5 + $0x198] sm:$0xff]
    %v231 = vld [vmem:[#allocation5 + $0x1a0] sm:$0xff]
    %v232 = vld [vmem:[#allocation5 + $0x1a8] sm:$0xff]
    %v233 = vld [vmem:[#allocation5 + $0x1b0] sm:$0xff]
    %v234 = vld [vmem:[#allocation5 + $0x1b8] sm:$0xff]
    %v235 = vld [vmem:[#allocation5 + $0x1c0] sm:$0xff]
    %v236 = vld [vmem:[#allocation5 + $0x1c8] sm:$0xff]
    %v237 = vld [vmem:[#allocation5 + $0x1d0] sm:$0xff]
    %v238 = vld [vmem:[#allocation5 + $0x1d8] sm:$0xff]
    %v239 = vld [vmem:[#allocation5 + $0x1e0] sm:$0xff]
    %v240 = vld [vmem:[#allocation5 + $0x1e8] sm:$0xff]
    %v241 = vld [vmem:[#allocation5 + $0x1f0] sm:$0xff]
    %v242 = vld [vmem:[#allocation5 + $0x1f8] sm:$0xff]
    %v243 = vld [vmem:[#allocation5 + $0x200] sm:$0xff]
    %v244 = vld [vmem:[#allocation5 + $0x208] sm:$0xff]
    %v245 = vld [vmem:[#allocation5 + $0x210] sm:$0xff]
    %v246 = vld [vmem:[#allocation5 + $0x218] sm:$0xff]
    %v247 = vld [vmem:[#allocation5 + $0x220] sm:$0xff]
    %v248 = vld [vmem:[#allocation5 + $0x228] sm:$0xff]
    %v249 = vld [vmem:[#allocation5 + $0x230] sm:$0xff]
    %v250 = vld [vmem:[#allocation5 + $0x238] sm:$0xff]
    %v251 = vld [vmem:[#allocation5 + $0x240] sm:$0xff]
    %v252 = vld [vmem:[#allocation5 + $0x248] sm:$0xff]
    %v253 = vld [vmem:[#allocation5 + $0x250] sm:$0xff]
    %v254 = vld [vmem:[#allocation5 + $0x258] sm:$0xff]
    %v255 = vld [vmem:[#allocation5 + $0x260] sm:$0xff]
    %v256 = vld [vmem:[#allocation5 + $0x268] sm:$0xff]
    %v257 = vld [vmem:[#allocation5 + $0x270] sm:$0xff]
    %v258 = vld [vmem:[#allocation5 + $0x278] sm:$0xff]
    %v259 = vld [vmem:[#allocation5 + $0x280] sm:$0xff]
    %v260 = vld [vmem:[#allocation5 + $0x288] sm:$0xff]
    %v261 = vld [vmem:[#allocation5 + $0x290] sm:$0xff]
    %v262 = vld [vmem:[#allocation5 + $0x298] sm:$0xff]
    %v263 = vld [vmem:[#allocation5 + $0x2a0] sm:$0xff]
    %v264 = vld [vmem:[#allocation5 + $0x2a8] sm:$0xff]
    %v265 = vld [vmem:[#allocation5 + $0x2b0] sm:$0xff]
    %v266 = vld [vmem:[#allocation5 + $0x2b8] sm:$0xff]
    %v267 = vld [vmem:[#allocation5 + $0x2c0] sm:$0xff]
    %v268 = vld [vmem:[#allocation5 + $0x2c8] sm:$0xff]
    %v269 = vld [vmem:[#allocation5 + $0x2d0] sm:$0xff]
    %v270 = vld [vmem:[#allocation5 + $0x2d8] sm:$0xff]
    %v271 = vld [vmem:[#allocation5 + $0x2e0] sm:$0xff]
    %v272 = vld [vmem:[#allocation5 + $0x2e8] sm:$0xff]
    %v273 = vld [vmem:[#allocation5 + $0x2f0] sm:$0xff]
    %v274 = vld [vmem:[#allocation5 + $0x2f8] sm:$0xff]
    %v275 = vld [vmem:[#allocation5 + $0x300] sm:$0xff]
    %v276 = vld [vmem:[#allocation5 + $0x308] sm:$0xff]
    %v277 = vld [vmem:[#allocation5 + $0x310] sm:$0xff]
    %v278 = vld [vmem:[#allocation5 + $0x318] sm:$0xff]
    %v279 = vld [vmem:[#allocation5 + $0x320] sm:$0xff]
    %v280 = vld [vmem:[#allocation5 + $0x328] sm:$0xff]
    %v281 = vld [vmem:[#allocation5 + $0x330] sm:$0xff]
    %v282 = vld [vmem:[#allocation5 + $0x338] sm:$0xff]
    %v283 = vld [vmem:[#allocation5 + $0x340] sm:$0xff]
    %v284 = vld [vmem:[#allocation5 + $0x348] sm:$0xff]
    %v285 = vld [vmem:[#allocation5 + $0x350] sm:$0xff]
    %v286 = vld [vmem:[#allocation5 + $0x358] sm:$0xff]
    %v287 = vld [vmem:[#allocation5 + $0x360] sm:$0xff]
    %v288 = vld [vmem:[#allocation5 + $0x368] sm:$0xff]
    %v289 = vld [vmem:[#allocation5 + $0x370] sm:$0xff]
    %v290 = vld [vmem:[#allocation5 + $0x378] sm:$0xff]
    %v291 = vld [vmem:[#allocation5 + $0x380] sm:$0xff]
    %v292 = vld [vmem:[#allocation5 + $0x388] sm:$0xff]
    %v293 = vld [vmem:[#allocation5 + $0x390] sm:$0xff]
    %v294 = vld [vmem:[#allocation5 + $0x398] sm:$0xff]
    %v295 = vld [vmem:[#allocation5 + $0x3a0] sm:$0xff]
    %v296 = vld [vmem:[#allocation5 + $0x3a8] sm:$0xff]
    %v297 = vld [vmem:[#allocation5 + $0x3b0] sm:$0xff]
    %v298 = vld [vmem:[#allocation5 + $0x3b8] sm:$0xff]
    %v299 = vld [vmem:[#allocation5 + $0x3c0] sm:$0xff]
    %v300 = vld [vmem:[#allocation5 + $0x3c8] sm:$0xff]
    %v301 = vld [vmem:[#allocation5 + $0x3d0] sm:$0xff]
    %v302 = vld [vmem:[#allocation5 + $0x3d8] sm:$0xff]
    %v303 = vld [vmem:[#allocation5 + $0x3e0] sm:$0xff]
    %v304 = vld [vmem:[#allocation5 + $0x3e8] sm:$0xff]
    %v305 = vld [vmem:[#allocation5 + $0x3f0] sm:$0xff]
    %v306 = vld [vmem:[#allocation5 + $0x3f8] sm:$0xff]
    %v307 = vld [vmem:[#allocation5 + $0x400] sm:$0xff]
    %v308 = vld [vmem:[#allocation5 + $0x408] sm:$0xff]
    %v309 = vld [vmem:[#allocation5 + $0x410] sm:$0xff]
    %v310 = vld [vmem:[#allocation5 + $0x418] sm:$0xff]
    %v311 = vld [vmem:[#allocation5 + $0x420] sm:$0xff]
    %v312 = vld [vmem:[#allocation5 + $0x428] sm:$0xff]
    %v313 = vld [vmem:[#allocation5 + $0x430] sm:$0xff]
    %v314 = vld [vmem:[#allocation5 + $0x438] sm:$0xff]
    %v315 = vld [vmem:[#allocation5 + $0x440] sm:$0xff]
    %v316 = vld [vmem:[#allocation5 + $0x448] sm:$0xff]
    %v317 = vld [vmem:[#allocation5 + $0x450] sm:$0xff]
    %v318 = vld [vmem:[#allocation5 + $0x458] sm:$0xff]
    %v319 = vld [vmem:[#allocation5 + $0x460] sm:$0xff]
    %v320 = vld [vmem:[#allocation5 + $0x468] sm:$0xff]
    %v321 = vld [vmem:[#allocation5 + $0x470] sm:$0xff]
    %v322 = vld [vmem:[#allocation5 + $0x478] sm:$0xff]
    %v323 = vld [vmem:[#allocation5 + $0x480] sm:$0xff]
    %v324 = vld [vmem:[#allocation5 + $0x488] sm:$0xff]
    %v325 = vld [vmem:[#allocation5 + $0x490] sm:$0xff]
    %v326 = vld [vmem:[#allocation5 + $0x498] sm:$0xff]
    %v327 = vld [vmem:[#allocation5 + $0x4a0] sm:$0xff]
    %v328 = vld [vmem:[#allocation5 + $0x4a8] sm:$0xff]
    %v329 = vld [vmem:[#allocation5 + $0x4b0] sm:$0xff]
    %v330 = vld [vmem:[#allocation5 + $0x4b8] sm:$0xff]
    %v331 = vld [vmem:[#allocation5 + $0x4c0] sm:$0xff]
    %v332 = vld [vmem:[#allocation5 + $0x4c8] sm:$0xff]
    %v333 = vld [vmem:[#allocation5 + $0x4d0] sm:$0xff]
    %v334 = vld [vmem:[#allocation5 + $0x4d8] sm:$0xff]
    %v335 = vld [vmem:[#allocation5 + $0x4e0] sm:$0xff]
    %v336 = vld [vmem:[#allocation5 + $0x4e8] sm:$0xff]
    %v337 = vld [vmem:[#allocation5 + $0x4f0] sm:$0xff]
    %v338 = vld [vmem:[#allocation5 + $0x4f8] sm:$0xff]
    %v339 = vld [vmem:[#allocation5 + $0x500] sm:$0xff]
    %v340 = vld [vmem:[#allocation5 + $0x508] sm:$0xff]
    %v341 = vld [vmem:[#allocation5 + $0x510] sm:$0xff]
    %v342 = vld [vmem:[#allocation5 + $0x518] sm:$0xff]
    %v343 = vld [vmem:[#allocation5 + $0x520] sm:$0xff]
    %v344 = vld [vmem:[#allocation5 + $0x528] sm:$0xff]
    %v345 = vld [vmem:[#allocation5 + $0x530] sm:$0xff]
    %v346 = vld [vmem:[#allocation5 + $0x538] sm:$0xff]
    %v347 = vld [vmem:[#allocation5 + $0x540] sm:$0xff]
    %v348 = vld [vmem:[#allocation5 + $0x548] sm:$0xff]
    %v349 = vld [vmem:[#allocation5 + $0x550] sm:$0xff]
    %v350 = vld [vmem:[#allocation5 + $0x558] sm:$0xff]
    %v351 = vld [vmem:[#allocation5 + $0x560] sm:$0xff]
    %v352 = vld [vmem:[#allocation5 + $0x568] sm:$0xff]
    %v353 = vld [vmem:[#allocation5 + $0x570] sm:$0xff]
    %v354 = vld [vmem:[#allocation5 + $0x578] sm:$0xff]
    %v355 = vld [vmem:[#allocation5 + $0x580] sm:$0xff]
    %v356 = vld [vmem:[#allocation5 + $0x588] sm:$0xff]
    %v357 = vld [vmem:[#allocation5 + $0x590] sm:$0xff]
    %v358 = vld [vmem:[#allocation5 + $0x598] sm:$0xff]
    %v359 = vld [vmem:[#allocation5 + $0x5a0] sm:$0xff]
    %v360 = vld [vmem:[#allocation5 + $0x5a8] sm:$0xff]
    %v361 = vld [vmem:[#allocation5 + $0x5b0] sm:$0xff]
    %v362 = vld [vmem:[#allocation5 + $0x5b8] sm:$0xff]
    %v363 = vld [vmem:[#allocation5 + $0x5c0] sm:$0xff]
    %v364 = vld [vmem:[#allocation5 + $0x5c8] sm:$0xff]
    %v365 = vld [vmem:[#allocation5 + $0x5d0] sm:$0xff]
    %v366 = vld [vmem:[#allocation5 + $0x5d8] sm:$0xff]
    %v367 = vld [vmem:[#allocation5 + $0x5e0] sm:$0xff]
    %v368 = vld [vmem:[#allocation5 + $0x5e8] sm:$0xff]
    %v369 = vld [vmem:[#allocation5 + $0x5f0] sm:$0xff]
    %v370 = vld [vmem:[#allocation5 + $0x5f8] sm:$0xff]
    %v371 = vld [vmem:[#allocation5 + $0x600] sm:$0xff]
    %v372 = vld [vmem:[#allocation5 + $0x608] sm:$0xff]
    %v373 = vld [vmem:[#allocation5 + $0x610] sm:$0xff]
    %v374 = vld [vmem:[#allocation5 + $0x618] sm:$0xff]
    %v375 = vld [vmem:[#allocation5 + $0x620] sm:$0xff]
    %v376 = vld [vmem:[#allocation5 + $0x628] sm:$0xff]
    %v377 = vld [vmem:[#allocation5 + $0x630] sm:$0xff]
    %v378 = vld [vmem:[#allocation5 + $0x638] sm:$0xff]
    %v379 = vld [vmem:[#allocation5 + $0x640] sm:$0xff]
    %v380 = vld [vmem:[#allocation5 + $0x648] sm:$0xff]
    %v381 = vld [vmem:[#allocation5 + $0x650] sm:$0xff]
    %v382 = vld [vmem:[#allocation5 + $0x658] sm:$0xff]
    %v383 = vld [vmem:[#allocation5 + $0x660] sm:$0xff]
    %v384 = vld [vmem:[#allocation5 + $0x668] sm:$0xff]
    %v385 = vld [vmem:[#allocation5 + $0x670] sm:$0xff]
    %v386 = vld [vmem:[#allocation5 + $0x678] sm:$0xff]
    %v387 = vld [vmem:[#allocation5 + $0x680] sm:$0xff]
    %v388 = vld [vmem:[#allocation5 + $0x688] sm:$0xff]
    %v389 = vld [vmem:[#allocation5 + $0x690] sm:$0xff]
    %v390 = vld [vmem:[#allocation5 + $0x698] sm:$0xff]
    %v391 = vld [vmem:[#allocation5 + $0x6a0] sm:$0xff]
    %v392 = vld [vmem:[#allocation5 + $0x6a8] sm:$0xff]
    %v393 = vld [vmem:[#allocation5 + $0x6b0] sm:$0xff]
    %v394 = vld [vmem:[#allocation5 + $0x6b8] sm:$0xff]
    %v395 = vld [vmem:[#allocation5 + $0x6c0] sm:$0xff]
    %v396 = vld [vmem:[#allocation5 + $0x6c8] sm:$0xff]
    %v397 = vld [vmem:[#allocation5 + $0x6d0] sm:$0xff]
    %v398 = vld [vmem:[#allocation5 + $0x6d8] sm:$0xff]
    %v399 = vld [vmem:[#allocation5 + $0x6e0] sm:$0xff]
    %v400 = vld [vmem:[#allocation5 + $0x6e8] sm:$0xff]
    %v401 = vld [vmem:[#allocation5 + $0x6f0] sm:$0xff]
    %v402 = vld [vmem:[#allocation5 + $0x6f8] sm:$0xff]
    %v403 = vld [vmem:[#allocation5 + $0x700] sm:$0xff]
    %v404 = vld [vmem:[#allocation5 + $0x708] sm:$0xff]
    %v405 = vld [vmem:[#allocation5 + $0x710] sm:$0xff]
    %v406 = vld [vmem:[#allocation5 + $0x718] sm:$0xff]
    %v407 = vld [vmem:[#allocation5 + $0x720] sm:$0xff]
    %v408 = vld [vmem:[#allocation5 + $0x728] sm:$0xff]
    %v409 = vld [vmem:[#allocation5 + $0x730] sm:$0xff]
    %v410 = vld [vmem:[#allocation5 + $0x738] sm:$0xff]
    %v411 = vld [vmem:[#allocation5 + $0x740] sm:$0xff]
    %v412 = vld [vmem:[#allocation5 + $0x748] sm:$0xff]
    %v413 = vld [vmem:[#allocation5 + $0x750] sm:$0xff]
    %v414 = vld [vmem:[#allocation5 + $0x758] sm:$0xff]
    %v415 = vld [vmem:[#allocation5 + $0x760] sm:$0xff]
    %v416 = vld [vmem:[#allocation5 + $0x768] sm:$0xff]
    %v417 = vld [vmem:[#allocation5 + $0x770] sm:$0xff]
    %v418 = vld [vmem:[#allocation5 + $0x778] sm:$0xff]
    %v419 = vld [vmem:[#allocation5 + $0x780] sm:$0xff]
    %v420 = vld [vmem:[#allocation5 + $0x788] sm:$0xff]
    %v421 = vld [vmem:[#allocation5 + $0x790] sm:$0xff]
    %v422 = vld [vmem:[#allocation5 + $0x798] sm:$0xff]
    %v423 = vld [vmem:[#allocation5 + $0x7a0] sm:$0xff]
    %v424 = vld [vmem:[#allocation5 + $0x7a8] sm:$0xff]
    %v425 = vld [vmem:[#allocation5 + $0x7b0] sm:$0xff]
    %v426 = vld [vmem:[#allocation5 + $0x7b8] sm:$0xff]
    %v427 = vld [vmem:[#allocation5 + $0x7c0] sm:$0xff]
    %v428 = vld [vmem:[#allocation5 + $0x7c8] sm:$0xff]
    %v429 = vld [vmem:[#allocation5 + $0x7d0] sm:$0xff]
    %v430 = vld [vmem:[#allocation5 + $0x7d8] sm:$0xff]
    %v431 = vld [vmem:[#allocation5 + $0x7e0] sm:$0xff]
    %v432 = vld [vmem:[#allocation5 + $0x7e8] sm:$0xff]
    %v433 = vld [vmem:[#allocation5 + $0x7f0] sm:$0xff]
    %v434 = vld [vmem:[#allocation5 + $0x7f8] sm:$0xff]
    %v435 = vld [vmem:[#allocation5 + $0x800] sm:$0xff]
    %v436 = vld [vmem:[#allocation5 + $0x808] sm:$0xff]
    %v437 = vld [vmem:[#allocation5 + $0x810] sm:$0xff]
    %v438 = vld [vmem:[#allocation5 + $0x818] sm:$0xff]
    %v439 = vld [vmem:[#allocation5 + $0x820] sm:$0xff]
    %v440 = vld [vmem:[#allocation5 + $0x828] sm:$0xff]
    %v441 = vld [vmem:[#allocation5 + $0x830] sm:$0xff]
    %v442 = vld [vmem:[#allocation5 + $0x838] sm:$0xff]
    %v443 = vld [vmem:[#allocation5 + $0x840] sm:$0xff]
    %v444 = vld [vmem:[#allocation5 + $0x848] sm:$0xff]
    %v445 = vld [vmem:[#allocation5 + $0x850] sm:$0xff]
    %v446 = vld [vmem:[#allocation5 + $0x858] sm:$0xff]
    %v447 = vld [vmem:[#allocation5 + $0x860] sm:$0xff]
    %v448 = vld [vmem:[#allocation5 + $0x868] sm:$0xff]
    %v449 = vld [vmem:[#allocation5 + $0x870] sm:$0xff]
    %v450 = vld [vmem:[#allocation5 + $0x878] sm:$0xff]
    %v451 = vld [vmem:[#allocation5 + $0x880] sm:$0xff]
    %v452 = vld [vmem:[#allocation5 + $0x888] sm:$0xff]
    %v453 = vld [vmem:[#allocation5 + $0x890] sm:$0xff]
    %v454 = vld [vmem:[#allocation5 + $0x898] sm:$0xff]
    %v455 = vld [vmem:[#allocation5 + $0x8a0] sm:$0xff]
    %v456 = vld [vmem:[#allocation5 + $0x8a8] sm:$0xff]
    %v457 = vld [vmem:[#allocation5 + $0x8b0] sm:$0xff]
    %v458 = vld [vmem:[#allocation5 + $0x8b8] sm:$0xff]
    %v459 = vld [vmem:[#allocation5 + $0x8c0] sm:$0xff]
    %v460 = vld [vmem:[#allocation5 + $0x8c8] sm:$0xff]
    %v461 = vld [vmem:[#allocation5 + $0x8d0] sm:$0xff]
    %v462 = vld [vmem:[#allocation5 + $0x8d8] sm:$0xff]
    %v463 = vld [vmem:[#allocation5 + $0x8e0] sm:$0xff]
    %v464 = vld [vmem:[#allocation5 + $0x8e8] sm:$0xff]
    %v465 = vld [vmem:[#allocation5 + $0x8f0] sm:$0xff]
    %v466 = vld [vmem:[#allocation5 + $0x8f8] sm:$0xff]
    %v467 = vld [vmem:[#allocation5 + $0x900] sm:$0xff]
    %v468 = vld [vmem:[#allocation5 + $0x908] sm:$0xff]
    %v469 = vld [vmem:[#allocation5 + $0x910] sm:$0xff]
    %v470 = vld [vmem:[#allocation5 + $0x918] sm:$0xff]
    %v471 = vld [vmem:[#allocation5 + $0x920] sm:$0xff]
    %v472 = vld [vmem:[#allocation5 + $0x928] sm:$0xff]
    %v473 = vld [vmem:[#allocation5 + $0x930] sm:$0xff]
    %v474 = vld [vmem:[#allocation5 + $0x938] sm:$0xff]
    %v475 = vld [vmem:[#allocation5 + $0x940] sm:$0xff]
    %v476 = vld [vmem:[#allocation5 + $0x948] sm:$0xff]
    %v477 = vld [vmem:[#allocation5 + $0x950] sm:$0xff]
    %v478 = vld [vmem:[#allocation5 + $0x958] sm:$0xff]
    %v479 = vld [vmem:[#allocation5 + $0x960] sm:$0xff]
    %v480 = vld [vmem:[#allocation5 + $0x968] sm:$0xff]
    %v481 = vld [vmem:[#allocation5 + $0x970] sm:$0xff]
    %v482 = vld [vmem:[#allocation5 + $0x978] sm:$0xff]
    %v483 = vld [vmem:[#allocation5 + $0x980] sm:$0xff]
    %v484 = vld [vmem:[#allocation5 + $0x988] sm:$0xff]
    %v485 = vld [vmem:[#allocation5 + $0x990] sm:$0xff]
    %v486 = vld [vmem:[#allocation5 + $0x998] sm:$0xff]
    %v487 = vld [vmem:[#allocation5 + $0x9a0] sm:$0xff]
    %v488 = vld [vmem:[#allocation5 + $0x9a8] sm:$0xff]
    %v489 = vld [vmem:[#allocation5 + $0x9b0] sm:$0xff]
    %v490 = vld [vmem:[#allocation5 + $0x9b8] sm:$0xff]
    %v491 = vld [vmem:[#allocation5 + $0x9c0] sm:$0xff]
    %v492 = vld [vmem:[#allocation5 + $0x9c8] sm:$0xff]
    %v493 = vld [vmem:[#allocation5 + $0x9d0] sm:$0xff]
    %v494 = vld [vmem:[#allocation5 + $0x9d8] sm:$0xff]
    %v495 = vld [vmem:[#allocation5 + $0x9e0] sm:$0xff]
    %v496 = vld [vmem:[#allocation5 + $0x9e8] sm:$0xff]
    %v497 = vld [vmem:[#allocation5 + $0x9f0] sm:$0xff]
    %v498 = vld [vmem:[#allocation5 + $0x9f8] sm:$0xff]
    %v499 = vld [vmem:[#allocation5 + $0xa00] sm:$0xff]
    %v500 = vld [vmem:[#allocation5 + $0xa08] sm:$0xff]
    %v501 = vld [vmem:[#allocation5 + $0xa10] sm:$0xff]
    %v502 = vld [vmem:[#allocation5 + $0xa18] sm:$0xff]
    %v503 = vld [vmem:[#allocation5 + $0xa20] sm:$0xff]
    %v504 = vld [vmem:[#allocation5 + $0xa28] sm:$0xff]
    %v505 = vld [vmem:[#allocation5 + $0xa30] sm:$0xff]
    %v506 = vld [vmem:[#allocation5 + $0xa38] sm:$0xff]
    %v507 = vld [vmem:[#allocation5 + $0xa40] sm:$0xff]
    %v508 = vld [vmem:[#allocation5 + $0xa48] sm:$0xff]
    %v509 = vld [vmem:[#allocation5 + $0xa50] sm:$0xff]
    %v510 = vld [vmem:[#allocation5 + $0xa58] sm:$0xff]
    %v511 = vld [vmem:[#allocation5 + $0xa60] sm:$0xff]
    %v512 = vld [vmem:[#allocation5 + $0xa68] sm:$0xff]
    %v513 = vld [vmem:[#allocation5 + $0xa70] sm:$0xff]
    %v514 = vld [vmem:[#allocation5 + $0xa78] sm:$0xff]
    %v515 = vld [vmem:[#allocation5 + $0xa80] sm:$0xff]
    %v516 = vld [vmem:[#allocation5 + $0xa88] sm:$0xff]
    %v517 = vld [vmem:[#allocation5 + $0xa90] sm:$0xff]
    %v518 = vld [vmem:[#allocation5 + $0xa98] sm:$0xff]
    %v519 = vld [vmem:[#allocation5 + $0xaa0] sm:$0xff]
    %v520 = vld [vmem:[#allocation5 + $0xaa8] sm:$0xff]
    %v521 = vld [vmem:[#allocation5 + $0xab0] sm:$0xff]
    %v522 = vld [vmem:[#allocation5 + $0xab8] sm:$0xff]
    %v523 = vld [vmem:[#allocation5 + $0xac0] sm:$0xff]
    %v524 = vld [vmem:[#allocation5 + $0xac8] sm:$0xff]
    %v525 = vld [vmem:[#allocation5 + $0xad0] sm:$0xff]
    %v526 = vld [vmem:[#allocation5 + $0xad8] sm:$0xff]
    %v527 = vld [vmem:[#allocation5 + $0xae0] sm:$0xff]
    %v528 = vld [vmem:[#allocation5 + $0xae8] sm:$0xff]
    %v529 = vld [vmem:[#allocation5 + $0xaf0] sm:$0xff]
    %v530 = vld [vmem:[#allocation5 + $0xaf8] sm:$0xff]
    %v531 = vld [vmem:[#allocation5 + $0xb00] sm:$0xff]
    %v532 = vld [vmem:[#allocation5 + $0xb08] sm:$0xff]
    %v533 = vld [vmem:[#allocation5 + $0xb10] sm:$0xff]
    %v534 = vld [vmem:[#allocation5 + $0xb18] sm:$0xff]
    %v535 = vld [vmem:[#allocation5 + $0xb20] sm:$0xff]
    %v536 = vld [vmem:[#allocation5 + $0xb28] sm:$0xff]
    %v537 = vld [vmem:[#allocation5 + $0xb30] sm:$0xff]
    %v538 = vld [vmem:[#allocation5 + $0xb38] sm:$0xff]
    %v539 = vld [vmem:[#allocation5 + $0xb40] sm:$0xff]
    %v540 = vld [vmem:[#allocation5 + $0xb48] sm:$0xff]
    %v541 = vld [vmem:[#allocation5 + $0xb50] sm:$0xff]
    %v542 = vld [vmem:[#allocation5 + $0xb58] sm:$0xff]
    %v543 = vld [vmem:[#allocation5 + $0xb60] sm:$0xff]
    %v544 = vld [vmem:[#allocation5 + $0xb68] sm:$0xff]
    %v545 = vld [vmem:[#allocation5 + $0xb70] sm:$0xff]
    %v546 = vld [vmem:[#allocation5 + $0xb78] sm:$0xff]
    %v547 = vld [vmem:[#allocation5 + $0xb80] sm:$0xff]
    %v548 = vld [vmem:[#allocation5 + $0xb88] sm:$0xff]
    %v549 = vld [vmem:[#allocation5 + $0xb90] sm:$0xff]
    %v550 = vld [vmem:[#allocation5 + $0xb98] sm:$0xff]
    %v551 = vld [vmem:[#allocation5 + $0xba0] sm:$0xff]
    %v552 = vld [vmem:[#allocation5 + $0xba8] sm:$0xff]
    %v553 = vld [vmem:[#allocation5 + $0xbb0] sm:$0xff]
    %v554 = vld [vmem:[#allocation5 + $0xbb8] sm:$0xff]
    %v555 = vld [vmem:[#allocation5 + $0xbc0] sm:$0xff]
    %v556 = vld [vmem:[#allocation5 + $0xbc8] sm:$0xff]
    %v557 = vld [vmem:[#allocation5 + $0xbd0] sm:$0xff]
    %v558 = vld [vmem:[#allocation5 + $0xbd8] sm:$0xff]
    %v559 = vld [vmem:[#allocation5 + $0xbe0] sm:$0xff]
    %v560 = vld [vmem:[#allocation5 + $0xbe8] sm:$0xff]
    %v561 = vld [vmem:[#allocation5 + $0xbf0] sm:$0xff]
    %v562 = vld [vmem:[#allocation5 + $0xbf8] sm:$0xff]
    %v563 = vld [vmem:[#allocation5 + $0xc00] sm:$0xff]
    %v564 = vld [vmem:[#allocation5 + $0xc08] sm:$0xff]
    %v565 = vld [vmem:[#allocation5 + $0xc10] sm:$0xff]
    %v566 = vld [vmem:[#allocation5 + $0xc18] sm:$0xff]
    %v567 = vld [vmem:[#allocation5 + $0xc20] sm:$0xff]
    %v568 = vld [vmem:[#allocation5 + $0xc28] sm:$0xff]
    %v569 = vld [vmem:[#allocation5 + $0xc30] sm:$0xff]
    %v570 = vld [vmem:[#allocation5 + $0xc38] sm:$0xff]
    %v571 = vld [vmem:[#allocation5 + $0xc40] sm:$0xff]
    %v572 = vld [vmem:[#allocation5 + $0xc48] sm:$0xff]
    %v573 = vld [vmem:[#allocation5 + $0xc50] sm:$0xff]
    %v574 = vld [vmem:[#allocation5 + $0xc58] sm:$0xff]
    %v575 = vld [vmem:[#allocation5 + $0xc60] sm:$0xff]
    %v576 = vld [vmem:[#allocation5 + $0xc68] sm:$0xff]
    %v577 = vld [vmem:[#allocation5 + $0xc70] sm:$0xff]
    %v578 = vld [vmem:[#allocation5 + $0xc78] sm:$0xff]
    %v579 = vld [vmem:[#allocation5 + $0xc80] sm:$0xff]
    %v580 = vld [vmem:[#allocation5 + $0xc88] sm:$0xff]
    %v581 = vld [vmem:[#allocation5 + $0xc90] sm:$0xff]
    %v582 = vld [vmem:[#allocation5 + $0xc98] sm:$0xff]
    %v583 = vld [vmem:[#allocation5 + $0xca0] sm:$0xff]
    %v584 = vld [vmem:[#allocation5 + $0xca8] sm:$0xff]
    %v585 = vld [vmem:[#allocation5 + $0xcb0] sm:$0xff]
    %v586 = vld [vmem:[#allocation5 + $0xcb8] sm:$0xff]
    %v587 = vld [vmem:[#allocation5 + $0xcc0] sm:$0xff]
    %v588 = vld [vmem:[#allocation5 + $0xcc8] sm:$0xff]
    %v589 = vld [vmem:[#allocation5 + $0xcd0] sm:$0xff]
    %v590 = vld [vmem:[#allocation5 + $0xcd8] sm:$0xff]
    %v591 = vld [vmem:[#allocation5 + $0xce0] sm:$0xff]
    %v592 = vld [vmem:[#allocation5 + $0xce8] sm:$0xff]
    %v593 = vld [vmem:[#allocation5 + $0xcf0] sm:$0xff]
    %v594 = vld [vmem:[#allocation5 + $0xcf8] sm:$0xff]
    %v595 = vld [vmem:[#allocation5 + $0xd00] sm:$0xff]
    %v596 = vld [vmem:[#allocation5 + $0xd08] sm:$0xff]
    %v597 = vld [vmem:[#allocation5 + $0xd10] sm:$0xff]
    %v598 = vld [vmem:[#allocation5 + $0xd18] sm:$0xff]
    %v599 = vld [vmem:[#allocation5 + $0xd20] sm:$0xff]
    %v600 = vld [vmem:[#allocation5 + $0xd28] sm:$0xff]
    %v601 = vld [vmem:[#allocation5 + $0xd30] sm:$0xff]
    %v602 = vld [vmem:[#allocation5 + $0xd38] sm:$0xff]
    %v603 = vld [vmem:[#allocation5 + $0xd40] sm:$0xff]
    %v604 = vld [vmem:[#allocation5 + $0xd48] sm:$0xff]
    %v605 = vld [vmem:[#allocation5 + $0xd50] sm:$0xff]
    %v606 = vld [vmem:[#allocation5 + $0xd58] sm:$0xff]
    %v607 = vld [vmem:[#allocation5 + $0xd60] sm:$0xff]
    %v608 = vld [vmem:[#allocation5 + $0xd68] sm:$0xff]
    %v609 = vld [vmem:[#allocation5 + $0xd70] sm:$0xff]
    %v610 = vld [vmem:[#allocation5 + $0xd78] sm:$0xff]
    %v611 = vld [vmem:[#allocation5 + $0xd80] sm:$0xff]
    %v612 = vld [vmem:[#allocation5 + $0xd88] sm:$0xff]
    %v613 = vld [vmem:[#allocation5 + $0xd90] sm:$0xff]
    %v614 = vld [vmem:[#allocation5 + $0xd98] sm:$0xff]
    %v615 = vld [vmem:[#allocation5 + $0xda0] sm:$0xff]
    %v616 = vld [vmem:[#allocation5 + $0xda8] sm:$0xff]
    %v617 = vld [vmem:[#allocation5 + $0xdb0] sm:$0xff]
    %v618 = vld [vmem:[#allocation5 + $0xdb8] sm:$0xff]
    %v619 = vld [vmem:[#allocation5 + $0xdc0] sm:$0xff]
    %v620 = vld [vmem:[#allocation5 + $0xdc8] sm:$0xff]
    %v621 = vld [vmem:[#allocation5 + $0xdd0] sm:$0xff]
    %v622 = vld [vmem:[#allocation5 + $0xdd8] sm:$0xff]
    %v623 = vld [vmem:[#allocation5 + $0xde0] sm:$0xff]
    %v624 = vld [vmem:[#allocation5 + $0xde8] sm:$0xff]
    %v625 = vld [vmem:[#allocation5 + $0xdf0] sm:$0xff]
    %v626 = vld [vmem:[#allocation5 + $0xdf8] sm:$0xff]
    %v627 = vld [vmem:[#allocation5 + $0xe00] sm:$0xff]
    %v628 = vld [vmem:[#allocation5 + $0xe08] sm:$0xff]
    %v629 = vld [vmem:[#allocation5 + $0xe10] sm:$0xff]
    %v630 = vld [vmem:[#allocation5 + $0xe18] sm:$0xff]
    %v631 = vld [vmem:[#allocation5 + $0xe20] sm:$0xff]
    %v632 = vld [vmem:[#allocation5 + $0xe28] sm:$0xff]
    %v633 = vld [vmem:[#allocation5 + $0xe30] sm:$0xff]
    %v634 = vld [vmem:[#allocation5 + $0xe38] sm:$0xff]
    %v635 = vld [vmem:[#allocation5 + $0xe40] sm:$0xff]
    %v636 = vld [vmem:[#allocation5 + $0xe48] sm:$0xff]
    %v637 = vld [vmem:[#allocation5 + $0xe50] sm:$0xff]
    %v638 = vld [vmem:[#allocation5 + $0xe58] sm:$0xff]
    %v639 = vld [vmem:[#allocation5 + $0xe60] sm:$0xff]
    %v640 = vld [vmem:[#allocation5 + $0xe68] sm:$0xff]
    %v641 = vld [vmem:[#allocation5 + $0xe70] sm:$0xff]
    %v642 = vld [vmem:[#allocation5 + $0xe78] sm:$0xff]
    %v643 = vld [vmem:[#allocation5 + $0xe80] sm:$0xff]
    %v644 = vld [vmem:[#allocation5 + $0xe88] sm:$0xff]
    %v645 = vld [vmem:[#allocation5 + $0xe90] sm:$0xff]
    %v646 = vld [vmem:[#allocation5 + $0xe98] sm:$0xff]
    %v647 = vld [vmem:[#allocation5 + $0xea0] sm:$0xff]
    %v648 = vld [vmem:[#allocation5 + $0xea8] sm:$0xff]
    %v649 = vld [vmem:[#allocation5 + $0xeb0] sm:$0xff]
    %v650 = vld [vmem:[#allocation5 + $0xeb8] sm:$0xff]
    %v651 = vld [vmem:[#allocation5 + $0xec0] sm:$0xff]
    %v652 = vld [vmem:[#allocation5 + $0xec8] sm:$0xff]
    %v653 = vld [vmem:[#allocation5 + $0xed0] sm:$0xff]
    %v654 = vld [vmem:[#allocation5 + $0xed8] sm:$0xff]
    %v655 = vld [vmem:[#allocation5 + $0xee0] sm:$0xff]
    %v656 = vld [vmem:[#allocation5 + $0xee8] sm:$0xff]
    %v657 = vld [vmem:[#allocation5 + $0xef0] sm:$0xff]
    %v658 = vld [vmem:[#allocation5 + $0xef8] sm:$0xff]
    %v659 = vld [vmem:[#allocation5 + $0xf00] sm:$0xff]
    %v660 = vld [vmem:[#allocation5 + $0xf08] sm:$0xff]
    %v661 = vld [vmem:[#allocation5 + $0xf10] sm:$0xff]
    %v662 = vld [vmem:[#allocation5 + $0xf18] sm:$0xff]
    %v663 = vld [vmem:[#allocation5 + $0xf20] sm:$0xff]
    %v664 = vld [vmem:[#allocation5 + $0xf28] sm:$0xff]
    %v665 = vld [vmem:[#allocation5 + $0xf30] sm:$0xff]
    %v666 = vld [vmem:[#allocation5 + $0xf38] sm:$0xff]
    %v667 = vld [vmem:[#allocation5 + $0xf40] sm:$0xff]
    %v668 = vld [vmem:[#allocation5 + $0xf48] sm:$0xff]
    %v669 = vld [vmem:[#allocation5 + $0xf50] sm:$0xff]
    %v670 = vld [vmem:[#allocation5 + $0xf58] sm:$0xff]
    %v671 = vld [vmem:[#allocation5 + $0xf60] sm:$0xff]
    %v672 = vld [vmem:[#allocation5 + $0xf68] sm:$0xff]
    %v673 = vld [vmem:[#allocation5 + $0xf70] sm:$0xff]
    %v674 = vld [vmem:[#allocation5 + $0xf78] sm:$0xff]
    %v675 = vld [vmem:[#allocation5 + $0xf80] sm:$0xff]
    %v676 = vld [vmem:[#allocation5 + $0xf88] sm:$0xff]
    %v677 = vld [vmem:[#allocation5 + $0xf90] sm:$0xff]
    %v678 = vld [vmem:[#allocation5 + $0xf98] sm:$0xff]
    %v679 = vld [vmem:[#allocation5 + $0xfa0] sm:$0xff]
    %v680 = vld [vmem:[#allocation5 + $0xfa8] sm:$0xff]
    %v681 = vld [vmem:[#allocation5 + $0xfb0] sm:$0xff]
    %v682 = vld [vmem:[#allocation5 + $0xfb8] sm:$0xff]
    %v683 = vld [vmem:[#allocation5 + $0xfc0] sm:$0xff]
    %v684 = vld [vmem:[#allocation5 + $0xfc8] sm:$0xff]
    %v685 = vld [vmem:[#allocation5 + $0xfd0] sm:$0xff]
    %v686 = vld [vmem:[#allocation5 + $0xfd8] sm:$0xff]
    %v687 = vld [vmem:[#allocation5 + $0xfe0] sm:$0xff]
    %v688 = vld [vmem:[#allocation5 + $0xfe8] sm:$0xff]
    %v689 = vld [vmem:[#allocation5 + $0xff0] sm:$0xff]
    %v690 = vld [vmem:[#allocation5 + $0xff8] sm:$0xff]
    %v691 = vld [vmem:[#allocation7] sm:$0x3]
    %v693 = vlaneseq
    %v694 = vshrl.u32 %v693, 7
    %v695 = vsub.s32 0, %v694
    %v696 = vrot.slane %v691, %v695
    %v697 = vlaneseq
    %v698 = vshrl.u32 %v697, 7
    %v699 = vsub.s32 1, %v698
    %v700 = vrot.slane %v691, %v699
    %v1215 = vunpack.c.l.b16 %v179
    %v1216 = vunpack.c.h.b16 %v179
    %v1217 = vunpack.c.l.b16 %v180
    %v1218 = vunpack.c.h.b16 %v180
    %v1219 = vunpack.c.l.b16 %v181
    %v1220 = vunpack.c.h.b16 %v181
    %v1221 = vunpack.c.l.b16 %v182
    %v1222 = vunpack.c.h.b16 %v182
    %v1223 = vunpack.c.l.b16 %v183
    %v1224 = vunpack.c.h.b16 %v183
    %v1225 = vunpack.c.l.b16 %v184
    %v1226 = vunpack.c.h.b16 %v184
    %v1227 = vunpack.c.l.b16 %v185
    %v1228 = vunpack.c.h.b16 %v185
    %v1229 = vunpack.c.l.b16 %v186
    %v1230 = vunpack.c.h.b16 %v186
    %v1231 = vunpack.c.l.b16 %v187
    %v1232 = vunpack.c.h.b16 %v187
    %v1233 = vunpack.c.l.b16 %v188
    %v1234 = vunpack.c.h.b16 %v188
    %v1235 = vunpack.c.l.b16 %v189
    %v1236 = vunpack.c.h.b16 %v189
    %v1237 = vunpack.c.l.b16 %v190
    %v1238 = vunpack.c.h.b16 %v190
    %v1239 = vunpack.c.l.b16 %v191
    %v1240 = vunpack.c.h.b16 %v191
    %v1241 = vunpack.c.l.b16 %v192
    %v1242 = vunpack.c.h.b16 %v192
    %v1243 = vunpack.c.l.b16 %v193
    %v1244 = vunpack.c.h.b16 %v193
    %v1245 = vunpack.c.l.b16 %v194
    %v1246 = vunpack.c.h.b16 %v194
    %v1247 = vunpack.c.l.b16 %v195
    %v1248 = vunpack.c.h.b16 %v195
    %v1249 = vunpack.c.l.b16 %v196
    %v1250 = vunpack.c.h.b16 %v196
    %v1251 = vunpack.c.l.b16 %v197
    %v1252 = vunpack.c.h.b16 %v197
    %v1253 = vunpack.c.l.b16 %v198
    %v1254 = vunpack.c.h.b16 %v198
    %v1255 = vunpack.c.l.b16 %v199
    %v1256 = vunpack.c.h.b16 %v199
    %v1257 = vunpack.c.l.b16 %v200
    %v1258 = vunpack.c.h.b16 %v200
    %v1259 = vunpack.c.l.b16 %v201
    %v1260 = vunpack.c.h.b16 %v201
    %v1261 = vunpack.c.l.b16 %v202
    %v1262 = vunpack.c.h.b16 %v202
    %v1263 = vunpack.c.l.b16 %v203
    %v1264 = vunpack.c.h.b16 %v203
    %v1265 = vunpack.c.l.b16 %v204
    %v1266 = vunpack.c.h.b16 %v204
    %v1267 = vunpack.c.l.b16 %v205
    %v1268 = vunpack.c.h.b16 %v205
    %v1269 = vunpack.c.l.b16 %v206
    %v1270 = vunpack.c.h.b16 %v206
    %v1271 = vunpack.c.l.b16 %v207
    %v1272 = vunpack.c.h.b16 %v207
    %v1273 = vunpack.c.l.b16 %v208
    %v1274 = vunpack.c.h.b16 %v208
    %v1275 = vunpack.c.l.b16 %v209
    %v1276 = vunpack.c.h.b16 %v209
    %v1277 = vunpack.c.l.b16 %v210
    %v1278 = vunpack.c.h.b16 %v210
    %v1279 = vunpack.c.l.b16 %v211
    %v1280 = vunpack.c.h.b16 %v211
    %v1281 = vunpack.c.l.b16 %v212
    %v1282 = vunpack.c.h.b16 %v212
    %v1283 = vunpack.c.l.b16 %v213
    %v1284 = vunpack.c.h.b16 %v213
    %v1285 = vunpack.c.l.b16 %v214
    %v1286 = vunpack.c.h.b16 %v214
    %v1287 = vunpack.c.l.b16 %v215
    %v1288 = vunpack.c.h.b16 %v215
    %v1289 = vunpack.c.l.b16 %v216
    %v1290 = vunpack.c.h.b16 %v216
    %v1291 = vunpack.c.l.b16 %v217
    %v1292 = vunpack.c.h.b16 %v217
    %v1293 = vunpack.c.l.b16 %v218
    %v1294 = vunpack.c.h.b16 %v218
    %v1295 = vunpack.c.l.b16 %v219
    %v1296 = vunpack.c.h.b16 %v219
    %v1297 = vunpack.c.l.b16 %v220
    %v1298 = vunpack.c.h.b16 %v220
    %v1299 = vunpack.c.l.b16 %v221
    %v1300 = vunpack.c.h.b16 %v221
    %v1301 = vunpack.c.l.b16 %v222
    %v1302 = vunpack.c.h.b16 %v222
    %v1303 = vunpack.c.l.b16 %v223
    %v1304 = vunpack.c.h.b16 %v223
    %v1305 = vunpack.c.l.b16 %v224
    %v1306 = vunpack.c.h.b16 %v224
    %v1307 = vunpack.c.l.b16 %v225
    %v1308 = vunpack.c.h.b16 %v225
    %v1309 = vunpack.c.l.b16 %v226
    %v1310 = vunpack.c.h.b16 %v226
    %v1311 = vunpack.c.l.b16 %v227
    %v1312 = vunpack.c.h.b16 %v227
    %v1313 = vunpack.c.l.b16 %v228
    %v1314 = vunpack.c.h.b16 %v228
    %v1315 = vunpack.c.l.b16 %v229
    %v1316 = vunpack.c.h.b16 %v229
    %v1317 = vunpack.c.l.b16 %v230
    %v1318 = vunpack.c.h.b16 %v230
    %v1319 = vunpack.c.l.b16 %v231
    %v1320 = vunpack.c.h.b16 %v231
    %v1321 = vunpack.c.l.b16 %v232
    %v1322 = vunpack.c.h.b16 %v232
    %v1323 = vunpack.c.l.b16 %v233
    %v1324 = vunpack.c.h.b16 %v233
    %v1325 = vunpack.c.l.b16 %v234
    %v1326 = vunpack.c.h.b16 %v234
    %v1327 = vunpack.c.l.b16 %v235
    %v1328 = vunpack.c.h.b16 %v235
    %v1329 = vunpack.c.l.b16 %v236
    %v1330 = vunpack.c.h.b16 %v236
    %v1331 = vunpack.c.l.b16 %v237
    %v1332 = vunpack.c.h.b16 %v237
    %v1333 = vunpack.c.l.b16 %v238
    %v1334 = vunpack.c.h.b16 %v238
    %v1335 = vunpack.c.l.b16 %v239
    %v1336 = vunpack.c.h.b16 %v239
    %v1337 = vunpack.c.l.b16 %v240
    %v1338 = vunpack.c.h.b16 %v240
    %v1339 = vunpack.c.l.b16 %v241
    %v1340 = vunpack.c.h.b16 %v241
    %v1341 = vunpack.c.l.b16 %v242
    %v1342 = vunpack.c.h.b16 %v242
    %v1343 = vunpack.c.l.b16 %v243
    %v1344 = vunpack.c.h.b16 %v243
    %v1345 = vunpack.c.l.b16 %v244
    %v1346 = vunpack.c.h.b16 %v244
    %v1347 = vunpack.c.l.b16 %v245
    %v1348 = vunpack.c.h.b16 %v245
    %v1349 = vunpack.c.l.b16 %v246
    %v1350 = vunpack.c.h.b16 %v246
    %v1351 = vunpack.c.l.b16 %v247
    %v1352 = vunpack.c.h.b16 %v247
    %v1353 = vunpack.c.l.b16 %v248
    %v1354 = vunpack.c.h.b16 %v248
    %v1355 = vunpack.c.l.b16 %v249
    %v1356 = vunpack.c.h.b16 %v249
    %v1357 = vunpack.c.l.b16 %v250
    %v1358 = vunpack.c.h.b16 %v250
    %v1359 = vunpack.c.l.b16 %v251
    %v1360 = vunpack.c.h.b16 %v251
    %v1361 = vunpack.c.l.b16 %v252
    %v1362 = vunpack.c.h.b16 %v252
    %v1363 = vunpack.c.l.b16 %v253
    %v1364 = vunpack.c.h.b16 %v253
    %v1365 = vunpack.c.l.b16 %v254
    %v1366 = vunpack.c.h.b16 %v254
    %v1367 = vunpack.c.l.b16 %v255
    %v1368 = vunpack.c.h.b16 %v255
    %v1369 = vunpack.c.l.b16 %v256
    %v1370 = vunpack.c.h.b16 %v256
    %v1371 = vunpack.c.l.b16 %v257
    %v1372 = vunpack.c.h.b16 %v257
    %v1373 = vunpack.c.l.b16 %v258
    %v1374 = vunpack.c.h.b16 %v258
    %v1375 = vunpack.c.l.b16 %v259
    %v1376 = vunpack.c.h.b16 %v259
    %v1377 = vunpack.c.l.b16 %v260
    %v1378 = vunpack.c.h.b16 %v260
    %v1379 = vunpack.c.l.b16 %v261
    %v1380 = vunpack.c.h.b16 %v261
    %v1381 = vunpack.c.l.b16 %v262
    %v1382 = vunpack.c.h.b16 %v262
    %v1383 = vunpack.c.l.b16 %v263
    %v1384 = vunpack.c.h.b16 %v263
    %v1385 = vunpack.c.l.b16 %v264
    %v1386 = vunpack.c.h.b16 %v264
    %v1387 = vunpack.c.l.b16 %v265
    %v1388 = vunpack.c.h.b16 %v265
    %v1389 = vunpack.c.l.b16 %v266
    %v1390 = vunpack.c.h.b16 %v266
    %v1391 = vunpack.c.l.b16 %v267
    %v1392 = vunpack.c.h.b16 %v267
    %v1393 = vunpack.c.l.b16 %v268
    %v1394 = vunpack.c.h.b16 %v268
    %v1395 = vunpack.c.l.b16 %v269
    %v1396 = vunpack.c.h.b16 %v269
    %v1397 = vunpack.c.l.b16 %v270
    %v1398 = vunpack.c.h.b16 %v270
    %v1399 = vunpack.c.l.b16 %v271
    %v1400 = vunpack.c.h.b16 %v271
    %v1401 = vunpack.c.l.b16 %v272
    %v1402 = vunpack.c.h.b16 %v272
    %v1403 = vunpack.c.l.b16 %v273
    %v1404 = vunpack.c.h.b16 %v273
    %v1405 = vunpack.c.l.b16 %v274
    %v1406 = vunpack.c.h.b16 %v274
    %v1407 = vunpack.c.l.b16 %v275
    %v1408 = vunpack.c.h.b16 %v275
    %v1409 = vunpack.c.l.b16 %v276
    %v1410 = vunpack.c.h.b16 %v276
    %v1411 = vunpack.c.l.b16 %v277
    %v1412 = vunpack.c.h.b16 %v277
    %v1413 = vunpack.c.l.b16 %v278
    %v1414 = vunpack.c.h.b16 %v278
    %v1415 = vunpack.c.l.b16 %v279
    %v1416 = vunpack.c.h.b16 %v279
    %v1417 = vunpack.c.l.b16 %v280
    %v1418 = vunpack.c.h.b16 %v280
    %v1419 = vunpack.c.l.b16 %v281
    %v1420 = vunpack.c.h.b16 %v281
    %v1421 = vunpack.c.l.b16 %v282
    %v1422 = vunpack.c.h.b16 %v282
    %v1423 = vunpack.c.l.b16 %v283
    %v1424 = vunpack.c.h.b16 %v283
    %v1425 = vunpack.c.l.b16 %v284
    %v1426 = vunpack.c.h.b16 %v284
    %v1427 = vunpack.c.l.b16 %v285
    %v1428 = vunpack.c.h.b16 %v285
    %v1429 = vunpack.c.l.b16 %v286
    %v1430 = vunpack.c.h.b16 %v286
    %v1431 = vunpack.c.l.b16 %v287
    %v1432 = vunpack.c.h.b16 %v287
    %v1433 = vunpack.c.l.b16 %v288
    %v1434 = vunpack.c.h.b16 %v288
    %v1435 = vunpack.c.l.b16 %v289
    %v1436 = vunpack.c.h.b16 %v289
    %v1437 = vunpack.c.l.b16 %v290
    %v1438 = vunpack.c.h.b16 %v290
    %v1439 = vunpack.c.l.b16 %v291
    %v1440 = vunpack.c.h.b16 %v291
    %v1441 = vunpack.c.l.b16 %v292
    %v1442 = vunpack.c.h.b16 %v292
    %v1443 = vunpack.c.l.b16 %v293
    %v1444 = vunpack.c.h.b16 %v293
    %v1445 = vunpack.c.l.b16 %v294
    %v1446 = vunpack.c.h.b16 %v294
    %v1447 = vunpack.c.l.b16 %v295
    %v1448 = vunpack.c.h.b16 %v295
    %v1449 = vunpack.c.l.b16 %v296
    %v1450 = vunpack.c.h.b16 %v296
    %v1451 = vunpack.c.l.b16 %v297
    %v1452 = vunpack.c.h.b16 %v297
    %v1453 = vunpack.c.l.b16 %v298
    %v1454 = vunpack.c.h.b16 %v298
    %v1455 = vunpack.c.l.b16 %v299
    %v1456 = vunpack.c.h.b16 %v299
    %v1457 = vunpack.c.l.b16 %v300
    %v1458 = vunpack.c.h.b16 %v300
    %v1459 = vunpack.c.l.b16 %v301
    %v1460 = vunpack.c.h.b16 %v301
    %v1461 = vunpack.c.l.b16 %v302
    %v1462 = vunpack.c.h.b16 %v302
    %v1463 = vunpack.c.l.b16 %v303
    %v1464 = vunpack.c.h.b16 %v303
    %v1465 = vunpack.c.l.b16 %v304
    %v1466 = vunpack.c.h.b16 %v304
    %v1467 = vunpack.c.l.b16 %v305
    %v1468 = vunpack.c.h.b16 %v305
    %v1469 = vunpack.c.l.b16 %v306
    %v1470 = vunpack.c.h.b16 %v306
    %v1471 = vunpack.c.l.b16 %v307
    %v1472 = vunpack.c.h.b16 %v307
    %v1473 = vunpack.c.l.b16 %v308
    %v1474 = vunpack.c.h.b16 %v308
    %v1475 = vunpack.c.l.b16 %v309
    %v1476 = vunpack.c.h.b16 %v309
    %v1477 = vunpack.c.l.b16 %v310
    %v1478 = vunpack.c.h.b16 %v310
    %v1479 = vunpack.c.l.b16 %v311
    %v1480 = vunpack.c.h.b16 %v311
    %v1481 = vunpack.c.l.b16 %v312
    %v1482 = vunpack.c.h.b16 %v312
    %v1483 = vunpack.c.l.b16 %v313
    %v1484 = vunpack.c.h.b16 %v313
    %v1485 = vunpack.c.l.b16 %v314
    %v1486 = vunpack.c.h.b16 %v314
    %v1487 = vunpack.c.l.b16 %v315
    %v1488 = vunpack.c.h.b16 %v315
    %v1489 = vunpack.c.l.b16 %v316
    %v1490 = vunpack.c.h.b16 %v316
    %v1491 = vunpack.c.l.b16 %v317
    %v1492 = vunpack.c.h.b16 %v317
    %v1493 = vunpack.c.l.b16 %v318
    %v1494 = vunpack.c.h.b16 %v318
    %v1495 = vunpack.c.l.b16 %v319
    %v1496 = vunpack.c.h.b16 %v319
    %v1497 = vunpack.c.l.b16 %v320
    %v1498 = vunpack.c.h.b16 %v320
    %v1499 = vunpack.c.l.b16 %v321
    %v1500 = vunpack.c.h.b16 %v321
    %v1501 = vunpack.c.l.b16 %v322
    %v1502 = vunpack.c.h.b16 %v322
    %v1503 = vunpack.c.l.b16 %v323
    %v1504 = vunpack.c.h.b16 %v323
    %v1505 = vunpack.c.l.b16 %v324
    %v1506 = vunpack.c.h.b16 %v324
    %v1507 = vunpack.c.l.b16 %v325
    %v1508 = vunpack.c.h.b16 %v325
    %v1509 = vunpack.c.l.b16 %v326
    %v1510 = vunpack.c.h.b16 %v326
    %v1511 = vunpack.c.l.b16 %v327
    %v1512 = vunpack.c.h.b16 %v327
    %v1513 = vunpack.c.l.b16 %v328
    %v1514 = vunpack.c.h.b16 %v328
    %v1515 = vunpack.c.l.b16 %v329
    %v1516 = vunpack.c.h.b16 %v329
    %v1517 = vunpack.c.l.b16 %v330
    %v1518 = vunpack.c.h.b16 %v330
    %v1519 = vunpack.c.l.b16 %v331
    %v1520 = vunpack.c.h.b16 %v331
    %v1521 = vunpack.c.l.b16 %v332
    %v1522 = vunpack.c.h.b16 %v332
    %v1523 = vunpack.c.l.b16 %v333
    %v1524 = vunpack.c.h.b16 %v333
    %v1525 = vunpack.c.l.b16 %v334
    %v1526 = vunpack.c.h.b16 %v334
    %v1527 = vunpack.c.l.b16 %v335
    %v1528 = vunpack.c.h.b16 %v335
    %v1529 = vunpack.c.l.b16 %v336
    %v1530 = vunpack.c.h.b16 %v336
    %v1531 = vunpack.c.l.b16 %v337
    %v1532 = vunpack.c.h.b16 %v337
    %v1533 = vunpack.c.l.b16 %v338
    %v1534 = vunpack.c.h.b16 %v338
    %v1535 = vunpack.c.l.b16 %v339
    %v1536 = vunpack.c.h.b16 %v339
    %v1537 = vunpack.c.l.b16 %v340
    %v1538 = vunpack.c.h.b16 %v340
    %v1539 = vunpack.c.l.b16 %v341
    %v1540 = vunpack.c.h.b16 %v341
    %v1541 = vunpack.c.l.b16 %v342
    %v1542 = vunpack.c.h.b16 %v342
    %v1543 = vunpack.c.l.b16 %v343
    %v1544 = vunpack.c.h.b16 %v343
    %v1545 = vunpack.c.l.b16 %v344
    %v1546 = vunpack.c.h.b16 %v344
    %v1547 = vunpack.c.l.b16 %v345
    %v1548 = vunpack.c.h.b16 %v345
    %v1549 = vunpack.c.l.b16 %v346
    %v1550 = vunpack.c.h.b16 %v346
    %v1551 = vunpack.c.l.b16 %v347
    %v1552 = vunpack.c.h.b16 %v347
    %v1553 = vunpack.c.l.b16 %v348
    %v1554 = vunpack.c.h.b16 %v348
    %v1555 = vunpack.c.l.b16 %v349
    %v1556 = vunpack.c.h.b16 %v349
    %v1557 = vunpack.c.l.b16 %v350
    %v1558 = vunpack.c.h.b16 %v350
    %v1559 = vunpack.c.l.b16 %v351
    %v1560 = vunpack.c.h.b16 %v351
    %v1561 = vunpack.c.l.b16 %v352
    %v1562 = vunpack.c.h.b16 %v352
    %v1563 = vunpack.c.l.b16 %v353
    %v1564 = vunpack.c.h.b16 %v353
    %v1565 = vunpack.c.l.b16 %v354
    %v1566 = vunpack.c.h.b16 %v354
    %v1567 = vunpack.c.l.b16 %v355
    %v1568 = vunpack.c.h.b16 %v355
    %v1569 = vunpack.c.l.b16 %v356
    %v1570 = vunpack.c.h.b16 %v356
    %v1571 = vunpack.c.l.b16 %v357
    %v1572 = vunpack.c.h.b16 %v357
    %v1573 = vunpack.c.l.b16 %v358
    %v1574 = vunpack.c.h.b16 %v358
    %v1575 = vunpack.c.l.b16 %v359
    %v1576 = vunpack.c.h.b16 %v359
    %v1577 = vunpack.c.l.b16 %v360
    %v1578 = vunpack.c.h.b16 %v360
    %v1579 = vunpack.c.l.b16 %v361
    %v1580 = vunpack.c.h.b16 %v361
    %v1581 = vunpack.c.l.b16 %v362
    %v1582 = vunpack.c.h.b16 %v362
    %v1583 = vunpack.c.l.b16 %v363
    %v1584 = vunpack.c.h.b16 %v363
    %v1585 = vunpack.c.l.b16 %v364
    %v1586 = vunpack.c.h.b16 %v364
    %v1587 = vunpack.c.l.b16 %v365
    %v1588 = vunpack.c.h.b16 %v365
    %v1589 = vunpack.c.l.b16 %v366
    %v1590 = vunpack.c.h.b16 %v366
    %v1591 = vunpack.c.l.b16 %v367
    %v1592 = vunpack.c.h.b16 %v367
    %v1593 = vunpack.c.l.b16 %v368
    %v1594 = vunpack.c.h.b16 %v368
    %v1595 = vunpack.c.l.b16 %v369
    %v1596 = vunpack.c.h.b16 %v369
    %v1597 = vunpack.c.l.b16 %v370
    %v1598 = vunpack.c.h.b16 %v370
    %v1599 = vunpack.c.l.b16 %v371
    %v1600 = vunpack.c.h.b16 %v371
    %v1601 = vunpack.c.l.b16 %v372
    %v1602 = vunpack.c.h.b16 %v372
    %v1603 = vunpack.c.l.b16 %v373
    %v1604 = vunpack.c.h.b16 %v373
    %v1605 = vunpack.c.l.b16 %v374
    %v1606 = vunpack.c.h.b16 %v374
    %v1607 = vunpack.c.l.b16 %v375
    %v1608 = vunpack.c.h.b16 %v375
    %v1609 = vunpack.c.l.b16 %v376
    %v1610 = vunpack.c.h.b16 %v376
    %v1611 = vunpack.c.l.b16 %v377
    %v1612 = vunpack.c.h.b16 %v377
    %v1613 = vunpack.c.l.b16 %v378
    %v1614 = vunpack.c.h.b16 %v378
    %v1615 = vunpack.c.l.b16 %v379
    %v1616 = vunpack.c.h.b16 %v379
    %v1617 = vunpack.c.l.b16 %v380
    %v1618 = vunpack.c.h.b16 %v380
    %v1619 = vunpack.c.l.b16 %v381
    %v1620 = vunpack.c.h.b16 %v381
    %v1621 = vunpack.c.l.b16 %v382
    %v1622 = vunpack.c.h.b16 %v382
    %v1623 = vunpack.c.l.b16 %v383
    %v1624 = vunpack.c.h.b16 %v383
    %v1625 = vunpack.c.l.b16 %v384
    %v1626 = vunpack.c.h.b16 %v384
    %v1627 = vunpack.c.l.b16 %v385
    %v1628 = vunpack.c.h.b16 %v385
    %v1629 = vunpack.c.l.b16 %v386
    %v1630 = vunpack.c.h.b16 %v386
    %v1631 = vunpack.c.l.b16 %v387
    %v1632 = vunpack.c.h.b16 %v387
    %v1633 = vunpack.c.l.b16 %v388
    %v1634 = vunpack.c.h.b16 %v388
    %v1635 = vunpack.c.l.b16 %v389
    %v1636 = vunpack.c.h.b16 %v389
    %v1637 = vunpack.c.l.b16 %v390
    %v1638 = vunpack.c.h.b16 %v390
    %v1639 = vunpack.c.l.b16 %v391
    %v1640 = vunpack.c.h.b16 %v391
    %v1641 = vunpack.c.l.b16 %v392
    %v1642 = vunpack.c.h.b16 %v392
    %v1643 = vunpack.c.l.b16 %v393
    %v1644 = vunpack.c.h.b16 %v393
    %v1645 = vunpack.c.l.b16 %v394
    %v1646 = vunpack.c.h.b16 %v394
    %v1647 = vunpack.c.l.b16 %v395
    %v1648 = vunpack.c.h.b16 %v395
    %v1649 = vunpack.c.l.b16 %v396
    %v1650 = vunpack.c.h.b16 %v396
    %v1651 = vunpack.c.l.b16 %v397
    %v1652 = vunpack.c.h.b16 %v397
    %v1653 = vunpack.c.l.b16 %v398
    %v1654 = vunpack.c.h.b16 %v398
    %v1655 = vunpack.c.l.b16 %v399
    %v1656 = vunpack.c.h.b16 %v399
    %v1657 = vunpack.c.l.b16 %v400
    %v1658 = vunpack.c.h.b16 %v400
    %v1659 = vunpack.c.l.b16 %v401
    %v1660 = vunpack.c.h.b16 %v401
    %v1661 = vunpack.c.l.b16 %v402
    %v1662 = vunpack.c.h.b16 %v402
    %v1663 = vunpack.c.l.b16 %v403
    %v1664 = vunpack.c.h.b16 %v403
    %v1665 = vunpack.c.l.b16 %v404
    %v1666 = vunpack.c.h.b16 %v404
    %v1667 = vunpack.c.l.b16 %v405
    %v1668 = vunpack.c.h.b16 %v405
    %v1669 = vunpack.c.l.b16 %v406
    %v1670 = vunpack.c.h.b16 %v406
    %v1671 = vunpack.c.l.b16 %v407
    %v1672 = vunpack.c.h.b16 %v407
    %v1673 = vunpack.c.l.b16 %v408
    %v1674 = vunpack.c.h.b16 %v408
    %v1675 = vunpack.c.l.b16 %v409
    %v1676 = vunpack.c.h.b16 %v409
    %v1677 = vunpack.c.l.b16 %v410
    %v1678 = vunpack.c.h.b16 %v410
    %v1679 = vunpack.c.l.b16 %v411
    %v1680 = vunpack.c.h.b16 %v411
    %v1681 = vunpack.c.l.b16 %v412
    %v1682 = vunpack.c.h.b16 %v412
    %v1683 = vunpack.c.l.b16 %v413
    %v1684 = vunpack.c.h.b16 %v413
    %v1685 = vunpack.c.l.b16 %v414
    %v1686 = vunpack.c.h.b16 %v414
    %v1687 = vunpack.c.l.b16 %v415
    %v1688 = vunpack.c.h.b16 %v415
    %v1689 = vunpack.c.l.b16 %v416
    %v1690 = vunpack.c.h.b16 %v416
    %v1691 = vunpack.c.l.b16 %v417
    %v1692 = vunpack.c.h.b16 %v417
    %v1693 = vunpack.c.l.b16 %v418
    %v1694 = vunpack.c.h.b16 %v418
    %v1695 = vunpack.c.l.b16 %v419
    %v1696 = vunpack.c.h.b16 %v419
    %v1697 = vunpack.c.l.b16 %v420
    %v1698 = vunpack.c.h.b16 %v420
    %v1699 = vunpack.c.l.b16 %v421
    %v1700 = vunpack.c.h.b16 %v421
    %v1701 = vunpack.c.l.b16 %v422
    %v1702 = vunpack.c.h.b16 %v422
    %v1703 = vunpack.c.l.b16 %v423
    %v1704 = vunpack.c.h.b16 %v423
    %v1705 = vunpack.c.l.b16 %v424
    %v1706 = vunpack.c.h.b16 %v424
    %v1707 = vunpack.c.l.b16 %v425
    %v1708 = vunpack.c.h.b16 %v425
    %v1709 = vunpack.c.l.b16 %v426
    %v1710 = vunpack.c.h.b16 %v426
    %v1711 = vunpack.c.l.b16 %v427
    %v1712 = vunpack.c.h.b16 %v427
    %v1713 = vunpack.c.l.b16 %v428
    %v1714 = vunpack.c.h.b16 %v428
    %v1715 = vunpack.c.l.b16 %v429
    %v1716 = vunpack.c.h.b16 %v429
    %v1717 = vunpack.c.l.b16 %v430
    %v1718 = vunpack.c.h.b16 %v430
    %v1719 = vunpack.c.l.b16 %v431
    %v1720 = vunpack.c.h.b16 %v431
    %v1721 = vunpack.c.l.b16 %v432
    %v1722 = vunpack.c.h.b16 %v432
    %v1723 = vunpack.c.l.b16 %v433
    %v1724 = vunpack.c.h.b16 %v433
    %v1725 = vunpack.c.l.b16 %v434
    %v1726 = vunpack.c.h.b16 %v434
    %v1727 = vunpack.c.l.b16 %v435
    %v1728 = vunpack.c.h.b16 %v435
    %v1729 = vunpack.c.l.b16 %v436
    %v1730 = vunpack.c.h.b16 %v436
    %v1731 = vunpack.c.l.b16 %v437
    %v1732 = vunpack.c.h.b16 %v437
    %v1733 = vunpack.c.l.b16 %v438
    %v1734 = vunpack.c.h.b16 %v438
    %v1735 = vunpack.c.l.b16 %v439
    %v1736 = vunpack.c.h.b16 %v439
    %v1737 = vunpack.c.l.b16 %v440
    %v1738 = vunpack.c.h.b16 %v440
    %v1739 = vunpack.c.l.b16 %v441
    %v1740 = vunpack.c.h.b16 %v441
    %v1741 = vunpack.c.l.b16 %v442
    %v1742 = vunpack.c.h.b16 %v442
    %v1743 = vunpack.c.l.b16 %v443
    %v1744 = vunpack.c.h.b16 %v443
    %v1745 = vunpack.c.l.b16 %v444
    %v1746 = vunpack.c.h.b16 %v444
    %v1747 = vunpack.c.l.b16 %v445
    %v1748 = vunpack.c.h.b16 %v445
    %v1749 = vunpack.c.l.b16 %v446
    %v1750 = vunpack.c.h.b16 %v446
    %v1751 = vunpack.c.l.b16 %v447
    %v1752 = vunpack.c.h.b16 %v447
    %v1753 = vunpack.c.l.b16 %v448
    %v1754 = vunpack.c.h.b16 %v448
    %v1755 = vunpack.c.l.b16 %v449
    %v1756 = vunpack.c.h.b16 %v449
    %v1757 = vunpack.c.l.b16 %v450
    %v1758 = vunpack.c.h.b16 %v450
    %v1759 = vunpack.c.l.b16 %v451
    %v1760 = vunpack.c.h.b16 %v451
    %v1761 = vunpack.c.l.b16 %v452
    %v1762 = vunpack.c.h.b16 %v452
    %v1763 = vunpack.c.l.b16 %v453
    %v1764 = vunpack.c.h.b16 %v453
    %v1765 = vunpack.c.l.b16 %v454
    %v1766 = vunpack.c.h.b16 %v454
    %v1767 = vunpack.c.l.b16 %v455
    %v1768 = vunpack.c.h.b16 %v455
    %v1769 = vunpack.c.l.b16 %v456
    %v1770 = vunpack.c.h.b16 %v456
    %v1771 = vunpack.c.l.b16 %v457
    %v1772 = vunpack.c.h.b16 %v457
    %v1773 = vunpack.c.l.b16 %v458
    %v1774 = vunpack.c.h.b16 %v458
    %v1775 = vunpack.c.l.b16 %v459
    %v1776 = vunpack.c.h.b16 %v459
    %v1777 = vunpack.c.l.b16 %v460
    %v1778 = vunpack.c.h.b16 %v460
    %v1779 = vunpack.c.l.b16 %v461
    %v1780 = vunpack.c.h.b16 %v461
    %v1781 = vunpack.c.l.b16 %v462
    %v1782 = vunpack.c.h.b16 %v462
    %v1783 = vunpack.c.l.b16 %v463
    %v1784 = vunpack.c.h.b16 %v463
    %v1785 = vunpack.c.l.b16 %v464
    %v1786 = vunpack.c.h.b16 %v464
    %v1787 = vunpack.c.l.b16 %v465
    %v1788 = vunpack.c.h.b16 %v465
    %v1789 = vunpack.c.l.b16 %v466
    %v1790 = vunpack.c.h.b16 %v466
    %v1791 = vunpack.c.l.b16 %v467
    %v1792 = vunpack.c.h.b16 %v467
    %v1793 = vunpack.c.l.b16 %v468
    %v1794 = vunpack.c.h.b16 %v468
    %v1795 = vunpack.c.l.b16 %v469
    %v1796 = vunpack.c.h.b16 %v469
    %v1797 = vunpack.c.l.b16 %v470
    %v1798 = vunpack.c.h.b16 %v470
    %v1799 = vunpack.c.l.b16 %v471
    %v1800 = vunpack.c.h.b16 %v471
    %v1801 = vunpack.c.l.b16 %v472
    %v1802 = vunpack.c.h.b16 %v472
    %v1803 = vunpack.c.l.b16 %v473
    %v1804 = vunpack.c.h.b16 %v473
    %v1805 = vunpack.c.l.b16 %v474
    %v1806 = vunpack.c.h.b16 %v474
    %v1807 = vunpack.c.l.b16 %v475
    %v1808 = vunpack.c.h.b16 %v475
    %v1809 = vunpack.c.l.b16 %v476
    %v1810 = vunpack.c.h.b16 %v476
    %v1811 = vunpack.c.l.b16 %v477
    %v1812 = vunpack.c.h.b16 %v477
    %v1813 = vunpack.c.l.b16 %v478
    %v1814 = vunpack.c.h.b16 %v478
    %v1815 = vunpack.c.l.b16 %v479
    %v1816 = vunpack.c.h.b16 %v479
    %v1817 = vunpack.c.l.b16 %v480
    %v1818 = vunpack.c.h.b16 %v480
    %v1819 = vunpack.c.l.b16 %v481
    %v1820 = vunpack.c.h.b16 %v481
    %v1821 = vunpack.c.l.b16 %v482
    %v1822 = vunpack.c.h.b16 %v482
    %v1823 = vunpack.c.l.b16 %v483
    %v1824 = vunpack.c.h.b16 %v483
    %v1825 = vunpack.c.l.b16 %v484
    %v1826 = vunpack.c.h.b16 %v484
    %v1827 = vunpack.c.l.b16 %v485
    %v1828 = vunpack.c.h.b16 %v485
    %v1829 = vunpack.c.l.b16 %v486
    %v1830 = vunpack.c.h.b16 %v486
    %v1831 = vunpack.c.l.b16 %v487
    %v1832 = vunpack.c.h.b16 %v487
    %v1833 = vunpack.c.l.b16 %v488
    %v1834 = vunpack.c.h.b16 %v488
    %v1835 = vunpack.c.l.b16 %v489
    %v1836 = vunpack.c.h.b16 %v489
    %v1837 = vunpack.c.l.b16 %v490
    %v1838 = vunpack.c.h.b16 %v490
    %v1839 = vunpack.c.l.b16 %v491
    %v1840 = vunpack.c.h.b16 %v491
    %v1841 = vunpack.c.l.b16 %v492
    %v1842 = vunpack.c.h.b16 %v492
    %v1843 = vunpack.c.l.b16 %v493
    %v1844 = vunpack.c.h.b16 %v493
    %v1845 = vunpack.c.l.b16 %v494
    %v1846 = vunpack.c.h.b16 %v494
    %v1847 = vunpack.c.l.b16 %v495
    %v1848 = vunpack.c.h.b16 %v495
    %v1849 = vunpack.c.l.b16 %v496
    %v1850 = vunpack.c.h.b16 %v496
    %v1851 = vunpack.c.l.b16 %v497
    %v1852 = vunpack.c.h.b16 %v497
    %v1853 = vunpack.c.l.b16 %v498
    %v1854 = vunpack.c.h.b16 %v498
    %v1855 = vunpack.c.l.b16 %v499
    %v1856 = vunpack.c.h.b16 %v499
    %v1857 = vunpack.c.l.b16 %v500
    %v1858 = vunpack.c.h.b16 %v500
    %v1859 = vunpack.c.l.b16 %v501
    %v1860 = vunpack.c.h.b16 %v501
    %v1861 = vunpack.c.l.b16 %v502
    %v1862 = vunpack.c.h.b16 %v502
    %v1863 = vunpack.c.l.b16 %v503
    %v1864 = vunpack.c.h.b16 %v503
    %v1865 = vunpack.c.l.b16 %v504
    %v1866 = vunpack.c.h.b16 %v504
    %v1867 = vunpack.c.l.b16 %v505
    %v1868 = vunpack.c.h.b16 %v505
    %v1869 = vunpack.c.l.b16 %v506
    %v1870 = vunpack.c.h.b16 %v506
    %v1871 = vunpack.c.l.b16 %v507
    %v1872 = vunpack.c.h.b16 %v507
    %v1873 = vunpack.c.l.b16 %v508
    %v1874 = vunpack.c.h.b16 %v508
    %v1875 = vunpack.c.l.b16 %v509
    %v1876 = vunpack.c.h.b16 %v509
    %v1877 = vunpack.c.l.b16 %v510
    %v1878 = vunpack.c.h.b16 %v510
    %v1879 = vunpack.c.l.b16 %v511
    %v1880 = vunpack.c.h.b16 %v511
    %v1881 = vunpack.c.l.b16 %v512
    %v1882 = vunpack.c.h.b16 %v512
    %v1883 = vunpack.c.l.b16 %v513
    %v1884 = vunpack.c.h.b16 %v513
    %v1885 = vunpack.c.l.b16 %v514
    %v1886 = vunpack.c.h.b16 %v514
    %v1887 = vunpack.c.l.b16 %v515
    %v1888 = vunpack.c.h.b16 %v515
    %v1889 = vunpack.c.l.b16 %v516
    %v1890 = vunpack.c.h.b16 %v516
    %v1891 = vunpack.c.l.b16 %v517
    %v1892 = vunpack.c.h.b16 %v517
    %v1893 = vunpack.c.l.b16 %v518
    %v1894 = vunpack.c.h.b16 %v518
    %v1895 = vunpack.c.l.b16 %v519
    %v1896 = vunpack.c.h.b16 %v519
    %v1897 = vunpack.c.l.b16 %v520
    %v1898 = vunpack.c.h.b16 %v520
    %v1899 = vunpack.c.l.b16 %v521
    %v1900 = vunpack.c.h.b16 %v521
    %v1901 = vunpack.c.l.b16 %v522
    %v1902 = vunpack.c.h.b16 %v522
    %v1903 = vunpack.c.l.b16 %v523
    %v1904 = vunpack.c.h.b16 %v523
    %v1905 = vunpack.c.l.b16 %v524
    %v1906 = vunpack.c.h.b16 %v524
    %v1907 = vunpack.c.l.b16 %v525
    %v1908 = vunpack.c.h.b16 %v525
    %v1909 = vunpack.c.l.b16 %v526
    %v1910 = vunpack.c.h.b16 %v526
    %v1911 = vunpack.c.l.b16 %v527
    %v1912 = vunpack.c.h.b16 %v527
    %v1913 = vunpack.c.l.b16 %v528
    %v1914 = vunpack.c.h.b16 %v528
    %v1915 = vunpack.c.l.b16 %v529
    %v1916 = vunpack.c.h.b16 %v529
    %v1917 = vunpack.c.l.b16 %v530
    %v1918 = vunpack.c.h.b16 %v530
    %v1919 = vunpack.c.l.b16 %v531
    %v1920 = vunpack.c.h.b16 %v531
    %v1921 = vunpack.c.l.b16 %v532
    %v1922 = vunpack.c.h.b16 %v532
    %v1923 = vunpack.c.l.b16 %v533
    %v1924 = vunpack.c.h.b16 %v533
    %v1925 = vunpack.c.l.b16 %v534
    %v1926 = vunpack.c.h.b16 %v534
    %v1927 = vunpack.c.l.b16 %v535
    %v1928 = vunpack.c.h.b16 %v535
    %v1929 = vunpack.c.l.b16 %v536
    %v1930 = vunpack.c.h.b16 %v536
    %v1931 = vunpack.c.l.b16 %v537
    %v1932 = vunpack.c.h.b16 %v537
    %v1933 = vunpack.c.l.b16 %v538
    %v1934 = vunpack.c.h.b16 %v538
    %v1935 = vunpack.c.l.b16 %v539
    %v1936 = vunpack.c.h.b16 %v539
    %v1937 = vunpack.c.l.b16 %v540
    %v1938 = vunpack.c.h.b16 %v540
    %v1939 = vunpack.c.l.b16 %v541
    %v1940 = vunpack.c.h.b16 %v541
    %v1941 = vunpack.c.l.b16 %v542
    %v1942 = vunpack.c.h.b16 %v542
    %v1943 = vunpack.c.l.b16 %v543
    %v1944 = vunpack.c.h.b16 %v543
    %v1945 = vunpack.c.l.b16 %v544
    %v1946 = vunpack.c.h.b16 %v544
    %v1947 = vunpack.c.l.b16 %v545
    %v1948 = vunpack.c.h.b16 %v545
    %v1949 = vunpack.c.l.b16 %v546
    %v1950 = vunpack.c.h.b16 %v546
    %v1951 = vunpack.c.l.b16 %v547
    %v1952 = vunpack.c.h.b16 %v547
    %v1953 = vunpack.c.l.b16 %v548
    %v1954 = vunpack.c.h.b16 %v548
    %v1955 = vunpack.c.l.b16 %v549
    %v1956 = vunpack.c.h.b16 %v549
    %v1957 = vunpack.c.l.b16 %v550
    %v1958 = vunpack.c.h.b16 %v550
    %v1959 = vunpack.c.l.b16 %v551
    %v1960 = vunpack.c.h.b16 %v551
    %v1961 = vunpack.c.l.b16 %v552
    %v1962 = vunpack.c.h.b16 %v552
    %v1963 = vunpack.c.l.b16 %v553
    %v1964 = vunpack.c.h.b16 %v553
    %v1965 = vunpack.c.l.b16 %v554
    %v1966 = vunpack.c.h.b16 %v554
    %v1967 = vunpack.c.l.b16 %v555
    %v1968 = vunpack.c.h.b16 %v555
    %v1969 = vunpack.c.l.b16 %v556
    %v1970 = vunpack.c.h.b16 %v556
    %v1971 = vunpack.c.l.b16 %v557
    %v1972 = vunpack.c.h.b16 %v557
    %v1973 = vunpack.c.l.b16 %v558
    %v1974 = vunpack.c.h.b16 %v558
    %v1975 = vunpack.c.l.b16 %v559
    %v1976 = vunpack.c.h.b16 %v559
    %v1977 = vunpack.c.l.b16 %v560
    %v1978 = vunpack.c.h.b16 %v560
    %v1979 = vunpack.c.l.b16 %v561
    %v1980 = vunpack.c.h.b16 %v561
    %v1981 = vunpack.c.l.b16 %v562
    %v1982 = vunpack.c.h.b16 %v562
    %v1983 = vunpack.c.l.b16 %v563
    %v1984 = vunpack.c.h.b16 %v563
    %v1985 = vunpack.c.l.b16 %v564
    %v1986 = vunpack.c.h.b16 %v564
    %v1987 = vunpack.c.l.b16 %v565
    %v1988 = vunpack.c.h.b16 %v565
    %v1989 = vunpack.c.l.b16 %v566
    %v1990 = vunpack.c.h.b16 %v566
    %v1991 = vunpack.c.l.b16 %v567
    %v1992 = vunpack.c.h.b16 %v567
    %v1993 = vunpack.c.l.b16 %v568
    %v1994 = vunpack.c.h.b16 %v568
    %v1995 = vunpack.c.l.b16 %v569
    %v1996 = vunpack.c.h.b16 %v569
    %v1997 = vunpack.c.l.b16 %v570
    %v1998 = vunpack.c.h.b16 %v570
    %v1999 = vunpack.c.l.b16 %v571
    %v2000 = vunpack.c.h.b16 %v571
    %v2001 = vunpack.c.l.b16 %v572
    %v2002 = vunpack.c.h.b16 %v572
    %v2003 = vunpack.c.l.b16 %v573
    %v2004 = vunpack.c.h.b16 %v573
    %v2005 = vunpack.c.l.b16 %v574
    %v2006 = vunpack.c.h.b16 %v574
    %v2007 = vunpack.c.l.b16 %v575
    %v2008 = vunpack.c.h.b16 %v575
    %v2009 = vunpack.c.l.b16 %v576
    %v2010 = vunpack.c.h.b16 %v576
    %v2011 = vunpack.c.l.b16 %v577
    %v2012 = vunpack.c.h.b16 %v577
    %v2013 = vunpack.c.l.b16 %v578
    %v2014 = vunpack.c.h.b16 %v578
    %v2015 = vunpack.c.l.b16 %v579
    %v2016 = vunpack.c.h.b16 %v579
    %v2017 = vunpack.c.l.b16 %v580
    %v2018 = vunpack.c.h.b16 %v580
    %v2019 = vunpack.c.l.b16 %v581
    %v2020 = vunpack.c.h.b16 %v581
    %v2021 = vunpack.c.l.b16 %v582
    %v2022 = vunpack.c.h.b16 %v582
    %v2023 = vunpack.c.l.b16 %v583
    %v2024 = vunpack.c.h.b16 %v583
    %v2025 = vunpack.c.l.b16 %v584
    %v2026 = vunpack.c.h.b16 %v584
    %v2027 = vunpack.c.l.b16 %v585
    %v2028 = vunpack.c.h.b16 %v585
    %v2029 = vunpack.c.l.b16 %v586
    %v2030 = vunpack.c.h.b16 %v586
    %v2031 = vunpack.c.l.b16 %v587
    %v2032 = vunpack.c.h.b16 %v587
    %v2033 = vunpack.c.l.b16 %v588
    %v2034 = vunpack.c.h.b16 %v588
    %v2035 = vunpack.c.l.b16 %v589
    %v2036 = vunpack.c.h.b16 %v589
    %v2037 = vunpack.c.l.b16 %v590
    %v2038 = vunpack.c.h.b16 %v590
    %v2039 = vunpack.c.l.b16 %v591
    %v2040 = vunpack.c.h.b16 %v591
    %v2041 = vunpack.c.l.b16 %v592
    %v2042 = vunpack.c.h.b16 %v592
    %v2043 = vunpack.c.l.b16 %v593
    %v2044 = vunpack.c.h.b16 %v593
    %v2045 = vunpack.c.l.b16 %v594
    %v2046 = vunpack.c.h.b16 %v594
    %v2047 = vunpack.c.l.b16 %v595
    %v2048 = vunpack.c.h.b16 %v595
    %v2049 = vunpack.c.l.b16 %v596
    %v2050 = vunpack.c.h.b16 %v596
    %v2051 = vunpack.c.l.b16 %v597
    %v2052 = vunpack.c.h.b16 %v597
    %v2053 = vunpack.c.l.b16 %v598
    %v2054 = vunpack.c.h.b16 %v598
    %v2055 = vunpack.c.l.b16 %v599
    %v2056 = vunpack.c.h.b16 %v599
    %v2057 = vunpack.c.l.b16 %v600
    %v2058 = vunpack.c.h.b16 %v600
    %v2059 = vunpack.c.l.b16 %v601
    %v2060 = vunpack.c.h.b16 %v601
    %v2061 = vunpack.c.l.b16 %v602
    %v2062 = vunpack.c.h.b16 %v602
    %v2063 = vunpack.c.l.b16 %v603
    %v2064 = vunpack.c.h.b16 %v603
    %v2065 = vunpack.c.l.b16 %v604
    %v2066 = vunpack.c.h.b16 %v604
    %v2067 = vunpack.c.l.b16 %v605
    %v2068 = vunpack.c.h.b16 %v605
    %v2069 = vunpack.c.l.b16 %v606
    %v2070 = vunpack.c.h.b16 %v606
    %v2071 = vunpack.c.l.b16 %v607
    %v2072 = vunpack.c.h.b16 %v607
    %v2073 = vunpack.c.l.b16 %v608
    %v2074 = vunpack.c.h.b16 %v608
    %v2075 = vunpack.c.l.b16 %v609
    %v2076 = vunpack.c.h.b16 %v609
    %v2077 = vunpack.c.l.b16 %v610
    %v2078 = vunpack.c.h.b16 %v610
    %v2079 = vunpack.c.l.b16 %v611
    %v2080 = vunpack.c.h.b16 %v611
    %v2081 = vunpack.c.l.b16 %v612
    %v2082 = vunpack.c.h.b16 %v612
    %v2083 = vunpack.c.l.b16 %v613
    %v2084 = vunpack.c.h.b16 %v613
    %v2085 = vunpack.c.l.b16 %v614
    %v2086 = vunpack.c.h.b16 %v614
    %v2087 = vunpack.c.l.b16 %v615
    %v2088 = vunpack.c.h.b16 %v615
    %v2089 = vunpack.c.l.b16 %v616
    %v2090 = vunpack.c.h.b16 %v616
    %v2091 = vunpack.c.l.b16 %v617
    %v2092 = vunpack.c.h.b16 %v617
    %v2093 = vunpack.c.l.b16 %v618
    %v2094 = vunpack.c.h.b16 %v618
    %v2095 = vunpack.c.l.b16 %v619
    %v2096 = vunpack.c.h.b16 %v619
    %v2097 = vunpack.c.l.b16 %v620
    %v2098 = vunpack.c.h.b16 %v620
    %v2099 = vunpack.c.l.b16 %v621
    %v2100 = vunpack.c.h.b16 %v621
    %v2101 = vunpack.c.l.b16 %v622
    %v2102 = vunpack.c.h.b16 %v622
    %v2103 = vunpack.c.l.b16 %v623
    %v2104 = vunpack.c.h.b16 %v623
    %v2105 = vunpack.c.l.b16 %v624
    %v2106 = vunpack.c.h.b16 %v624
    %v2107 = vunpack.c.l.b16 %v625
    %v2108 = vunpack.c.h.b16 %v625
    %v2109 = vunpack.c.l.b16 %v626
    %v2110 = vunpack.c.h.b16 %v626
    %v2111 = vunpack.c.l.b16 %v627
    %v2112 = vunpack.c.h.b16 %v627
    %v2113 = vunpack.c.l.b16 %v628
    %v2114 = vunpack.c.h.b16 %v628
    %v2115 = vunpack.c.l.b16 %v629
    %v2116 = vunpack.c.h.b16 %v629
    %v2117 = vunpack.c.l.b16 %v630
    %v2118 = vunpack.c.h.b16 %v630
    %v2119 = vunpack.c.l.b16 %v631
    %v2120 = vunpack.c.h.b16 %v631
    %v2121 = vunpack.c.l.b16 %v632
    %v2122 = vunpack.c.h.b16 %v632
    %v2123 = vunpack.c.l.b16 %v633
    %v2124 = vunpack.c.h.b16 %v633
    %v2125 = vunpack.c.l.b16 %v634
    %v2126 = vunpack.c.h.b16 %v634
    %v2127 = vunpack.c.l.b16 %v635
    %v2128 = vunpack.c.h.b16 %v635
    %v2129 = vunpack.c.l.b16 %v636
    %v2130 = vunpack.c.h.b16 %v636
    %v2131 = vunpack.c.l.b16 %v637
    %v2132 = vunpack.c.h.b16 %v637
    %v2133 = vunpack.c.l.b16 %v638
    %v2134 = vunpack.c.h.b16 %v638
    %v2135 = vunpack.c.l.b16 %v639
    %v2136 = vunpack.c.h.b16 %v639
    %v2137 = vunpack.c.l.b16 %v640
    %v2138 = vunpack.c.h.b16 %v640
    %v2139 = vunpack.c.l.b16 %v641
    %v2140 = vunpack.c.h.b16 %v641
    %v2141 = vunpack.c.l.b16 %v642
    %v2142 = vunpack.c.h.b16 %v642
    %v2143 = vunpack.c.l.b16 %v643
    %v2144 = vunpack.c.h.b16 %v643
    %v2145 = vunpack.c.l.b16 %v644
    %v2146 = vunpack.c.h.b16 %v644
    %v2147 = vunpack.c.l.b16 %v645
    %v2148 = vunpack.c.h.b16 %v645
    %v2149 = vunpack.c.l.b16 %v646
    %v2150 = vunpack.c.h.b16 %v646
    %v2151 = vunpack.c.l.b16 %v647
    %v2152 = vunpack.c.h.b16 %v647
    %v2153 = vunpack.c.l.b16 %v648
    %v2154 = vunpack.c.h.b16 %v648
    %v2155 = vunpack.c.l.b16 %v649
    %v2156 = vunpack.c.h.b16 %v649
    %v2157 = vunpack.c.l.b16 %v650
    %v2158 = vunpack.c.h.b16 %v650
    %v2159 = vunpack.c.l.b16 %v651
    %v2160 = vunpack.c.h.b16 %v651
    %v2161 = vunpack.c.l.b16 %v652
    %v2162 = vunpack.c.h.b16 %v652
    %v2163 = vunpack.c.l.b16 %v653
    %v2164 = vunpack.c.h.b16 %v653
    %v2165 = vunpack.c.l.b16 %v654
    %v2166 = vunpack.c.h.b16 %v654
    %v2167 = vunpack.c.l.b16 %v655
    %v2168 = vunpack.c.h.b16 %v655
    %v2169 = vunpack.c.l.b16 %v656
    %v2170 = vunpack.c.h.b16 %v656
    %v2171 = vunpack.c.l.b16 %v657
    %v2172 = vunpack.c.h.b16 %v657
    %v2173 = vunpack.c.l.b16 %v658
    %v2174 = vunpack.c.h.b16 %v658
    %v2175 = vunpack.c.l.b16 %v659
    %v2176 = vunpack.c.h.b16 %v659
    %v2177 = vunpack.c.l.b16 %v660
    %v2178 = vunpack.c.h.b16 %v660
    %v2179 = vunpack.c.l.b16 %v661
    %v2180 = vunpack.c.h.b16 %v661
    %v2181 = vunpack.c.l.b16 %v662
    %v2182 = vunpack.c.h.b16 %v662
    %v2183 = vunpack.c.l.b16 %v663
    %v2184 = vunpack.c.h.b16 %v663
    %v2185 = vunpack.c.l.b16 %v664
    %v2186 = vunpack.c.h.b16 %v664
    %v2187 = vunpack.c.l.b16 %v665
    %v2188 = vunpack.c.h.b16 %v665
    %v2189 = vunpack.c.l.b16 %v666
    %v2190 = vunpack.c.h.b16 %v666
    %v2191 = vunpack.c.l.b16 %v667
    %v2192 = vunpack.c.h.b16 %v667
    %v2193 = vunpack.c.l.b16 %v668
    %v2194 = vunpack.c.h.b16 %v668
    %v2195 = vunpack.c.l.b16 %v669
    %v2196 = vunpack.c.h.b16 %v669
    %v2197 = vunpack.c.l.b16 %v670
    %v2198 = vunpack.c.h.b16 %v670
    %v2199 = vunpack.c.l.b16 %v671
    %v2200 = vunpack.c.h.b16 %v671
    %v2201 = vunpack.c.l.b16 %v672
    %v2202 = vunpack.c.h.b16 %v672
    %v2203 = vunpack.c.l.b16 %v673
    %v2204 = vunpack.c.h.b16 %v673
    %v2205 = vunpack.c.l.b16 %v674
    %v2206 = vunpack.c.h.b16 %v674
    %v2207 = vunpack.c.l.b16 %v675
    %v2208 = vunpack.c.h.b16 %v675
    %v2209 = vunpack.c.l.b16 %v676
    %v2210 = vunpack.c.h.b16 %v676
    %v2211 = vunpack.c.l.b16 %v677
    %v2212 = vunpack.c.h.b16 %v677
    %v2213 = vunpack.c.l.b16 %v678
    %v2214 = vunpack.c.h.b16 %v678
    %v2215 = vunpack.c.l.b16 %v679
    %v2216 = vunpack.c.h.b16 %v679
    %v2217 = vunpack.c.l.b16 %v680
    %v2218 = vunpack.c.h.b16 %v680
    %v2219 = vunpack.c.l.b16 %v681
    %v2220 = vunpack.c.h.b16 %v681
    %v2221 = vunpack.c.l.b16 %v682
    %v2222 = vunpack.c.h.b16 %v682
    %v2223 = vunpack.c.l.b16 %v683
    %v2224 = vunpack.c.h.b16 %v683
    %v2225 = vunpack.c.l.b16 %v684
    %v2226 = vunpack.c.h.b16 %v684
    %v2227 = vunpack.c.l.b16 %v685
    %v2228 = vunpack.c.h.b16 %v685
    %v2229 = vunpack.c.l.b16 %v686
    %v2230 = vunpack.c.h.b16 %v686
    %v2231 = vunpack.c.l.b16 %v687
    %v2232 = vunpack.c.h.b16 %v687
    %v2233 = vunpack.c.l.b16 %v688
    %v2234 = vunpack.c.h.b16 %v688
    %v2235 = vunpack.c.l.b16 %v689
    %v2236 = vunpack.c.h.b16 %v689
    %v2237 = vunpack.c.l.b16 %v690
    %v2238 = vunpack.c.h.b16 %v690
    %v2239 = vpack.c.b16 %v1217, %v1215
    %v2240 = vpack.c.b16 %v1218, %v1216
    %v2241 = vpack.c.b16 %v1221, %v1219
    %v2242 = vpack.c.b16 %v1222, %v1220
    %v2243 = vpack.c.b16 %v1225, %v1223
    %v2244 = vpack.c.b16 %v1226, %v1224
    %v2245 = vpack.c.b16 %v1229, %v1227
    %v2246 = vpack.c.b16 %v1230, %v1228
    %v2247 = vpack.c.b16 %v1233, %v1231
    %v2248 = vpack.c.b16 %v1234, %v1232
    %v2249 = vpack.c.b16 %v1237, %v1235
    %v2250 = vpack.c.b16 %v1238, %v1236
    %v2251 = vpack.c.b16 %v1241, %v1239
    %v2252 = vpack.c.b16 %v1242, %v1240
    %v2253 = vpack.c.b16 %v1245, %v1243
    %v2254 = vpack.c.b16 %v1246, %v1244
    %v2255 = vpack.c.b16 %v1249, %v1247
    %v2256 = vpack.c.b16 %v1250, %v1248
    %v2257 = vpack.c.b16 %v1253, %v1251
    %v2258 = vpack.c.b16 %v1254, %v1252
    %v2259 = vpack.c.b16 %v1257, %v1255
    %v2260 = vpack.c.b16 %v1258, %v1256
    %v2261 = vpack.c.b16 %v1261, %v1259
    %v2262 = vpack.c.b16 %v1262, %v1260
    %v2263 = vpack.c.b16 %v1265, %v1263
    %v2264 = vpack.c.b16 %v1266, %v1264
    %v2265 = vpack.c.b16 %v1269, %v1267
    %v2266 = vpack.c.b16 %v1270, %v1268
    %v2267 = vpack.c.b16 %v1273, %v1271
    %v2268 = vpack.c.b16 %v1274, %v1272
    %v2269 = vpack.c.b16 %v1277, %v1275
    %v2270 = vpack.c.b16 %v1278, %v1276
    %v2271 = vpack.c.b16 %v1281, %v1279
    %v2272 = vpack.c.b16 %v1282, %v1280
    %v2273 = vpack.c.b16 %v1285, %v1283
    %v2274 = vpack.c.b16 %v1286, %v1284
    %v2275 = vpack.c.b16 %v1289, %v1287
    %v2276 = vpack.c.b16 %v1290, %v1288
    %v2277 = vpack.c.b16 %v1293, %v1291
    %v2278 = vpack.c.b16 %v1294, %v1292
    %v2279 = vpack.c.b16 %v1297, %v1295
    %v2280 = vpack.c.b16 %v1298, %v1296
    %v2281 = vpack.c.b16 %v1301, %v1299
    %v2282 = vpack.c.b16 %v1302, %v1300
    %v2283 = vpack.c.b16 %v1305, %v1303
    %v2284 = vpack.c.b16 %v1306, %v1304
    %v2285 = vpack.c.b16 %v1309, %v1307
    %v2286 = vpack.c.b16 %v1310, %v1308
    %v2287 = vpack.c.b16 %v1313, %v1311
    %v2288 = vpack.c.b16 %v1314, %v1312
    %v2289 = vpack.c.b16 %v1317, %v1315
    %v2290 = vpack.c.b16 %v1318, %v1316
    %v2291 = vpack.c.b16 %v1321, %v1319
    %v2292 = vpack.c.b16 %v1322, %v1320
    %v2293 = vpack.c.b16 %v1325, %v1323
    %v2294 = vpack.c.b16 %v1326, %v1324
    %v2295 = vpack.c.b16 %v1329, %v1327
    %v2296 = vpack.c.b16 %v1330, %v1328
    %v2297 = vpack.c.b16 %v1333, %v1331
    %v2298 = vpack.c.b16 %v1334, %v1332
    %v2299 = vpack.c.b16 %v1337, %v1335
    %v2300 = vpack.c.b16 %v1338, %v1336
    %v2301 = vpack.c.b16 %v1341, %v1339
    %v2302 = vpack.c.b16 %v1342, %v1340
    %v2303 = vpack.c.b16 %v1345, %v1343
    %v2304 = vpack.c.b16 %v1346, %v1344
    %v2305 = vpack.c.b16 %v1349, %v1347
    %v2306 = vpack.c.b16 %v1350, %v1348
    %v2307 = vpack.c.b16 %v1353, %v1351
    %v2308 = vpack.c.b16 %v1354, %v1352
    %v2309 = vpack.c.b16 %v1357, %v1355
    %v2310 = vpack.c.b16 %v1358, %v1356
    %v2311 = vpack.c.b16 %v1361, %v1359
    %v2312 = vpack.c.b16 %v1362, %v1360
    %v2313 = vpack.c.b16 %v1365, %v1363
    %v2314 = vpack.c.b16 %v1366, %v1364
    %v2315 = vpack.c.b16 %v1369, %v1367
    %v2316 = vpack.c.b16 %v1370, %v1368
    %v2317 = vpack.c.b16 %v1373, %v1371
    %v2318 = vpack.c.b16 %v1374, %v1372
    %v2319 = vpack.c.b16 %v1377, %v1375
    %v2320 = vpack.c.b16 %v1378, %v1376
    %v2321 = vpack.c.b16 %v1381, %v1379
    %v2322 = vpack.c.b16 %v1382, %v1380
    %v2323 = vpack.c.b16 %v1385, %v1383
    %v2324 = vpack.c.b16 %v1386, %v1384
    %v2325 = vpack.c.b16 %v1389, %v1387
    %v2326 = vpack.c.b16 %v1390, %v1388
    %v2327 = vpack.c.b16 %v1393, %v1391
    %v2328 = vpack.c.b16 %v1394, %v1392
    %v2329 = vpack.c.b16 %v1397, %v1395
    %v2330 = vpack.c.b16 %v1398, %v1396
    %v2331 = vpack.c.b16 %v1401, %v1399
    %v2332 = vpack.c.b16 %v1402, %v1400
    %v2333 = vpack.c.b16 %v1405, %v1403
    %v2334 = vpack.c.b16 %v1406, %v1404
    %v2335 = vpack.c.b16 %v1409, %v1407
    %v2336 = vpack.c.b16 %v1410, %v1408
    %v2337 = vpack.c.b16 %v1413, %v1411
    %v2338 = vpack.c.b16 %v1414, %v1412
    %v2339 = vpack.c.b16 %v1417, %v1415
    %v2340 = vpack.c.b16 %v1418, %v1416
    %v2341 = vpack.c.b16 %v1421, %v1419
    %v2342 = vpack.c.b16 %v1422, %v1420
    %v2343 = vpack.c.b16 %v1425, %v1423
    %v2344 = vpack.c.b16 %v1426, %v1424
    %v2345 = vpack.c.b16 %v1429, %v1427
    %v2346 = vpack.c.b16 %v1430, %v1428
    %v2347 = vpack.c.b16 %v1433, %v1431
    %v2348 = vpack.c.b16 %v1434, %v1432
    %v2349 = vpack.c.b16 %v1437, %v1435
    %v2350 = vpack.c.b16 %v1438, %v1436
    %v2351 = vpack.c.b16 %v1441, %v1439
    %v2352 = vpack.c.b16 %v1442, %v1440
    %v2353 = vpack.c.b16 %v1445, %v1443
    %v2354 = vpack.c.b16 %v1446, %v1444
    %v2355 = vpack.c.b16 %v1449, %v1447
    %v2356 = vpack.c.b16 %v1450, %v1448
    %v2357 = vpack.c.b16 %v1453, %v1451
    %v2358 = vpack.c.b16 %v1454, %v1452
    %v2359 = vpack.c.b16 %v1457, %v1455
    %v2360 = vpack.c.b16 %v1458, %v1456
    %v2361 = vpack.c.b16 %v1461, %v1459
    %v2362 = vpack.c.b16 %v1462, %v1460
    %v2363 = vpack.c.b16 %v1465, %v1463
    %v2364 = vpack.c.b16 %v1466, %v1464
    %v2365 = vpack.c.b16 %v1469, %v1467
    %v2366 = vpack.c.b16 %v1470, %v1468
    %v2367 = vpack.c.b16 %v1473, %v1471
    %v2368 = vpack.c.b16 %v1474, %v1472
    %v2369 = vpack.c.b16 %v1477, %v1475
    %v2370 = vpack.c.b16 %v1478, %v1476
    %v2371 = vpack.c.b16 %v1481, %v1479
    %v2372 = vpack.c.b16 %v1482, %v1480
    %v2373 = vpack.c.b16 %v1485, %v1483
    %v2374 = vpack.c.b16 %v1486, %v1484
    %v2375 = vpack.c.b16 %v1489, %v1487
    %v2376 = vpack.c.b16 %v1490, %v1488
    %v2377 = vpack.c.b16 %v1493, %v1491
    %v2378 = vpack.c.b16 %v1494, %v1492
    %v2379 = vpack.c.b16 %v1497, %v1495
    %v2380 = vpack.c.b16 %v1498, %v1496
    %v2381 = vpack.c.b16 %v1501, %v1499
    %v2382 = vpack.c.b16 %v1502, %v1500
    %v2383 = vpack.c.b16 %v1505, %v1503
    %v2384 = vpack.c.b16 %v1506, %v1504
    %v2385 = vpack.c.b16 %v1509, %v1507
    %v2386 = vpack.c.b16 %v1510, %v1508
    %v2387 = vpack.c.b16 %v1513, %v1511
    %v2388 = vpack.c.b16 %v1514, %v1512
    %v2389 = vpack.c.b16 %v1517, %v1515
    %v2390 = vpack.c.b16 %v1518, %v1516
    %v2391 = vpack.c.b16 %v1521, %v1519
    %v2392 = vpack.c.b16 %v1522, %v1520
    %v2393 = vpack.c.b16 %v1525, %v1523
    %v2394 = vpack.c.b16 %v1526, %v1524
    %v2395 = vpack.c.b16 %v1529, %v1527
    %v2396 = vpack.c.b16 %v1530, %v1528
    %v2397 = vpack.c.b16 %v1533, %v1531
    %v2398 = vpack.c.b16 %v1534, %v1532
    %v2399 = vpack.c.b16 %v1537, %v1535
    %v2400 = vpack.c.b16 %v1538, %v1536
    %v2401 = vpack.c.b16 %v1541, %v1539
    %v2402 = vpack.c.b16 %v1542, %v1540
    %v2403 = vpack.c.b16 %v1545, %v1543
    %v2404 = vpack.c.b16 %v1546, %v1544
    %v2405 = vpack.c.b16 %v1549, %v1547
    %v2406 = vpack.c.b16 %v1550, %v1548
    %v2407 = vpack.c.b16 %v1553, %v1551
    %v2408 = vpack.c.b16 %v1554, %v1552
    %v2409 = vpack.c.b16 %v1557, %v1555
    %v2410 = vpack.c.b16 %v1558, %v1556
    %v2411 = vpack.c.b16 %v1561, %v1559
    %v2412 = vpack.c.b16 %v1562, %v1560
    %v2413 = vpack.c.b16 %v1565, %v1563
    %v2414 = vpack.c.b16 %v1566, %v1564
    %v2415 = vpack.c.b16 %v1569, %v1567
    %v2416 = vpack.c.b16 %v1570, %v1568
    %v2417 = vpack.c.b16 %v1573, %v1571
    %v2418 = vpack.c.b16 %v1574, %v1572
    %v2419 = vpack.c.b16 %v1577, %v1575
    %v2420 = vpack.c.b16 %v1578, %v1576
    %v2421 = vpack.c.b16 %v1581, %v1579
    %v2422 = vpack.c.b16 %v1582, %v1580
    %v2423 = vpack.c.b16 %v1585, %v1583
    %v2424 = vpack.c.b16 %v1586, %v1584
    %v2425 = vpack.c.b16 %v1589, %v1587
    %v2426 = vpack.c.b16 %v1590, %v1588
    %v2427 = vpack.c.b16 %v1593, %v1591
    %v2428 = vpack.c.b16 %v1594, %v1592
    %v2429 = vpack.c.b16 %v1597, %v1595
    %v2430 = vpack.c.b16 %v1598, %v1596
    %v2431 = vpack.c.b16 %v1601, %v1599
    %v2432 = vpack.c.b16 %v1602, %v1600
    %v2433 = vpack.c.b16 %v1605, %v1603
    %v2434 = vpack.c.b16 %v1606, %v1604
    %v2435 = vpack.c.b16 %v1609, %v1607
    %v2436 = vpack.c.b16 %v1610, %v1608
    %v2437 = vpack.c.b16 %v1613, %v1611
    %v2438 = vpack.c.b16 %v1614, %v1612
    %v2439 = vpack.c.b16 %v1617, %v1615
    %v2440 = vpack.c.b16 %v1618, %v1616
    %v2441 = vpack.c.b16 %v1621, %v1619
    %v2442 = vpack.c.b16 %v1622, %v1620
    %v2443 = vpack.c.b16 %v1625, %v1623
    %v2444 = vpack.c.b16 %v1626, %v1624
    %v2445 = vpack.c.b16 %v1629, %v1627
    %v2446 = vpack.c.b16 %v1630, %v1628
    %v2447 = vpack.c.b16 %v1633, %v1631
    %v2448 = vpack.c.b16 %v1634, %v1632
    %v2449 = vpack.c.b16 %v1637, %v1635
    %v2450 = vpack.c.b16 %v1638, %v1636
    %v2451 = vpack.c.b16 %v1641, %v1639
    %v2452 = vpack.c.b16 %v1642, %v1640
    %v2453 = vpack.c.b16 %v1645, %v1643
    %v2454 = vpack.c.b16 %v1646, %v1644
    %v2455 = vpack.c.b16 %v1649, %v1647
    %v2456 = vpack.c.b16 %v1650, %v1648
    %v2457 = vpack.c.b16 %v1653, %v1651
    %v2458 = vpack.c.b16 %v1654, %v1652
    %v2459 = vpack.c.b16 %v1657, %v1655
    %v2460 = vpack.c.b16 %v1658, %v1656
    %v2461 = vpack.c.b16 %v1661, %v1659
    %v2462 = vpack.c.b16 %v1662, %v1660
    %v2463 = vpack.c.b16 %v1665, %v1663
    %v2464 = vpack.c.b16 %v1666, %v1664
    %v2465 = vpack.c.b16 %v1669, %v1667
    %v2466 = vpack.c.b16 %v1670, %v1668
    %v2467 = vpack.c.b16 %v1673, %v1671
    %v2468 = vpack.c.b16 %v1674, %v1672
    %v2469 = vpack.c.b16 %v1677, %v1675
    %v2470 = vpack.c.b16 %v1678, %v1676
    %v2471 = vpack.c.b16 %v1681, %v1679
    %v2472 = vpack.c.b16 %v1682, %v1680
    %v2473 = vpack.c.b16 %v1685, %v1683
    %v2474 = vpack.c.b16 %v1686, %v1684
    %v2475 = vpack.c.b16 %v1689, %v1687
    %v2476 = vpack.c.b16 %v1690, %v1688
    %v2477 = vpack.c.b16 %v1693, %v1691
    %v2478 = vpack.c.b16 %v1694, %v1692
    %v2479 = vpack.c.b16 %v1697, %v1695
    %v2480 = vpack.c.b16 %v1698, %v1696
    %v2481 = vpack.c.b16 %v1701, %v1699
    %v2482 = vpack.c.b16 %v1702, %v1700
    %v2483 = vpack.c.b16 %v1705, %v1703
    %v2484 = vpack.c.b16 %v1706, %v1704
    %v2485 = vpack.c.b16 %v1709, %v1707
    %v2486 = vpack.c.b16 %v1710, %v1708
    %v2487 = vpack.c.b16 %v1713, %v1711
    %v2488 = vpack.c.b16 %v1714, %v1712
    %v2489 = vpack.c.b16 %v1717, %v1715
    %v2490 = vpack.c.b16 %v1718, %v1716
    %v2491 = vpack.c.b16 %v1721, %v1719
    %v2492 = vpack.c.b16 %v1722, %v1720
    %v2493 = vpack.c.b16 %v1725, %v1723
    %v2494 = vpack.c.b16 %v1726, %v1724
    %v2495 = vpack.c.b16 %v1729, %v1727
    %v2496 = vpack.c.b16 %v1730, %v1728
    %v2497 = vpack.c.b16 %v1733, %v1731
    %v2498 = vpack.c.b16 %v1734, %v1732
    %v2499 = vpack.c.b16 %v1737, %v1735
    %v2500 = vpack.c.b16 %v1738, %v1736
    %v2501 = vpack.c.b16 %v1741, %v1739
    %v2502 = vpack.c.b16 %v1742, %v1740
    %v2503 = vpack.c.b16 %v1745, %v1743
    %v2504 = vpack.c.b16 %v1746, %v1744
    %v2505 = vpack.c.b16 %v1749, %v1747
    %v2506 = vpack.c.b16 %v1750, %v1748
    %v2507 = vpack.c.b16 %v1753, %v1751
    %v2508 = vpack.c.b16 %v1754, %v1752
    %v2509 = vpack.c.b16 %v1757, %v1755
    %v2510 = vpack.c.b16 %v1758, %v1756
    %v2511 = vpack.c.b16 %v1761, %v1759
    %v2512 = vpack.c.b16 %v1762, %v1760
    %v2513 = vpack.c.b16 %v1765, %v1763
    %v2514 = vpack.c.b16 %v1766, %v1764
    %v2515 = vpack.c.b16 %v1769, %v1767
    %v2516 = vpack.c.b16 %v1770, %v1768
    %v2517 = vpack.c.b16 %v1773, %v1771
    %v2518 = vpack.c.b16 %v1774, %v1772
    %v2519 = vpack.c.b16 %v1777, %v1775
    %v2520 = vpack.c.b16 %v1778, %v1776
    %v2521 = vpack.c.b16 %v1781, %v1779
    %v2522 = vpack.c.b16 %v1782, %v1780
    %v2523 = vpack.c.b16 %v1785, %v1783
    %v2524 = vpack.c.b16 %v1786, %v1784
    %v2525 = vpack.c.b16 %v1789, %v1787
    %v2526 = vpack.c.b16 %v1790, %v1788
    %v2527 = vpack.c.b16 %v1793, %v1791
    %v2528 = vpack.c.b16 %v1794, %v1792
    %v2529 = vpack.c.b16 %v1797, %v1795
    %v2530 = vpack.c.b16 %v1798, %v1796
    %v2531 = vpack.c.b16 %v1801, %v1799
    %v2532 = vpack.c.b16 %v1802, %v1800
    %v2533 = vpack.c.b16 %v1805, %v1803
    %v2534 = vpack.c.b16 %v1806, %v1804
    %v2535 = vpack.c.b16 %v1809, %v1807
    %v2536 = vpack.c.b16 %v1810, %v1808
    %v2537 = vpack.c.b16 %v1813, %v1811
    %v2538 = vpack.c.b16 %v1814, %v1812
    %v2539 = vpack.c.b16 %v1817, %v1815
    %v2540 = vpack.c.b16 %v1818, %v1816
    %v2541 = vpack.c.b16 %v1821, %v1819
    %v2542 = vpack.c.b16 %v1822, %v1820
    %v2543 = vpack.c.b16 %v1825, %v1823
    %v2544 = vpack.c.b16 %v1826, %v1824
    %v2545 = vpack.c.b16 %v1829, %v1827
    %v2546 = vpack.c.b16 %v1830, %v1828
    %v2547 = vpack.c.b16 %v1833, %v1831
    %v2548 = vpack.c.b16 %v1834, %v1832
    %v2549 = vpack.c.b16 %v1837, %v1835
    %v2550 = vpack.c.b16 %v1838, %v1836
    %v2551 = vpack.c.b16 %v1841, %v1839
    %v2552 = vpack.c.b16 %v1842, %v1840
    %v2553 = vpack.c.b16 %v1845, %v1843
    %v2554 = vpack.c.b16 %v1846, %v1844
    %v2555 = vpack.c.b16 %v1849, %v1847
    %v2556 = vpack.c.b16 %v1850, %v1848
    %v2557 = vpack.c.b16 %v1853, %v1851
    %v2558 = vpack.c.b16 %v1854, %v1852
    %v2559 = vpack.c.b16 %v1857, %v1855
    %v2560 = vpack.c.b16 %v1858, %v1856
    %v2561 = vpack.c.b16 %v1861, %v1859
    %v2562 = vpack.c.b16 %v1862, %v1860
    %v2563 = vpack.c.b16 %v1865, %v1863
    %v2564 = vpack.c.b16 %v1866, %v1864
    %v2565 = vpack.c.b16 %v1869, %v1867
    %v2566 = vpack.c.b16 %v1870, %v1868
    %v2567 = vpack.c.b16 %v1873, %v1871
    %v2568 = vpack.c.b16 %v1874, %v1872
    %v2569 = vpack.c.b16 %v1877, %v1875
    %v2570 = vpack.c.b16 %v1878, %v1876
    %v2571 = vpack.c.b16 %v1881, %v1879
    %v2572 = vpack.c.b16 %v1882, %v1880
    %v2573 = vpack.c.b16 %v1885, %v1883
    %v2574 = vpack.c.b16 %v1886, %v1884
    %v2575 = vpack.c.b16 %v1889, %v1887
    %v2576 = vpack.c.b16 %v1890, %v1888
    %v2577 = vpack.c.b16 %v1893, %v1891
    %v2578 = vpack.c.b16 %v1894, %v1892
    %v2579 = vpack.c.b16 %v1897, %v1895
    %v2580 = vpack.c.b16 %v1898, %v1896
    %v2581 = vpack.c.b16 %v1901, %v1899
    %v2582 = vpack.c.b16 %v1902, %v1900
    %v2583 = vpack.c.b16 %v1905, %v1903
    %v2584 = vpack.c.b16 %v1906, %v1904
    %v2585 = vpack.c.b16 %v1909, %v1907
    %v2586 = vpack.c.b16 %v1910, %v1908
    %v2587 = vpack.c.b16 %v1913, %v1911
    %v2588 = vpack.c.b16 %v1914, %v1912
    %v2589 = vpack.c.b16 %v1917, %v1915
    %v2590 = vpack.c.b16 %v1918, %v1916
    %v2591 = vpack.c.b16 %v1921, %v1919
    %v2592 = vpack.c.b16 %v1922, %v1920
    %v2593 = vpack.c.b16 %v1925, %v1923
    %v2594 = vpack.c.b16 %v1926, %v1924
    %v2595 = vpack.c.b16 %v1929, %v1927
    %v2596 = vpack.c.b16 %v1930, %v1928
    %v2597 = vpack.c.b16 %v1933, %v1931
    %v2598 = vpack.c.b16 %v1934, %v1932
    %v2599 = vpack.c.b16 %v1937, %v1935
    %v2600 = vpack.c.b16 %v1938, %v1936
    %v2601 = vpack.c.b16 %v1941, %v1939
    %v2602 = vpack.c.b16 %v1942, %v1940
    %v2603 = vpack.c.b16 %v1945, %v1943
    %v2604 = vpack.c.b16 %v1946, %v1944
    %v2605 = vpack.c.b16 %v1949, %v1947
    %v2606 = vpack.c.b16 %v1950, %v1948
    %v2607 = vpack.c.b16 %v1953, %v1951
    %v2608 = vpack.c.b16 %v1954, %v1952
    %v2609 = vpack.c.b16 %v1957, %v1955
    %v2610 = vpack.c.b16 %v1958, %v1956
    %v2611 = vpack.c.b16 %v1961, %v1959
    %v2612 = vpack.c.b16 %v1962, %v1960
    %v2613 = vpack.c.b16 %v1965, %v1963
    %v2614 = vpack.c.b16 %v1966, %v1964
    %v2615 = vpack.c.b16 %v1969, %v1967
    %v2616 = vpack.c.b16 %v1970, %v1968
    %v2617 = vpack.c.b16 %v1973, %v1971
    %v2618 = vpack.c.b16 %v1974, %v1972
    %v2619 = vpack.c.b16 %v1977, %v1975
    %v2620 = vpack.c.b16 %v1978, %v1976
    %v2621 = vpack.c.b16 %v1981, %v1979
    %v2622 = vpack.c.b16 %v1982, %v1980
    %v2623 = vpack.c.b16 %v1985, %v1983
    %v2624 = vpack.c.b16 %v1986, %v1984
    %v2625 = vpack.c.b16 %v1989, %v1987
    %v2626 = vpack.c.b16 %v1990, %v1988
    %v2627 = vpack.c.b16 %v1993, %v1991
    %v2628 = vpack.c.b16 %v1994, %v1992
    %v2629 = vpack.c.b16 %v1997, %v1995
    %v2630 = vpack.c.b16 %v1998, %v1996
    %v2631 = vpack.c.b16 %v2001, %v1999
    %v2632 = vpack.c.b16 %v2002, %v2000
    %v2633 = vpack.c.b16 %v2005, %v2003
    %v2634 = vpack.c.b16 %v2006, %v2004
    %v2635 = vpack.c.b16 %v2009, %v2007
    %v2636 = vpack.c.b16 %v2010, %v2008
    %v2637 = vpack.c.b16 %v2013, %v2011
    %v2638 = vpack.c.b16 %v2014, %v2012
    %v2639 = vpack.c.b16 %v2017, %v2015
    %v2640 = vpack.c.b16 %v2018, %v2016
    %v2641 = vpack.c.b16 %v2021, %v2019
    %v2642 = vpack.c.b16 %v2022, %v2020
    %v2643 = vpack.c.b16 %v2025, %v2023
    %v2644 = vpack.c.b16 %v2026, %v2024
    %v2645 = vpack.c.b16 %v2029, %v2027
    %v2646 = vpack.c.b16 %v2030, %v2028
    %v2647 = vpack.c.b16 %v2033, %v2031
    %v2648 = vpack.c.b16 %v2034, %v2032
    %v2649 = vpack.c.b16 %v2037, %v2035
    %v2650 = vpack.c.b16 %v2038, %v2036
    %v2651 = vpack.c.b16 %v2041, %v2039
    %v2652 = vpack.c.b16 %v2042, %v2040
    %v2653 = vpack.c.b16 %v2045, %v2043
    %v2654 = vpack.c.b16 %v2046, %v2044
    %v2655 = vpack.c.b16 %v2049, %v2047
    %v2656 = vpack.c.b16 %v2050, %v2048
    %v2657 = vpack.c.b16 %v2053, %v2051
    %v2658 = vpack.c.b16 %v2054, %v2052
    %v2659 = vpack.c.b16 %v2057, %v2055
    %v2660 = vpack.c.b16 %v2058, %v2056
    %v2661 = vpack.c.b16 %v2061, %v2059
    %v2662 = vpack.c.b16 %v2062, %v2060
    %v2663 = vpack.c.b16 %v2065, %v2063
    %v2664 = vpack.c.b16 %v2066, %v2064
    %v2665 = vpack.c.b16 %v2069, %v2067
    %v2666 = vpack.c.b16 %v2070, %v2068
    %v2667 = vpack.c.b16 %v2073, %v2071
    %v2668 = vpack.c.b16 %v2074, %v2072
    %v2669 = vpack.c.b16 %v2077, %v2075
    %v2670 = vpack.c.b16 %v2078, %v2076
    %v2671 = vpack.c.b16 %v2081, %v2079
    %v2672 = vpack.c.b16 %v2082, %v2080
    %v2673 = vpack.c.b16 %v2085, %v2083
    %v2674 = vpack.c.b16 %v2086, %v2084
    %v2675 = vpack.c.b16 %v2089, %v2087
    %v2676 = vpack.c.b16 %v2090, %v2088
    %v2677 = vpack.c.b16 %v2093, %v2091
    %v2678 = vpack.c.b16 %v2094, %v2092
    %v2679 = vpack.c.b16 %v2097, %v2095
    %v2680 = vpack.c.b16 %v2098, %v2096
    %v2681 = vpack.c.b16 %v2101, %v2099
    %v2682 = vpack.c.b16 %v2102, %v2100
    %v2683 = vpack.c.b16 %v2105, %v2103
    %v2684 = vpack.c.b16 %v2106, %v2104
    %v2685 = vpack.c.b16 %v2109, %v2107
    %v2686 = vpack.c.b16 %v2110, %v2108
    %v2687 = vpack.c.b16 %v2113, %v2111
    %v2688 = vpack.c.b16 %v2114, %v2112
    %v2689 = vpack.c.b16 %v2117, %v2115
    %v2690 = vpack.c.b16 %v2118, %v2116
    %v2691 = vpack.c.b16 %v2121, %v2119
    %v2692 = vpack.c.b16 %v2122, %v2120
    %v2693 = vpack.c.b16 %v2125, %v2123
    %v2694 = vpack.c.b16 %v2126, %v2124
    %v2695 = vpack.c.b16 %v2129, %v2127
    %v2696 = vpack.c.b16 %v2130, %v2128
    %v2697 = vpack.c.b16 %v2133, %v2131
    %v2698 = vpack.c.b16 %v2134, %v2132
    %v2699 = vpack.c.b16 %v2137, %v2135
    %v2700 = vpack.c.b16 %v2138, %v2136
    %v2701 = vpack.c.b16 %v2141, %v2139
    %v2702 = vpack.c.b16 %v2142, %v2140
    %v2703 = vpack.c.b16 %v2145, %v2143
    %v2704 = vpack.c.b16 %v2146, %v2144
    %v2705 = vpack.c.b16 %v2149, %v2147
    %v2706 = vpack.c.b16 %v2150, %v2148
    %v2707 = vpack.c.b16 %v2153, %v2151
    %v2708 = vpack.c.b16 %v2154, %v2152
    %v2709 = vpack.c.b16 %v2157, %v2155
    %v2710 = vpack.c.b16 %v2158, %v2156
    %v2711 = vpack.c.b16 %v2161, %v2159
    %v2712 = vpack.c.b16 %v2162, %v2160
    %v2713 = vpack.c.b16 %v2165, %v2163
    %v2714 = vpack.c.b16 %v2166, %v2164
    %v2715 = vpack.c.b16 %v2169, %v2167
    %v2716 = vpack.c.b16 %v2170, %v2168
    %v2717 = vpack.c.b16 %v2173, %v2171
    %v2718 = vpack.c.b16 %v2174, %v2172
    %v2719 = vpack.c.b16 %v2177, %v2175
    %v2720 = vpack.c.b16 %v2178, %v2176
    %v2721 = vpack.c.b16 %v2181, %v2179
    %v2722 = vpack.c.b16 %v2182, %v2180
    %v2723 = vpack.c.b16 %v2185, %v2183
    %v2724 = vpack.c.b16 %v2186, %v2184
    %v2725 = vpack.c.b16 %v2189, %v2187
    %v2726 = vpack.c.b16 %v2190, %v2188
    %v2727 = vpack.c.b16 %v2193, %v2191
    %v2728 = vpack.c.b16 %v2194, %v2192
    %v2729 = vpack.c.b16 %v2197, %v2195
    %v2730 = vpack.c.b16 %v2198, %v2196
    %v2731 = vpack.c.b16 %v2201, %v2199
    %v2732 = vpack.c.b16 %v2202, %v2200
    %v2733 = vpack.c.b16 %v2205, %v2203
    %v2734 = vpack.c.b16 %v2206, %v2204
    %v2735 = vpack.c.b16 %v2209, %v2207
    %v2736 = vpack.c.b16 %v2210, %v2208
    %v2737 = vpack.c.b16 %v2213, %v2211
    %v2738 = vpack.c.b16 %v2214, %v2212
    %v2739 = vpack.c.b16 %v2217, %v2215
    %v2740 = vpack.c.b16 %v2218, %v2216
    %v2741 = vpack.c.b16 %v2221, %v2219
    %v2742 = vpack.c.b16 %v2222, %v2220
    %v2743 = vpack.c.b16 %v2225, %v2223
    %v2744 = vpack.c.b16 %v2226, %v2224
    %v2745 = vpack.c.b16 %v2229, %v2227
    %v2746 = vpack.c.b16 %v2230, %v2228
    %v2747 = vpack.c.b16 %v2233, %v2231
    %v2748 = vpack.c.b16 %v2234, %v2232
    %v2749 = vpack.c.b16 %v2237, %v2235
    %v2750 = vpack.c.b16 %v2238, %v2236
    %3263 = vmatprep.subr.bf16.mxu0 %v2240
    %3264 = vmatpush1.bf16.msra.mxu0 %v2239
    %3265 = vmatprep.subr.bf16.mxu0 %v2242
    %3266 = vmatpush1.bf16.msra.mxu0 %v2241
    %3267 = vmatprep.subr.bf16.mxu0 %v2244
    %3268 = vmatpush1.bf16.msra.mxu0 %v2243
    %3269 = vmatprep.subr.bf16.mxu0 %v2246
    %3270 = vmatpush1.bf16.msra.mxu0 %v2245
    %3271 = vmatprep.subr.bf16.mxu0 %v2248
    %3272 = vmatpush1.bf16.msra.mxu0 %v2247
    %3273 = vmatprep.subr.bf16.mxu0 %v2250
    %3274 = vmatpush1.bf16.msra.mxu0 %v2249
    %3275 = vmatprep.subr.bf16.mxu0 %v2252
    %3276 = vmatpush1.bf16.msra.mxu0 %v2251
    %3277 = vmatprep.subr.bf16.mxu0 %v2254
    %3278 = vmatpush1.bf16.msra.mxu0 %v2253
    %3279 = vmatprep.subr.bf16.mxu0 %v2256
    %3280 = vmatpush1.bf16.msra.mxu0 %v2255
    %3281 = vmatprep.subr.bf16.mxu0 %v2258
    %3282 = vmatpush1.bf16.msra.mxu0 %v2257
    %3283 = vmatprep.subr.bf16.mxu0 %v2260
    %3284 = vmatpush1.bf16.msra.mxu0 %v2259
    %3285 = vmatprep.subr.bf16.mxu0 %v2262
    %3286 = vmatpush1.bf16.msra.mxu0 %v2261
    %3287 = vmatprep.subr.bf16.mxu0 %v2264
    %3288 = vmatpush1.bf16.msra.mxu0 %v2263
    %3289 = vmatprep.subr.bf16.mxu0 %v2266
    %3290 = vmatpush1.bf16.msra.mxu0 %v2265
    %3291 = vmatprep.subr.bf16.mxu0 %v2268
    %3292 = vmatpush1.bf16.msra.mxu0 %v2267
    %3293 = vmatprep.subr.bf16.mxu0 %v2270
    %3294 = vmatpush1.bf16.msra.mxu0 %v2269
    %3295 = vmatprep.mubr.bf16.mxu0 %v148
    %3296 = vmatmul.mubr.bf16.gmra.mrb[0].mxu0 %v147
    %v3297 = vpop.f32.mrb[0].mxu0
    %v3298 = vadd.f32 %v696, %v3297
    %v3299 = vpop.f32.mrb[0].mxu0
    %v3300 = vadd.f32 %v700, %v3299
    %v3301 = vpop.f32.mrb[0].mxu0
    %v3302 = vpop.f32.mrb[0].mxu0
    %3303 = vdwg.mxu0
    %3304 = vmatprep.subr.bf16.mxu0 %v2272
    %3305 = vmatpush1.bf16.msra.mxu0 %v2271
    %3306 = vmatprep.subr.bf16.mxu0 %v2274
    %3307 = vmatpush1.bf16.msra.mxu0 %v2273
    %3308 = vmatprep.subr.bf16.mxu0 %v2276
    %3309 = vmatpush1.bf16.msra.mxu0 %v2275
    %3310 = vmatprep.subr.bf16.mxu0 %v2278
    %3311 = vmatpush1.bf16.msra.mxu0 %v2277
    %3312 = vmatprep.subr.bf16.mxu0 %v2280
    %3313 = vmatpush1.bf16.msra.mxu0 %v2279
    %3314 = vmatprep.subr.bf16.mxu0 %v2282
    %3315 = vmatpush1.bf16.msra.mxu0 %v2281
    %3316 = vmatprep.subr.bf16.mxu0 %v2284
    %3317 = vmatpush1.bf16.msra.mxu0 %v2283
    %3318 = vmatprep.subr.bf16.mxu0 %v2286
    %3319 = vmatpush1.bf16.msra.mxu0 %v2285
    %3320 = vmatprep.subr.bf16.mxu0 %v2288
    %3321 = vmatpush1.bf16.msra.mxu0 %v2287
    %3322 = vmatprep.subr.bf16.mxu0 %v2290
    %3323 = vmatpush1.bf16.msra.mxu0 %v2289
    %3324 = vmatprep.subr.bf16.mxu0 %v2292
    %3325 = vmatpush1.bf16.msra.mxu0 %v2291
    %3326 = vmatprep.subr.bf16.mxu0 %v2294
    %3327 = vmatpush1.bf16.msra.mxu0 %v2293
    %3328 = vmatprep.subr.bf16.mxu0 %v2296
    %3329 = vmatpush1.bf16.msra.mxu0 %v2295
    %3330 = vmatprep.subr.bf16.mxu0 %v2298
    %3331 = vmatpush1.bf16.msra.mxu0 %v2297
    %3332 = vmatprep.subr.bf16.mxu0 %v2300
    %3333 = vmatpush1.bf16.msra.mxu0 %v2299
    %3334 = vmatprep.subr.bf16.mxu0 %v2302
    %3335 = vmatpush1.bf16.msra.mxu0 %v2301
    %3336 = vmatprep.mubr.bf16.mxu0 %v150
    %3337 = vmatmul.mubr.bf16.gmra.mrb[0].mxu0 %v149
    %v3338 = vpop.f32.mrb[0].mxu0
    %v3339 = vadd.f32 %v3298, %v3338
    %v3340 = vpop.f32.mrb[0].mxu0
    %v3341 = vadd.f32 %v3300, %v3340
    %v3342 = vpop.f32.mrb[0].mxu0
    %v3343 = vpop.f32.mrb[0].mxu0
    %3344 = vdwg.mxu0
    %3345 = vmatprep.subr.bf16.mxu0 %v2304
    %3346 = vmatpush1.bf16.msra.mxu0 %v2303
    %3347 = vmatprep.subr.bf16.mxu0 %v2306
    %3348 = vmatpush1.bf16.msra.mxu0 %v2305
    %3349 = vmatprep.subr.bf16.mxu0 %v2308
    %3350 = vmatpush1.bf16.msra.mxu0 %v2307
    %3351 = vmatprep.subr.bf16.mxu0 %v2310
    %3352 = vmatpush1.bf16.msra.mxu0 %v2309
    %3353 = vmatprep.subr.bf16.mxu0 %v2312
    %3354 = vmatpush1.bf16.msra.mxu0 %v2311
    %3355 = vmatprep.subr.bf16.mxu0 %v2314
    %3356 = vmatpush1.bf16.msra.mxu0 %v2313
    %3357 = vmatprep.subr.bf16.mxu0 %v2316
    %3358 = vmatpush1.bf16.msra.mxu0 %v2315
    %3359 = vmatprep.subr.bf16.mxu0 %v2318
    %3360 = vmatpush1.bf16.msra.mxu0 %v2317
    %3361 = vmatprep.subr.bf16.mxu0 %v2320
    %3362 = vmatpush1.bf16.msra.mxu0 %v2319
    %3363 = vmatprep.subr.bf16.mxu0 %v2322
    %3364 = vmatpush1.bf16.msra.mxu0 %v2321
    %3365 = vmatprep.subr.bf16.mxu0 %v2324
    %3366 = vmatpush1.bf16.msra.mxu0 %v2323
    %3367 = vmatprep.subr.bf16.mxu0 %v2326
    %3368 = vmatpush1.bf16.msra.mxu0 %v2325
    %3369 = vmatprep.subr.bf16.mxu0 %v2328
    %3370 = vmatpush1.bf16.msra.mxu0 %v2327
    %3371 = vmatprep.subr.bf16.mxu0 %v2330
    %3372 = vmatpush1.bf16.msra.mxu0 %v2329
    %3373 = vmatprep.subr.bf16.mxu0 %v2332
    %3374 = vmatpush1.bf16.msra.mxu0 %v2331
    %3375 = vmatprep.subr.bf16.mxu0 %v2334
    %3376 = vmatpush1.bf16.msra.mxu0 %v2333
    %3377 = vmatprep.mubr.bf16.mxu0 %v152
    %3378 = vmatmul.mubr.bf16.gmra.mrb[0].mxu0 %v151
    %v3379 = vpop.f32.mrb[0].mxu0
    %v3380 = vadd.f32 %v3339, %v3379
    %v3381 = vpop.f32.mrb[0].mxu0
    %v3382 = vadd.f32 %v3341, %v3381
    %v3383 = vpop.f32.mrb[0].mxu0
    %v3384 = vpop.f32.mrb[0].mxu0
    %3385 = vdwg.mxu0
    %3386 = vmatprep.subr.bf16.mxu0 %v2336
    %3387 = vmatpush1.bf16.msra.mxu0 %v2335
    %3388 = vmatprep.subr.bf16.mxu0 %v2338
    %3389 = vmatpush1.bf16.msra.mxu0 %v2337
    %3390 = vmatprep.subr.bf16.mxu0 %v2340
    %3391 = vmatpush1.bf16.msra.mxu0 %v2339
    %3392 = vmatprep.subr.bf16.mxu0 %v2342
    %3393 = vmatpush1.bf16.msra.mxu0 %v2341
    %3394 = vmatprep.subr.bf16.mxu0 %v2344
    %3395 = vmatpush1.bf16.msra.mxu0 %v2343
    %3396 = vmatprep.subr.bf16.mxu0 %v2346
    %3397 = vmatpush1.bf16.msra.mxu0 %v2345
    %3398 = vmatprep.subr.bf16.mxu0 %v2348
    %3399 = vmatpush1.bf16.msra.mxu0 %v2347
    %3400 = vmatprep.subr.bf16.mxu0 %v2350
    %3401 = vmatpush1.bf16.msra.mxu0 %v2349
    %3402 = vmatprep.subr.bf16.mxu0 %v2352
    %3403 = vmatpush1.bf16.msra.mxu0 %v2351
    %3404 = vmatprep.subr.bf16.mxu0 %v2354
    %3405 = vmatpush1.bf16.msra.mxu0 %v2353
    %3406 = vmatprep.subr.bf16.mxu0 %v2356
    %3407 = vmatpush1.bf16.msra.mxu0 %v2355
    %3408 = vmatprep.subr.bf16.mxu0 %v2358
    %3409 = vmatpush1.bf16.msra.mxu0 %v2357
    %3410 = vmatprep.subr.bf16.mxu0 %v2360
    %3411 = vmatpush1.bf16.msra.mxu0 %v2359
    %3412 = vmatprep.subr.bf16.mxu0 %v2362
    %3413 = vmatpush1.bf16.msra.mxu0 %v2361
    %3414 = vmatprep.subr.bf16.mxu0 %v2364
    %3415 = vmatpush1.bf16.msra.mxu0 %v2363
    %3416 = vmatprep.subr.bf16.mxu0 %v2366
    %3417 = vmatpush1.bf16.msra.mxu0 %v2365
    %3418 = vmatprep.mubr.bf16.mxu0 %v154
    %3419 = vmatmul.mubr.bf16.gmra.mrb[0].mxu0 %v153
    %v3420 = vpop.f32.mrb[0].mxu0
    %v3421 = vadd.f32 %v3380, %v3420
    %v3422 = vpop.f32.mrb[0].mxu0
    %v3423 = vadd.f32 %v3382, %v3422
    %v3424 = vpop.f32.mrb[0].mxu0
    %v3425 = vpop.f32.mrb[0].mxu0
    %3426 = vdwg.mxu0
    %3427 = vmatprep.subr.bf16.mxu0 %v2368
    %3428 = vmatpush1.bf16.msra.mxu0 %v2367
    %3429 = vmatprep.subr.bf16.mxu0 %v2370
    %3430 = vmatpush1.bf16.msra.mxu0 %v2369
    %3431 = vmatprep.subr.bf16.mxu0 %v2372
    %3432 = vmatpush1.bf16.msra.mxu0 %v2371
    %3433 = vmatprep.subr.bf16.mxu0 %v2374
    %3434 = vmatpush1.bf16.msra.mxu0 %v2373
    %3435 = vmatprep.subr.bf16.mxu0 %v2376
    %3436 = vmatpush1.bf16.msra.mxu0 %v2375
    %3437 = vmatprep.subr.bf16.mxu0 %v2378
    %3438 = vmatpush1.bf16.msra.mxu0 %v2377
    %3439 = vmatprep.subr.bf16.mxu0 %v2380
    %3440 = vmatpush1.bf16.msra.mxu0 %v2379
    %3441 = vmatprep.subr.bf16.mxu0 %v2382
    %3442 = vmatpush1.bf16.msra.mxu0 %v2381
    %3443 = vmatprep.subr.bf16.mxu0 %v2384
    %3444 = vmatpush1.bf16.msra.mxu0 %v2383
    %3445 = vmatprep.subr.bf16.mxu0 %v2386
    %3446 = vmatpush1.bf16.msra.mxu0 %v2385
    %3447 = vmatprep.subr.bf16.mxu0 %v2388
    %3448 = vmatpush1.bf16.msra.mxu0 %v2387
    %3449 = vmatprep.subr.bf16.mxu0 %v2390
    %3450 = vmatpush1.bf16.msra.mxu0 %v2389
    %3451 = vmatprep.subr.bf16.mxu0 %v2392
    %3452 = vmatpush1.bf16.msra.mxu0 %v2391
    %3453 = vmatprep.subr.bf16.mxu0 %v2394
    %3454 = vmatpush1.bf16.msra.mxu0 %v2393
    %3455 = vmatprep.subr.bf16.mxu0 %v2396
    %3456 = vmatpush1.bf16.msra.mxu0 %v2395
    %3457 = vmatprep.subr.bf16.mxu0 %v2398
    %3458 = vmatpush1.bf16.msra.mxu0 %v2397
    %3459 = vmatprep.mubr.bf16.mxu0 %v156
    %3460 = vmatmul.mubr.bf16.gmra.mrb[0].mxu0 %v155
    %v3461 = vpop.f32.mrb[0].mxu0
    %v3462 = vadd.f32 %v3421, %v3461
    %v3463 = vpop.f32.mrb[0].mxu0
    %v3464 = vadd.f32 %v3423, %v3463
    %v3465 = vpop.f32.mrb[0].mxu0
    %v3466 = vpop.f32.mrb[0].mxu0
    %3467 = vdwg.mxu0
    %3468 = vmatprep.subr.bf16.mxu0 %v2400
    %3469 = vmatpush1.bf16.msra.mxu0 %v2399
    %3470 = vmatprep.subr.bf16.mxu0 %v2402
    %3471 = vmatpush1.bf16.msra.mxu0 %v2401
    %3472 = vmatprep.subr.bf16.mxu0 %v2404
    %3473 = vmatpush1.bf16.msra.mxu0 %v2403
    %3474 = vmatprep.subr.bf16.mxu0 %v2406
    %3475 = vmatpush1.bf16.msra.mxu0 %v2405
    %3476 = vmatprep.subr.bf16.mxu0 %v2408
    %3477 = vmatpush1.bf16.msra.mxu0 %v2407
    %3478 = vmatprep.subr.bf16.mxu0 %v2410
    %3479 = vmatpush1.bf16.msra.mxu0 %v2409
    %3480 = vmatprep.subr.bf16.mxu0 %v2412
    %3481 = vmatpush1.bf16.msra.mxu0 %v2411
    %3482 = vmatprep.subr.bf16.mxu0 %v2414
    %3483 = vmatpush1.bf16.msra.mxu0 %v2413
    %3484 = vmatprep.subr.bf16.mxu0 %v2416
    %3485 = vmatpush1.bf16.msra.mxu0 %v2415
    %3486 = vmatprep.subr.bf16.mxu0 %v2418
    %3487 = vmatpush1.bf16.msra.mxu0 %v2417
    %3488 = vmatprep.subr.bf16.mxu0 %v2420
    %3489 = vmatpush1.bf16.msra.mxu0 %v2419
    %3490 = vmatprep.subr.bf16.mxu0 %v2422
    %3491 = vmatpush1.bf16.msra.mxu0 %v2421
    %3492 = vmatprep.subr.bf16.mxu0 %v2424
    %3493 = vmatpush1.bf16.msra.mxu0 %v2423
    %3494 = vmatprep.subr.bf16.mxu0 %v2426
    %3495 = vmatpush1.bf16.msra.mxu0 %v2425
    %3496 = vmatprep.subr.bf16.mxu0 %v2428
    %3497 = vmatpush1.bf16.msra.mxu0 %v2427
    %3498 = vmatprep.subr.bf16.mxu0 %v2430
    %3499 = vmatpush1.bf16.msra.mxu0 %v2429
    %3500 = vmatprep.mubr.bf16.mxu0 %v158
    %3501 = vmatmul.mubr.bf16.gmra.mrb[0].mxu0 %v157
    %v3502 = vpop.f32.mrb[0].mxu0
    %v3503 = vadd.f32 %v3462, %v3502
    %v3504 = vpop.f32.mrb[0].mxu0
    %v3505 = vadd.f32 %v3464, %v3504
    %v3506 = vpop.f32.mrb[0].mxu0
    %v3507 = vpop.f32.mrb[0].mxu0
    %3508 = vdwg.mxu0
    %3509 = vmatprep.subr.bf16.mxu0 %v2432
    %3510 = vmatpush1.bf16.msra.mxu0 %v2431
    %3511 = vmatprep.subr.bf16.mxu0 %v2434
    %3512 = vmatpush1.bf16.msra.mxu0 %v2433
    %3513 = vmatprep.subr.bf16.mxu0 %v2436
    %3514 = vmatpush1.bf16.msra.mxu0 %v2435
    %3515 = vmatprep.subr.bf16.mxu0 %v2438
    %3516 = vmatpush1.bf16.msra.mxu0 %v2437
    %3517 = vmatprep.subr.bf16.mxu0 %v2440
    %3518 = vmatpush1.bf16.msra.mxu0 %v2439
    %3519 = vmatprep.subr.bf16.mxu0 %v2442
    %3520 = vmatpush1.bf16.msra.mxu0 %v2441
    %3521 = vmatprep.subr.bf16.mxu0 %v2444
    %3522 = vmatpush1.bf16.msra.mxu0 %v2443
    %3523 = vmatprep.subr.bf16.mxu0 %v2446
    %3524 = vmatpush1.bf16.msra.mxu0 %v2445
    %3525 = vmatprep.subr.bf16.mxu0 %v2448
    %3526 = vmatpush1.bf16.msra.mxu0 %v2447
    %3527 = vmatprep.subr.bf16.mxu0 %v2450
    %3528 = vmatpush1.bf16.msra.mxu0 %v2449
    %3529 = vmatprep.subr.bf16.mxu0 %v2452
    %3530 = vmatpush1.bf16.msra.mxu0 %v2451
    %3531 = vmatprep.subr.bf16.mxu0 %v2454
    %3532 = vmatpush1.bf16.msra.mxu0 %v2453
    %3533 = vmatprep.subr.bf16.mxu0 %v2456
    %3534 = vmatpush1.bf16.msra.mxu0 %v2455
    %3535 = vmatprep.subr.bf16.mxu0 %v2458
    %3536 = vmatpush1.bf16.msra.mxu0 %v2457
    %3537 = vmatprep.subr.bf16.mxu0 %v2460
    %3538 = vmatpush1.bf16.msra.mxu0 %v2459
    %3539 = vmatprep.subr.bf16.mxu0 %v2462
    %3540 = vmatpush1.bf16.msra.mxu0 %v2461
    %3541 = vmatprep.mubr.bf16.mxu0 %v160
    %3542 = vmatmul.mubr.bf16.gmra.mrb[0].mxu0 %v159
    %v3543 = vpop.f32.mrb[0].mxu0
    %v3544 = vadd.f32 %v3503, %v3543
    %v3545 = vpop.f32.mrb[0].mxu0
    %v3546 = vadd.f32 %v3505, %v3545
    %v3547 = vpop.f32.mrb[0].mxu0
    %v3548 = vpop.f32.mrb[0].mxu0
    %3549 = vdwg.mxu0
    %3550 = vmatprep.subr.bf16.mxu0 %v2464
    %3551 = vmatpush1.bf16.msra.mxu0 %v2463
    %3552 = vmatprep.subr.bf16.mxu0 %v2466
    %3553 = vmatpush1.bf16.msra.mxu0 %v2465
    %3554 = vmatprep.subr.bf16.mxu0 %v2468
    %3555 = vmatpush1.bf16.msra.mxu0 %v2467
    %3556 = vmatprep.subr.bf16.mxu0 %v2470
    %3557 = vmatpush1.bf16.msra.mxu0 %v2469
    %3558 = vmatprep.subr.bf16.mxu0 %v2472
    %3559 = vmatpush1.bf16.msra.mxu0 %v2471
    %3560 = vmatprep.subr.bf16.mxu0 %v2474
    %3561 = vmatpush1.bf16.msra.mxu0 %v2473
    %3562 = vmatprep.subr.bf16.mxu0 %v2476
    %3563 = vmatpush1.bf16.msra.mxu0 %v2475
    %3564 = vmatprep.subr.bf16.mxu0 %v2478
    %3565 = vmatpush1.bf16.msra.mxu0 %v2477
    %3566 = vmatprep.subr.bf16.mxu0 %v2480
    %3567 = vmatpush1.bf16.msra.mxu0 %v2479
    %3568 = vmatprep.subr.bf16.mxu0 %v2482
    %3569 = vmatpush1.bf16.msra.mxu0 %v2481
    %3570 = vmatprep.subr.bf16.mxu0 %v2484
    %3571 = vmatpush1.bf16.msra.mxu0 %v2483
    %3572 = vmatprep.subr.bf16.mxu0 %v2486
    %3573 = vmatpush1.bf16.msra.mxu0 %v2485
    %3574 = vmatprep.subr.bf16.mxu0 %v2488
    %3575 = vmatpush1.bf16.msra.mxu0 %v2487
    %3576 = vmatprep.subr.bf16.mxu0 %v2490
    %3577 = vmatpush1.bf16.msra.mxu0 %v2489
    %3578 = vmatprep.subr.bf16.mxu0 %v2492
    %3579 = vmatpush1.bf16.msra.mxu0 %v2491
    %3580 = vmatprep.subr.bf16.mxu0 %v2494
    %3581 = vmatpush1.bf16.msra.mxu0 %v2493
    %3582 = vmatprep.mubr.bf16.mxu0 %v162
    %3583 = vmatmul.mubr.bf16.gmra.mrb[0].mxu0 %v161
    %v3584 = vpop.f32.mrb[0].mxu0
    %v3585 = vadd.f32 %v3544, %v3584
    %v3586 = vpop.f32.mrb[0].mxu0
    %v3587 = vadd.f32 %v3546, %v3586
    %v3588 = vpop.f32.mrb[0].mxu0
    %v3589 = vpop.f32.mrb[0].mxu0
    %3590 = vdwg.mxu0
    %3591 = vmatprep.subr.bf16.mxu0 %v2496
    %3592 = vmatpush1.bf16.msra.mxu0 %v2495
    %3593 = vmatprep.subr.bf16.mxu0 %v2498
    %3594 = vmatpush1.bf16.msra.mxu0 %v2497
    %3595 = vmatprep.subr.bf16.mxu0 %v2500
    %3596 = vmatpush1.bf16.msra.mxu0 %v2499
    %3597 = vmatprep.subr.bf16.mxu0 %v2502
    %3598 = vmatpush1.bf16.msra.mxu0 %v2501
    %3599 = vmatprep.subr.bf16.mxu0 %v2504
    %3600 = vmatpush1.bf16.msra.mxu0 %v2503
    %3601 = vmatprep.subr.bf16.mxu0 %v2506
    %3602 = vmatpush1.bf16.msra.mxu0 %v2505
    %3603 = vmatprep.subr.bf16.mxu0 %v2508
    %3604 = vmatpush1.bf16.msra.mxu0 %v2507
    %3605 = vmatprep.subr.bf16.mxu0 %v2510
    %3606 = vmatpush1.bf16.msra.mxu0 %v2509
    %3607 = vmatprep.subr.bf16.mxu0 %v2512
    %3608 = vmatpush1.bf16.msra.mxu0 %v2511
    %3609 = vmatprep.subr.bf16.mxu0 %v2514
    %3610 = vmatpush1.bf16.msra.mxu0 %v2513
    %3611 = vmatprep.subr.bf16.mxu0 %v2516
    %3612 = vmatpush1.bf16.msra.mxu0 %v2515
    %3613 = vmatprep.subr.bf16.mxu0 %v2518
    %3614 = vmatpush1.bf16.msra.mxu0 %v2517
    %3615 = vmatprep.subr.bf16.mxu0 %v2520
    %3616 = vmatpush1.bf16.msra.mxu0 %v2519
    %3617 = vmatprep.subr.bf16.mxu0 %v2522
    %3618 = vmatpush1.bf16.msra.mxu0 %v2521
    %3619 = vmatprep.subr.bf16.mxu0 %v2524
    %3620 = vmatpush1.bf16.msra.mxu0 %v2523
    %3621 = vmatprep.subr.bf16.mxu0 %v2526
    %3622 = vmatpush1.bf16.msra.mxu0 %v2525
    %3623 = vmatprep.mubr.bf16.mxu0 %v164
    %3624 = vmatmul.mubr.bf16.gmra.mrb[0].mxu0 %v163
    %v3625 = vpop.f32.mrb[0].mxu0
    %v3626 = vadd.f32 %v3585, %v3625
    %v3627 = vpop.f32.mrb[0].mxu0
    %v3628 = vadd.f32 %v3587, %v3627
    %v3629 = vpop.f32.mrb[0].mxu0
    %v3630 = vpop.f32.mrb[0].mxu0
    %3631 = vdwg.mxu0
    %3632 = vmatprep.subr.bf16.mxu0 %v2528
    %3633 = vmatpush1.bf16.msra.mxu0 %v2527
    %3634 = vmatprep.subr.bf16.mxu0 %v2530
    %3635 = vmatpush1.bf16.msra.mxu0 %v2529
    %3636 = vmatprep.subr.bf16.mxu0 %v2532
    %3637 = vmatpush1.bf16.msra.mxu0 %v2531
    %3638 = vmatprep.subr.bf16.mxu0 %v2534
    %3639 = vmatpush1.bf16.msra.mxu0 %v2533
    %3640 = vmatprep.subr.bf16.mxu0 %v2536
    %3641 = vmatpush1.bf16.msra.mxu0 %v2535
    %3642 = vmatprep.subr.bf16.mxu0 %v2538
    %3643 = vmatpush1.bf16.msra.mxu0 %v2537
    %3644 = vmatprep.subr.bf16.mxu0 %v2540
    %3645 = vmatpush1.bf16.msra.mxu0 %v2539
    %3646 = vmatprep.subr.bf16.mxu0 %v2542
    %3647 = vmatpush1.bf16.msra.mxu0 %v2541
    %3648 = vmatprep.subr.bf16.mxu0 %v2544
    %3649 = vmatpush1.bf16.msra.mxu0 %v2543
    %3650 = vmatprep.subr.bf16.mxu0 %v2546
    %3651 = vmatpush1.bf16.msra.mxu0 %v2545
    %3652 = vmatprep.subr.bf16.mxu0 %v2548
    %3653 = vmatpush1.bf16.msra.mxu0 %v2547
    %3654 = vmatprep.subr.bf16.mxu0 %v2550
    %3655 = vmatpush1.bf16.msra.mxu0 %v2549
    %3656 = vmatprep.subr.bf16.mxu0 %v2552
    %3657 = vmatpush1.bf16.msra.mxu0 %v2551
    %3658 = vmatprep.subr.bf16.mxu0 %v2554
    %3659 = vmatpush1.bf16.msra.mxu0 %v2553
    %3660 = vmatprep.subr.bf16.mxu0 %v2556
    %3661 = vmatpush1.bf16.msra.mxu0 %v2555
    %3662 = vmatprep.subr.bf16.mxu0 %v2558
    %3663 = vmatpush1.bf16.msra.mxu0 %v2557
    %3664 = vmatprep.mubr.bf16.mxu0 %v166
    %3665 = vmatmul.mubr.bf16.gmra.mrb[0].mxu0 %v165
    %v3666 = vpop.f32.mrb[0].mxu0
    %v3667 = vadd.f32 %v3626, %v3666
    %v3668 = vpop.f32.mrb[0].mxu0
    %v3669 = vadd.f32 %v3628, %v3668
    %v3670 = vpop.f32.mrb[0].mxu0
    %v3671 = vpop.f32.mrb[0].mxu0
    %3672 = vdwg.mxu0
    %3673 = vmatprep.subr.bf16.mxu0 %v2560
    %3674 = vmatpush1.bf16.msra.mxu0 %v2559
    %3675 = vmatprep.subr.bf16.mxu0 %v2562
    %3676 = vmatpush1.bf16.msra.mxu0 %v2561
    %3677 = vmatprep.subr.bf16.mxu0 %v2564
    %3678 = vmatpush1.bf16.msra.mxu0 %v2563
    %3679 = vmatprep.subr.bf16.mxu0 %v2566
    %3680 = vmatpush1.bf16.msra.mxu0 %v2565
    %3681 = vmatprep.subr.bf16.mxu0 %v2568
    %3682 = vmatpush1.bf16.msra.mxu0 %v2567
    %3683 = vmatprep.subr.bf16.mxu0 %v2570
    %3684 = vmatpush1.bf16.msra.mxu0 %v2569
    %3685 = vmatprep.subr.bf16.mxu0 %v2572
    %3686 = vmatpush1.bf16.msra.mxu0 %v2571
    %3687 = vmatprep.subr.bf16.mxu0 %v2574
    %3688 = vmatpush1.bf16.msra.mxu0 %v2573
    %3689 = vmatprep.subr.bf16.mxu0 %v2576
    %3690 = vmatpush1.bf16.msra.mxu0 %v2575
    %3691 = vmatprep.subr.bf16.mxu0 %v2578
    %3692 = vmatpush1.bf16.msra.mxu0 %v2577
    %3693 = vmatprep.subr.bf16.mxu0 %v2580
    %3694 = vmatpush1.bf16.msra.mxu0 %v2579
    %3695 = vmatprep.subr.bf16.mxu0 %v2582
    %3696 = vmatpush1.bf16.msra.mxu0 %v2581
    %3697 = vmatprep.subr.bf16.mxu0 %v2584
    %3698 = vmatpush1.bf16.msra.mxu0 %v2583
    %3699 = vmatprep.subr.bf16.mxu0 %v2586
    %3700 = vmatpush1.bf16.msra.mxu0 %v2585
    %3701 = vmatprep.subr.bf16.mxu0 %v2588
    %3702 = vmatpush1.bf16.msra.mxu0 %v2587
    %3703 = vmatprep.subr.bf16.mxu0 %v2590
    %3704 = vmatpush1.bf16.msra.mxu0 %v2589
    %3705 = vmatprep.mubr.bf16.mxu0 %v168
    %3706 = vmatmul.mubr.bf16.gmra.mrb[0].mxu0 %v167
    %v3707 = vpop.f32.mrb[0].mxu0
    %v3708 = vadd.f32 %v3667, %v3707
    %v3709 = vpop.f32.mrb[0].mxu0
    %v3710 = vadd.f32 %v3669, %v3709
    %v3711 = vpop.f32.mrb[0].mxu0
    %v3712 = vpop.f32.mrb[0].mxu0
    %3713 = vdwg.mxu0
    %3714 = vmatprep.subr.bf16.mxu0 %v2592
    %3715 = vmatpush1.bf16.msra.mxu0 %v2591
    %3716 = vmatprep.subr.bf16.mxu0 %v2594
    %3717 = vmatpush1.bf16.msra.mxu0 %v2593
    %3718 = vmatprep.subr.bf16.mxu0 %v2596
    %3719 = vmatpush1.bf16.msra.mxu0 %v2595
    %3720 = vmatprep.subr.bf16.mxu0 %v2598
    %3721 = vmatpush1.bf16.msra.mxu0 %v2597
    %3722 = vmatprep.subr.bf16.mxu0 %v2600
    %3723 = vmatpush1.bf16.msra.mxu0 %v2599
    %3724 = vmatprep.subr.bf16.mxu0 %v2602
    %3725 = vmatpush1.bf16.msra.mxu0 %v2601
    %3726 = vmatprep.subr.bf16.mxu0 %v2604
    %3727 = vmatpush1.bf16.msra.mxu0 %v2603
    %3728 = vmatprep.subr.bf16.mxu0 %v2606
    %3729 = vmatpush1.bf16.msra.mxu0 %v2605
    %3730 = vmatprep.subr.bf16.mxu0 %v2608
    %3731 = vmatpush1.bf16.msra.mxu0 %v2607
    %3732 = vmatprep.subr.bf16.mxu0 %v2610
    %3733 = vmatpush1.bf16.msra.mxu0 %v2609
    %3734 = vmatprep.subr.bf16.mxu0 %v2612
    %3735 = vmatpush1.bf16.msra.mxu0 %v2611
    %3736 = vmatprep.subr.bf16.mxu0 %v2614
    %3737 = vmatpush1.bf16.msra.mxu0 %v2613
    %3738 = vmatprep.subr.bf16.mxu0 %v2616
    %3739 = vmatpush1.bf16.msra.mxu0 %v2615
    %3740 = vmatprep.subr.bf16.mxu0 %v2618
    %3741 = vmatpush1.bf16.msra.mxu0 %v2617
    %3742 = vmatprep.subr.bf16.mxu0 %v2620
    %3743 = vmatpush1.bf16.msra.mxu0 %v2619
    %3744 = vmatprep.subr.bf16.mxu0 %v2622
    %3745 = vmatpush1.bf16.msra.mxu0 %v2621
    %3746 = vmatprep.mubr.bf16.mxu0 %v170
    %3747 = vmatmul.mubr.bf16.gmra.mrb[0].mxu0 %v169
    %v3748 = vpop.f32.mrb[0].mxu0
    %v3749 = vadd.f32 %v3708, %v3748
    %v3750 = vpop.f32.mrb[0].mxu0
    %v3751 = vadd.f32 %v3710, %v3750
    %v3752 = vpop.f32.mrb[0].mxu0
    %v3753 = vpop.f32.mrb[0].mxu0
    %3754 = vdwg.mxu0
    %3755 = vmatprep.subr.bf16.mxu0 %v2624
    %3756 = vmatpush1.bf16.msra.mxu0 %v2623
    %3757 = vmatprep.subr.bf16.mxu0 %v2626
    %3758 = vmatpush1.bf16.msra.mxu0 %v2625
    %3759 = vmatprep.subr.bf16.mxu0 %v2628
    %3760 = vmatpush1.bf16.msra.mxu0 %v2627
    %3761 = vmatprep.subr.bf16.mxu0 %v2630
    %3762 = vmatpush1.bf16.msra.mxu0 %v2629
    %3763 = vmatprep.subr.bf16.mxu0 %v2632
    %3764 = vmatpush1.bf16.msra.mxu0 %v2631
    %3765 = vmatprep.subr.bf16.mxu0 %v2634
    %3766 = vmatpush1.bf16.msra.mxu0 %v2633
    %3767 = vmatprep.subr.bf16.mxu0 %v2636
    %3768 = vmatpush1.bf16.msra.mxu0 %v2635
    %3769 = vmatprep.subr.bf16.mxu0 %v2638
    %3770 = vmatpush1.bf16.msra.mxu0 %v2637
    %3771 = vmatprep.subr.bf16.mxu0 %v2640
    %3772 = vmatpush1.bf16.msra.mxu0 %v2639
    %3773 = vmatprep.subr.bf16.mxu0 %v2642
    %3774 = vmatpush1.bf16.msra.mxu0 %v2641
    %3775 = vmatprep.subr.bf16.mxu0 %v2644
    %3776 = vmatpush1.bf16.msra.mxu0 %v2643
    %3777 = vmatprep.subr.bf16.mxu0 %v2646
    %3778 = vmatpush1.bf16.msra.mxu0 %v2645
    %3779 = vmatprep.subr.bf16.mxu0 %v2648
    %3780 = vmatpush1.bf16.msra.mxu0 %v2647
    %3781 = vmatprep.subr.bf16.mxu0 %v2650
    %3782 = vmatpush1.bf16.msra.mxu0 %v2649
    %3783 = vmatprep.subr.bf16.mxu0 %v2652
    %3784 = vmatpush1.bf16.msra.mxu0 %v2651
    %3785 = vmatprep.subr.bf16.mxu0 %v2654
    %3786 = vmatpush1.bf16.msra.mxu0 %v2653
    %3787 = vmatprep.mubr.bf16.mxu0 %v172
    %3788 = vmatmul.mubr.bf16.gmra.mrb[0].mxu0 %v171
    %v3789 = vpop.f32.mrb[0].mxu0
    %v3790 = vadd.f32 %v3749, %v3789
    %v3791 = vpop.f32.mrb[0].mxu0
    %v3792 = vadd.f32 %v3751, %v3791
    %v3793 = vpop.f32.mrb[0].mxu0
    %v3794 = vpop.f32.mrb[0].mxu0
    %3795 = vdwg.mxu0
    %3796 = vmatprep.subr.bf16.mxu0 %v2656
    %3797 = vmatpush1.bf16.msra.mxu0 %v2655
    %3798 = vmatprep.subr.bf16.mxu0 %v2658
    %3799 = vmatpush1.bf16.msra.mxu0 %v2657
    %3800 = vmatprep.subr.bf16.mxu0 %v2660
    %3801 = vmatpush1.bf16.msra.mxu0 %v2659
    %3802 = vmatprep.subr.bf16.mxu0 %v2662
    %3803 = vmatpush1.bf16.msra.mxu0 %v2661
    %3804 = vmatprep.subr.bf16.mxu0 %v2664
    %3805 = vmatpush1.bf16.msra.mxu0 %v2663
    %3806 = vmatprep.subr.bf16.mxu0 %v2666
    %3807 = vmatpush1.bf16.msra.mxu0 %v2665
    %3808 = vmatprep.subr.bf16.mxu0 %v2668
    %3809 = vmatpush1.bf16.msra.mxu0 %v2667
    %3810 = vmatprep.subr.bf16.mxu0 %v2670
    %3811 = vmatpush1.bf16.msra.mxu0 %v2669
    %3812 = vmatprep.subr.bf16.mxu0 %v2672
    %3813 = vmatpush1.bf16.msra.mxu0 %v2671
    %3814 = vmatprep.subr.bf16.mxu0 %v2674
    %3815 = vmatpush1.bf16.msra.mxu0 %v2673
    %3816 = vmatprep.subr.bf16.mxu0 %v2676
    %3817 = vmatpush1.bf16.msra.mxu0 %v2675
    %3818 = vmatprep.subr.bf16.mxu0 %v2678
    %3819 = vmatpush1.bf16.msra.mxu0 %v2677
    %3820 = vmatprep.subr.bf16.mxu0 %v2680
    %3821 = vmatpush1.bf16.msra.mxu0 %v2679
    %3822 = vmatprep.subr.bf16.mxu0 %v2682
    %3823 = vmatpush1.bf16.msra.mxu0 %v2681
    %3824 = vmatprep.subr.bf16.mxu0 %v2684
    %3825 = vmatpush1.bf16.msra.mxu0 %v2683
    %3826 = vmatprep.subr.bf16.mxu0 %v2686
    %3827 = vmatpush1.bf16.msra.mxu0 %v2685
    %3828 = vmatprep.mubr.bf16.mxu0 %v174
    %3829 = vmatmul.mubr.bf16.gmra.mrb[0].mxu0 %v173
    %v3830 = vpop.f32.mrb[0].mxu0
    %v3831 = vadd.f32 %v3790, %v3830
    %v3832 = vpop.f32.mrb[0].mxu0
    %v3833 = vadd.f32 %v3792, %v3832
    %v3834 = vpop.f32.mrb[0].mxu0
    %v3835 = vpop.f32.mrb[0].mxu0
    %3836 = vdwg.mxu0
    %3837 = vmatprep.subr.bf16.mxu0 %v2688
    %3838 = vmatpush1.bf16.msra.mxu0 %v2687
    %3839 = vmatprep.subr.bf16.mxu0 %v2690
    %3840 = vmatpush1.bf16.msra.mxu0 %v2689
    %3841 = vmatprep.subr.bf16.mxu0 %v2692
    %3842 = vmatpush1.bf16.msra.mxu0 %v2691
    %3843 = vmatprep.subr.bf16.mxu0 %v2694
    %3844 = vmatpush1.bf16.msra.mxu0 %v2693
    %3845 = vmatprep.subr.bf16.mxu0 %v2696
    %3846 = vmatpush1.bf16.msra.mxu0 %v2695
    %3847 = vmatprep.subr.bf16.mxu0 %v2698
    %3848 = vmatpush1.bf16.msra.mxu0 %v2697
    %3849 = vmatprep.subr.bf16.mxu0 %v2700
    %3850 = vmatpush1.bf16.msra.mxu0 %v2699
    %3851 = vmatprep.subr.bf16.mxu0 %v2702
    %3852 = vmatpush1.bf16.msra.mxu0 %v2701
    %3853 = vmatprep.subr.bf16.mxu0 %v2704
    %3854 = vmatpush1.bf16.msra.mxu0 %v2703
    %3855 = vmatprep.subr.bf16.mxu0 %v2706
    %3856 = vmatpush1.bf16.msra.mxu0 %v2705
    %3857 = vmatprep.subr.bf16.mxu0 %v2708
    %3858 = vmatpush1.bf16.msra.mxu0 %v2707
    %3859 = vmatprep.subr.bf16.mxu0 %v2710
    %3860 = vmatpush1.bf16.msra.mxu0 %v2709
    %3861 = vmatprep.subr.bf16.mxu0 %v2712
    %3862 = vmatpush1.bf16.msra.mxu0 %v2711
    %3863 = vmatprep.subr.bf16.mxu0 %v2714
    %3864 = vmatpush1.bf16.msra.mxu0 %v2713
    %3865 = vmatprep.subr.bf16.mxu0 %v2716
    %3866 = vmatpush1.bf16.msra.mxu0 %v2715
    %3867 = vmatprep.subr.bf16.mxu0 %v2718
    %3868 = vmatpush1.bf16.msra.mxu0 %v2717
    %3869 = vmatprep.mubr.bf16.mxu0 %v176
    %3870 = vmatmul.mubr.bf16.gmra.mrb[0].mxu0 %v175
    %v3871 = vpop.f32.mrb[0].mxu0
    %v3872 = vadd.f32 %v3831, %v3871
    %v3873 = vpop.f32.mrb[0].mxu0
    %v3874 = vadd.f32 %v3833, %v3873
    %v3875 = vpop.f32.mrb[0].mxu0
    %v3876 = vpop.f32.mrb[0].mxu0
    %3877 = vdwg.mxu0
    %3878 = vmatprep.subr.bf16.mxu0 %v2720
    %3879 = vmatpush1.bf16.msra.mxu0 %v2719
    %3880 = vmatprep.subr.bf16.mxu0 %v2722
    %3881 = vmatpush1.bf16.msra.mxu0 %v2721
    %3882 = vmatprep.subr.bf16.mxu0 %v2724
    %3883 = vmatpush1.bf16.msra.mxu0 %v2723
    %3884 = vmatprep.subr.bf16.mxu0 %v2726
    %3885 = vmatpush1.bf16.msra.mxu0 %v2725
    %3886 = vmatprep.subr.bf16.mxu0 %v2728
    %3887 = vmatpush1.bf16.msra.mxu0 %v2727
    %3888 = vmatprep.subr.bf16.mxu0 %v2730
    %3889 = vmatpush1.bf16.msra.mxu0 %v2729
    %3890 = vmatprep.subr.bf16.mxu0 %v2732
    %3891 = vmatpush1.bf16.msra.mxu0 %v2731
    %3892 = vmatprep.subr.bf16.mxu0 %v2734
    %3893 = vmatpush1.bf16.msra.mxu0 %v2733
    %3894 = vmatprep.subr.bf16.mxu0 %v2736
    %3895 = vmatpush1.bf16.msra.mxu0 %v2735
    %3896 = vmatprep.subr.bf16.mxu0 %v2738
    %3897 = vmatpush1.bf16.msra.mxu0 %v2737
    %3898 = vmatprep.subr.bf16.mxu0 %v2740
    %3899 = vmatpush1.bf16.msra.mxu0 %v2739
    %3900 = vmatprep.subr.bf16.mxu0 %v2742
    %3901 = vmatpush1.bf16.msra.mxu0 %v2741
    %3902 = vmatprep.subr.bf16.mxu0 %v2744
    %3903 = vmatpush1.bf16.msra.mxu0 %v2743
    %3904 = vmatprep.subr.bf16.mxu0 %v2746
    %3905 = vmatpush1.bf16.msra.mxu0 %v2745
    %3906 = vmatprep.subr.bf16.mxu0 %v2748
    %3907 = vmatpush1.bf16.msra.mxu0 %v2747
    %3908 = vmatprep.subr.bf16.mxu0 %v2750
    %3909 = vmatpush1.bf16.msra.mxu0 %v2749
    %3910 = vmatprep.mubr.bf16.mxu0 %v178
    %3911 = vmatmul.mubr.bf16.gmra.mrb[0].mxu0 %v177
    %v3912 = vpop.f32.mrb[0].mxu0
    %v3913 = vadd.f32 %v3872, %v3912
    %v3914 = vpop.f32.mrb[0].mxu0
    %v3915 = vadd.f32 %v3874, %v3914
    %v3916 = vpop.f32.mrb[0].mxu0
    %v3917 = vpop.f32.mrb[0].mxu0
    %3918 = vdwg.mxu0
    %v3919 = vmax.f32 %v3913, 0.0
    %v3920 = vmax.f32 %v3915, 0.0
    %v3921 = vpack.c.bf16 %v3919, %v3919
    %v3922 = vpack.c.bf16 %v3920, %v3920
    %v3923 = vld [vmem:[#allocation8] sm:$0xf]
    %v3924 = vld [vmem:[#allocation8 + $0x4] sm:$0xf]
    %v3925 = vld [vmem:[#allocation8 + $0x8] sm:$0xf]
    %v3926 = vld [vmem:[#allocation8 + $0xc] sm:$0xf]
    %v3927 = vld [vmem:[#allocation8 + $0x10] sm:$0xf]
    %v3928 = vld [vmem:[#allocation8 + $0x14] sm:$0xf]
    %v3929 = vld [vmem:[#allocation8 + $0x18] sm:$0xf]
    %v3930 = vld [vmem:[#allocation8 + $0x1c] sm:$0xf]
    %v3931 = vld [vmem:[#allocation8 + $0x20] sm:$0xf]
    %v3932 = vld [vmem:[#allocation8 + $0x24] sm:$0xf]
    %v3933 = vld [vmem:[#allocation8 + $0x28] sm:$0xf]
    %v3934 = vld [vmem:[#allocation8 + $0x2c] sm:$0xf]
    %v3935 = vld [vmem:[#allocation8 + $0x30] sm:$0xf]
    %v3936 = vld [vmem:[#allocation8 + $0x34] sm:$0xf]
    %v3937 = vld [vmem:[#allocation8 + $0x38] sm:$0xf]
    %v3938 = vld [vmem:[#allocation8 + $0x3c] sm:$0xf]
    %v3939 = vld [vmem:[#allocation8 + $0x40] sm:$0xf]
    %v3940 = vld [vmem:[#allocation8 + $0x44] sm:$0xf]
    %v3941 = vld [vmem:[#allocation8 + $0x48] sm:$0xf]
    %v3942 = vld [vmem:[#allocation8 + $0x4c] sm:$0xf]
    %v3943 = vld [vmem:[#allocation8 + $0x50] sm:$0xf]
    %v3944 = vld [vmem:[#allocation8 + $0x54] sm:$0xf]
    %v3945 = vld [vmem:[#allocation8 + $0x58] sm:$0xf]
    %v3946 = vld [vmem:[#allocation8 + $0x5c] sm:$0xf]
    %v3947 = vld [vmem:[#allocation8 + $0x60] sm:$0xf]
    %v3948 = vld [vmem:[#allocation8 + $0x64] sm:$0xf]
    %v3949 = vld [vmem:[#allocation8 + $0x68] sm:$0xf]
    %v3950 = vld [vmem:[#allocation8 + $0x6c] sm:$0xf]
    %v3951 = vld [vmem:[#allocation8 + $0x70] sm:$0xf]
    %v3952 = vld [vmem:[#allocation8 + $0x74] sm:$0xf]
    %v3953 = vld [vmem:[#allocation8 + $0x78] sm:$0xf]
    %v3954 = vld [vmem:[#allocation8 + $0x7c] sm:$0xf]
    %v3955 = vld [vmem:[#allocation10] sm:$0x1]
    %v3957 = vlaneseq
    %v3958 = vshrl.u32 %v3957, 7
    %v3959 = vsub.s32 0, %v3958
    %v3960 = vrot.slane %v3955, %v3959
    %v3994 = vunpack.c.l.b16 %v3923
    %v3995 = vunpack.c.l.b16 %v3924
    %v3996 = vunpack.c.l.b16 %v3925
    %v3997 = vunpack.c.l.b16 %v3926
    %v3998 = vunpack.c.l.b16 %v3927
    %v3999 = vunpack.c.l.b16 %v3928
    %v4000 = vunpack.c.l.b16 %v3929
    %v4001 = vunpack.c.l.b16 %v3930
    %v4002 = vunpack.c.l.b16 %v3931
    %v4003 = vunpack.c.l.b16 %v3932
    %v4004 = vunpack.c.l.b16 %v3933
    %v4005 = vunpack.c.l.b16 %v3934
    %v4006 = vunpack.c.l.b16 %v3935
    %v4007 = vunpack.c.l.b16 %v3936
    %v4008 = vunpack.c.l.b16 %v3937
    %v4009 = vunpack.c.l.b16 %v3938
    %v4010 = vunpack.c.l.b16 %v3939
    %v4011 = vunpack.c.l.b16 %v3940
    %v4012 = vunpack.c.l.b16 %v3941
    %v4013 = vunpack.c.l.b16 %v3942
    %v4014 = vunpack.c.l.b16 %v3943
    %v4015 = vunpack.c.l.b16 %v3944
    %v4016 = vunpack.c.l.b16 %v3945
    %v4017 = vunpack.c.l.b16 %v3946
    %v4018 = vunpack.c.l.b16 %v3947
    %v4019 = vunpack.c.l.b16 %v3948
    %v4020 = vunpack.c.l.b16 %v3949
    %v4021 = vunpack.c.l.b16 %v3950
    %v4022 = vunpack.c.l.b16 %v3951
    %v4023 = vunpack.c.l.b16 %v3952
    %v4024 = vunpack.c.l.b16 %v3953
    %v4025 = vunpack.c.l.b16 %v3954
    %v4026 = vpack.c.b16 %v3995, %v3994
    %v4027 = vpack.c.b16 %v3997, %v3996
    %v4028 = vpack.c.b16 %v3999, %v3998
    %v4029 = vpack.c.b16 %v4001, %v4000
    %v4030 = vpack.c.b16 %v4003, %v4002
    %v4031 = vpack.c.b16 %v4005, %v4004
    %v4032 = vpack.c.b16 %v4007, %v4006
    %v4033 = vpack.c.b16 %v4009, %v4008
    %v4034 = vpack.c.b16 %v4011, %v4010
    %v4035 = vpack.c.b16 %v4013, %v4012
    %v4036 = vpack.c.b16 %v4015, %v4014
    %v4037 = vpack.c.b16 %v4017, %v4016
    %v4038 = vpack.c.b16 %v4019, %v4018
    %v4039 = vpack.c.b16 %v4021, %v4020
    %v4040 = vpack.c.b16 %v4023, %v4022
    %v4041 = vpack.c.b16 %v4025, %v4024
    %4058 = vmatprep.subr.bf16.mxu0 0
    %4059 = vmatpush1.bf16.msra.mxu0 %v4026
    %4060 = vmatprep.subr.bf16.mxu0 0
    %4061 = vmatpush1.bf16.msra.mxu0 %v4027
    %4062 = vmatprep.subr.bf16.mxu0 0
    %4063 = vmatpush1.bf16.msra.mxu0 %v4028
    %4064 = vmatprep.subr.bf16.mxu0 0
    %4065 = vmatpush1.bf16.msra.mxu0 %v4029
    %4066 = vmatprep.subr.bf16.mxu0 0
    %4067 = vmatpush1.bf16.msra.mxu0 %v4030
    %4068 = vmatprep.subr.bf16.mxu0 0
    %4069 = vmatpush1.bf16.msra.mxu0 %v4031
    %4070 = vmatprep.subr.bf16.mxu0 0
    %4071 = vmatpush1.bf16.msra.mxu0 %v4032
    %4072 = vmatprep.subr.bf16.mxu0 0
    %4073 = vmatpush1.bf16.msra.mxu0 %v4033
    %4074 = vmatprep.subr.bf16.mxu0 0
    %4075 = vmatpush1.bf16.msra.mxu0 %v4034
    %4076 = vmatprep.subr.bf16.mxu0 0
    %4077 = vmatpush1.bf16.msra.mxu0 %v4035
    %4078 = vmatprep.subr.bf16.mxu0 0
    %4079 = vmatpush1.bf16.msra.mxu0 %v4036
    %4080 = vmatprep.subr.bf16.mxu0 0
    %4081 = vmatpush1.bf16.msra.mxu0 %v4037
    %4082 = vmatprep.subr.bf16.mxu0 0
    %4083 = vmatpush1.bf16.msra.mxu0 %v4038
    %4084 = vmatprep.subr.bf16.mxu0 0
    %4085 = vmatpush1.bf16.msra.mxu0 %v4039
    %4086 = vmatprep.subr.bf16.mxu0 0
    %4087 = vmatpush1.bf16.msra.mxu0 %v4040
    %4088 = vmatprep.subr.bf16.mxu0 0
    %4089 = vmatpush1.bf16.msra.mxu0 %v4041
    %4090 = vmatprep.mubr.bf16.mxu0 %v3922
    %4091 = vmatmul.mubr.bf16.gmra.mrb[0].mxu0 %v3921
    %v4092 = vpop.f32.mrb[0].mxu0
    %v4093 = vadd.f32 %v3960, %v4092
    %v4094 = vpop.f32.mrb[0].mxu0
    %v4095 = vpop.f32.mrb[0].mxu0
    %v4096 = vpop.f32.mrb[0].mxu0
    %4097 = vdwg.mxu0
    %v4098 = vmax.f32 %v4093, 0.0
    %v4099 = vpack.c.bf16 %v4098, %v4098
    %v4100 = vld [vmem:[#allocation11] sm:$0xf]
    %v4101 = vld [vmem:[#allocation11 + $0x4] sm:$0xf]
    %v4102 = vld [vmem:[#allocation11 + $0x8] sm:$0xf]
    %v4103 = vld [vmem:[#allocation11 + $0xc] sm:$0xf]
    %v4104 = vld [vmem:[#allocation11 + $0x10] sm:$0xf]
    %v4105 = vld [vmem:[#allocation11 + $0x14] sm:$0xf]
    %v4106 = vld [vmem:[#allocation11 + $0x18] sm:$0xf]
    %v4107 = vld [vmem:[#allocation11 + $0x1c] sm:$0xf]
    %v4108 = vld [vmem:[#allocation11 + $0x20] sm:$0xf]
    %v4109 = vld [vmem:[#allocation11 + $0x24] sm:$0xf]
    %v4110 = vld [vmem:[#allocation11 + $0x28] sm:$0xf]
    %v4111 = vld [vmem:[#allocation11 + $0x2c] sm:$0xf]
    %v4112 = vld [vmem:[#allocation11 + $0x30] sm:$0xf]
    %v4113 = vld [vmem:[#allocation11 + $0x34] sm:$0xf]
    %v4114 = vld [vmem:[#allocation11 + $0x38] sm:$0xf]
    %v4115 = vld [vmem:[#allocation11 + $0x3c] sm:$0xf]
    %v4116 = vld [vmem:[#allocation13] sm:$0x1]
    %v4118 = vlaneseq
    %v4119 = vshrl.u32 %v4118, 7
    %v4120 = vsub.s32 0, %v4119
    %v4121 = vrot.slane %v4116, %v4120
    %v4139 = vunpack.c.l.b16 %v4100
    %v4140 = vunpack.c.l.b16 %v4101
    %v4141 = vunpack.c.l.b16 %v4102
    %v4142 = vunpack.c.l.b16 %v4103
    %v4143 = vunpack.c.l.b16 %v4104
    %v4144 = vunpack.c.l.b16 %v4105
    %v4145 = vunpack.c.l.b16 %v4106
    %v4146 = vunpack.c.l.b16 %v4107
    %v4147 = vunpack.c.l.b16 %v4108
    %v4148 = vunpack.c.l.b16 %v4109
    %v4149 = vunpack.c.l.b16 %v4110
    %v4150 = vunpack.c.l.b16 %v4111
    %v4151 = vunpack.c.l.b16 %v4112
    %v4152 = vunpack.c.l.b16 %v4113
    %v4153 = vunpack.c.l.b16 %v4114
    %v4154 = vunpack.c.l.b16 %v4115
    %v4155 = vpack.c.b16 %v4140, %v4139
    %v4156 = vpack.c.b16 %v4142, %v4141
    %v4157 = vpack.c.b16 %v4144, %v4143
    %v4158 = vpack.c.b16 %v4146, %v4145
    %v4159 = vpack.c.b16 %v4148, %v4147
    %v4160 = vpack.c.b16 %v4150, %v4149
    %v4161 = vpack.c.b16 %v4152, %v4151
    %v4162 = vpack.c.b16 %v4154, %v4153
    %4171 = vmatprep.subr.bf16.mxu0 0
    %4172 = vmatpush1.bf16.msra.mxu0 %v4155
    %4173 = vmatprep.subr.bf16.mxu0 0
    %4174 = vmatpush1.bf16.msra.mxu0 %v4156
    %4175 = vmatprep.subr.bf16.mxu0 0
    %4176 = vmatpush1.bf16.msra.mxu0 %v4157
    %4177 = vmatprep.subr.bf16.mxu0 0
    %4178 = vmatpush1.bf16.msra.mxu0 %v4158
    %4179 = vmatprep.subr.bf16.mxu0 0
    %4180 = vmatpush1.bf16.msra.mxu0 %v4159
    %4181 = vmatprep.subr.bf16.mxu0 0
    %4182 = vmatpush1.bf16.msra.mxu0 %v4160
    %4183 = vmatprep.subr.bf16.mxu0 0
    %4184 = vmatpush1.bf16.msra.mxu0 %v4161
    %4185 = vmatprep.subr.bf16.mxu0 0
    %4186 = vmatpush1.bf16.msra.mxu0 %v4162
    %4187 = vmatprep.subr.bf16.mxu0 0
    %4188 = vmatpush1.bf16.msra.mxu0 0
    %4189 = vmatprep.subr.bf16.mxu0 0
    %4190 = vmatpush1.bf16.msra.mxu0 0
    %4191 = vmatprep.subr.bf16.mxu0 0
    %4192 = vmatpush1.bf16.msra.mxu0 0
    %4193 = vmatprep.subr.bf16.mxu0 0
    %4194 = vmatpush1.bf16.msra.mxu0 0
    %4195 = vmatprep.subr.bf16.mxu0 0
    %4196 = vmatpush1.bf16.msra.mxu0 0
    %4197 = vmatprep.subr.bf16.mxu0 0
    %4198 = vmatpush1.bf16.msra.mxu0 0
    %4199 = vmatprep.subr.bf16.mxu0 0
    %4200 = vmatpush1.bf16.msra.mxu0 0
    %4201 = vmatprep.subr.bf16.mxu0 0
    %4202 = vmatpush1.bf16.msra.mxu0 0
    %4203 = vmatprep.mubr.bf16.mxu0 0
    %4204 = vmatmul.mubr.bf16.gmra.mrb[0].mxu0 %v4099
    %v4205 = vpop.f32.mrb[0].mxu0
    %v4206 = vadd.f32 %v4121, %v4205
    %v4207 = vpop.f32.mrb[0].mxu0
    %v4208 = vpop.f32.mrb[0].mxu0
    %v4209 = vpop.f32.mrb[0].mxu0
    %4210 = vdwg.mxu0
    %4211 = vst [vmem:[#allocation14] sm:$0xff] %v4206
    // Predicated region
    $region58: #{tpu_custom_call.1} parent=1 // pred_check
      _
    $region59: #{tpu_custom_call.1} parent=1 // pred_check_branch
      %4213 = sbr.rel (0) target = $region61
    $region60: #{tpu_custom_call.1} parent=1 // pred_region
      %s4215 = ssub.s32 128, 128
      %4216 = vsyncadd [#allocation4], %s4215
      %s4218 = sshll.u32 [#allocation14], 4
      %s4219 = int_to_ptr.vmem [resolvable:$true] %s4218
      %4221 = dma.vmem_to_hbm [thread:$0]  %s4219, 128, %s7, [#allocation4]
    $region61: #{tpu_custom_call.1} parent=1 // pred_fallthru
      _
    // Predicated region
    $region62: #{tpu_custom_call.1} parent=1 // pred_check
      _
    $region63: #{tpu_custom_call.1} parent=1 // pred_check_branch
      %4223 = sbr.rel (0) target = $region65
    $region64: #{tpu_custom_call.1} parent=1 // pred_region
      %4224 = dma.done [#allocation4], 128
    $region65: #{tpu_custom_call.1} parent=1 // pred_fallthru
      _
    %4225 = vsyncpa [#allocation3], 1
    %4226 = vsyncpa [#allocation6], 1
    %4227 = vsyncpa [#allocation9], 1
    %4228 = vsyncpa [#allocation12], 1
    %4229 = vsyncpa [#allocation4], 1

</llo_original>
